<compile_context>
chip_gen: v5e
topology: v5e:2x2
jax: 0.10.0
libtpu: 0.0.40
codegen_flags: <defaults>
</compile_context>

<pallas_src>
import functools

import jax
import jax.numpy as jnp
from jax.experimental import pallas as pl
from jax.experimental.pallas import tpu as pltpu

# Model sizes (in_features is data-dependent in the original code; pick a
# small deterministic value for this synthetic kernel).
NUM_FEATURES = 16
DIMS = [NUM_FEATURES, 260, 770, 500, 320, 880, 2]
NUM_CLASSES = DIMS[-1]
LEAKY_SLOPE = 0.01            # F.leaky_relu default negative_slope


def _round_up(n, m):
    return ((n + m - 1) // m) * m


# Lane-padded widths (input feature dim stays at its true size; BlockSpec
# allows a last dim equal to the full array dim).
PADDED = [NUM_FEATURES] + [_round_up(d, 128) for d in DIMS[1:]]
N_LAYERS = len(DIMS) - 1


# --------------------------------------------------------------------------
# Kernel
# --------------------------------------------------------------------------
def mlp_kernel(x_ref,
               w1_ref, b1_ref,
               w2_ref, b2_ref,
               w3_ref, b3_ref,
               w4_ref, b4_ref,
               w5_ref, b5_ref,
               w6_ref, b6_ref,
               o_ref,
               *, matmul_dtype, act_dtype):
    """Fully fused 6-layer MLP for one (tile_b, F) batch tile.

    MXU accumulation is always f32; bias/activation math runs in `act_dtype`
    (bf16 on v6e/v7x, f32 on v5e).  The final layer's bias add stays in f32.
    """

    def dense(h, w_ref, b_ref, out_dtype):
        acc = jnp.dot(h.astype(matmul_dtype), w_ref[...],
                      preferred_element_type=jnp.float32)
        return acc.astype(out_dtype) + b_ref[...]

    h = x_ref[...]                                     # already matmul_dtype

    # fc1 + leaky_relu  (max(h, slope*h) == leaky_relu for slope in (0,1))
    h = dense(h, w1_ref, b1_ref, act_dtype)
    h = jnp.maximum(h, LEAKY_SLOPE * h)

    # fc2 + relu
    h = dense(h, w2_ref, b2_ref, act_dtype)
    h = jnp.maximum(h, 0.0)

    # fc3 + relu (dropout p=0.05 is identity in eval mode)
    # TODO(synk): training-mode dropout (prng mask + 1/(1-p) scaling) not implemented.
    h = dense(h, w3_ref, b3_ref, act_dtype)
    h = jnp.maximum(h, 0.0)

    # fc4 + relu
    h = dense(h, w4_ref, b4_ref, act_dtype)
    h = jnp.maximum(h, 0.0)

    # fc5 + relu
    h = dense(h, w5_ref, b5_ref, act_dtype)
    h = jnp.maximum(h, 0.0)

    # output (no activation); weight/bias zero-padded to 128 output lanes.
    h = dense(h, w6_ref, b6_ref, jnp.float32)

    o_ref[...] = h.astype(o_ref.dtype)


# --------------------------------------------------------------------------
# Parameter init & prep
# --------------------------------------------------------------------------
def init_params(key):
    """Deterministic init mimicking torch.nn.Linear default
    (U[-1/sqrt(fan_in), 1/sqrt(fan_in)]).  Weights stored (in, out)."""
    params = []
    for i in range(N_LAYERS):
        fan_in, fan_out = DIMS[i], DIMS[i + 1]
        key, kw, kb = jax.random.split(key, 3)
        bound = 1.0 / jnp.sqrt(jnp.float32(fan_in))
        w = jax.random.uniform(kw, (fan_in, fan_out), jnp.float32, -bound, bound)
        b = jax.random.uniform(kb, (1, fan_out), jnp.float32, -bound, bound)
        params += [w, b]
    return params


def _device_kind():
    try:
        return jax.devices()[0].device_kind.lower()
    except Exception:
        return ""


def _default_act_dtype(matmul_dtype):
    if jnp.dtype(matmul_dtype) == jnp.dtype(jnp.float32):
        return jnp.float32
    # v5e has no bf16 VPU/EUP -> keep activation math in f32 there.
    if "v5" in _device_kind():
        return jnp.float32
    return jnp.bfloat16


def prepare_params(params, matmul_dtype=jnp.bfloat16, act_dtype=None):
    """One-time weight prep: zero-pad to lane-dense padded widths and cast.

    Weights -> matmul_dtype, hidden biases -> act_dtype, final bias -> f32.
    Call once and reuse the returned tuple across forward calls.
    """
    if act_dtype is None:
        act_dtype = _default_act_dtype(matmul_dtype)
    prepped = []
    for li in range(N_LAYERS):
        w = params[2 * li]
        b = params[2 * li + 1]
        in_p, out_p = PADDED[li], PADDED[li + 1]
        w = jnp.pad(w, ((0, in_p - w.shape[0]), (0, out_p - w.shape[1])))
        b = jnp.pad(b, ((0, 0), (0, out_p - b.shape[1])))
        b_dtype = jnp.float32 if li == N_LAYERS - 1 else act_dtype
        prepped.append(w.astype(matmul_dtype))
        prepped.append(b.astype(b_dtype))
    return tuple(jax.device_put(p) for p in prepped)


# --------------------------------------------------------------------------
# Tile selection & capability probing
# --------------------------------------------------------------------------
def _pick_tile_b(batch):
    kind = _device_kind()
    if "v5" in kind:
        base = 256          # 4x128 MXU consumes M in 128-row passes anyway
    elif "v6" in kind:
        base = 512          # fewer, fatter steps; VMEM headroom is ample
    else:
        base = 256          # v7x / unknown
    b8 = _round_up(batch, 8)
    tile = min(base, b8)
    # v7x has 2 TensorCores/chip: guarantee >= 2 grid steps so the
    # ("parallel",) batch axis actually shards across both cores.
    if "v7" in kind and b8 >= 16:
        tile = min(tile, _round_up(max(8, b8 // 2), 8))
    return max(8, tile)


_HAS_BUFFERED = None


def _buffered_supported():
    """One-time, compile-only probe for pl.Buffered(1) single-buffered specs."""
    global _HAS_BUFFERED
    if _HAS_BUFFERED is not None:
        return _HAS_BUFFERED
    if not hasattr(pl, "Buffered"):
        _HAS_BUFFERED = False
        return False
    try:
        def probe_kernel(w_ref, x_ref, o_ref):
            o_ref[...] = x_ref[...] + w_ref[...]

        probe = pl.pallas_call(
            probe_kernel,
            out_shape=jax.ShapeDtypeStruct((16, 128), jnp.float32),
            grid=(2,),
            in_specs=[
                pl.BlockSpec((8, 128), lambda i: (0, 0),
                             pipeline_mode=pl.Buffered(1)),
                pl.BlockSpec((8, 128), lambda i: (i, 0)),
            ],
            out_specs=pl.BlockSpec((8, 128), lambda i: (i, 0)),
        )
        jax.jit(probe).lower(
            jnp.zeros((8, 128), jnp.float32),
            jnp.zeros((16, 128), jnp.float32),
        ).compile()
        _HAS_BUFFERED = True
    except Exception:
        _HAS_BUFFERED = False
    return _HAS_BUFFERED


# --------------------------------------------------------------------------
# Forward builder (cached per shape/dtype configuration)
# --------------------------------------------------------------------------
@functools.lru_cache(maxsize=None)
def _get_forward(batch, tile_b, matmul_name, act_name, single_buffer):
    matmul_dtype = jnp.dtype(matmul_name)
    act_dtype = jnp.dtype(act_name)
    b_pad = _round_up(batch, tile_b)

    wkw = {"pipeline_mode": pl.Buffered(1)} if single_buffer else {}

    x_spec = pl.BlockSpec((tile_b, NUM_FEATURES), lambda i: (i, 0))
    out_spec = pl.BlockSpec((tile_b, PADDED[-1]), lambda i: (i, 0))

    param_specs = []
    for li in range(N_LAYERS):
        in_p, out_p = PADDED[li], PADDED[li + 1]
        # Grid-invariant weight/bias blocks (DMA'd once; single-buffered when
        # supported to save VMEM).
        param_specs.append(pl.BlockSpec((in_p, out_p), lambda i: (0, 0), **wkw))
        param_specs.append(pl.BlockSpec((1, out_p), lambda i: (0, 0), **wkw))

    kernel = functools.partial(mlp_kernel,
                               matmul_dtype=matmul_dtype,
                               act_dtype=act_dtype)

    pallas_fn = pl.pallas_call(
        kernel,
        out_shape=jax.ShapeDtypeStruct((b_pad, PADDED[-1]), jnp.float32),
        grid_spec=pltpu.PrefetchScalarGridSpec(
            num_scalar_prefetch=0,
            grid=(b_pad // tile_b,),
            in_specs=[x_spec] + param_specs,
            out_specs=out_spec,
        ),
        compiler_params=pltpu.CompilerParams(
            dimension_semantics=("parallel",),       # megacore / 2-TC sharding
            vmem_limit_bytes=32 * 1024 * 1024,
        ),
    )

    def fwd(x, *prepped):
        x = x.astype(matmul_dtype)
        if b_pad != batch:
            x = jnp.pad(x, ((0, b_pad - batch), (0, 0)))
        out = pallas_fn(x, *prepped)
        return out[:batch, :NUM_CLASSES]

    return jax.jit(fwd)


def mlp_forward(x, prepped, *, tile_b=None):
    """Run the fused MLP.  `prepped` is the tuple from prepare_params()."""
    batch, feat = x.shape
    assert feat == NUM_FEATURES, (feat, NUM_FEATURES)
    if tile_b is None:
        tile_b = _pick_tile_b(batch)
    tile_b = max(8, min(tile_b, _round_up(batch, 8)))
    matmul_name = jnp.dtype(prepped[0].dtype).name
    act_name = jnp.dtype(prepped[1].dtype).name
    fwd = _get_forward(batch, tile_b, matmul_name, act_name,
                       _buffered_supported())
    return fwd(x, *prepped)


# --------------------------------------------------------------------------
# Pure-JAX reference
# --------------------------------------------------------------------------
def mlp_reference(x, params):
    h = x
    acts = ["leaky", "relu", "relu", "relu", "relu", "none"]
    for i, act in enumerate(acts):
        w, b = params[2 * i], params[2 * i + 1]
        h = h @ w + b
        if act == "leaky":
            h = jnp.where(h > 0, h, LEAKY_SLOPE * h)
        elif act == "relu":
            h = jnp.maximum(h, 0.0)
    return h


# --------------------------------------------------------------------------
if __name__ == "__main__":
    key = jax.random.PRNGKey(0)
    key, kx1, kx2, kp = jax.random.split(key, 4)
    params = init_params(kp)

    x_small = jax.random.normal(kx1, (16, NUM_FEATURES), jnp.float32)
    x_big = jax.random.normal(kx2, (500, NUM_FEATURES), jnp.float32)

    # 1) f32-operand path: bit-near-exact check of kernel logic & padding.
    prepped_f32 = prepare_params(params, matmul_dtype=jnp.float32)
    out_small = jax.block_until_ready(mlp_forward(x_small, prepped_f32))
    ref_small = mlp_reference(x_small, params)
    assert out_small.shape == (16, NUM_CLASSES), out_small.shape
    assert jnp.allclose(out_small, ref_small, atol=2e-4, rtol=2e-4), \
        float(jnp.max(jnp.abs(out_small - ref_small)))

    # 2) Default bf16-operand path (f32 accumulation); tolerance reflects the
    #    expected bf16 operand quantization, not noise.
    prepped = prepare_params(params)                  # bf16 by default
    out_big = jax.block_until_ready(mlp_forward(x_big, prepped))
    ref_big = mlp_reference(x_big, params)
    assert out_big.shape == (500, NUM_CLASSES), out_big.shape
    assert jnp.allclose(out_big, ref_big, atol=5e-2, rtol=5e-2), \
        float(jnp.max(jnp.abs(out_big - ref_big)))

    # 3) Small batch on the bf16 path (exercises the cached-build path too).
    out_sb = jax.block_until_ready(mlp_forward(x_small, prepped))
    assert out_sb.shape == (16, NUM_CLASSES), out_sb.shape
    assert jnp.allclose(out_sb, ref_small, atol=5e-2, rtol=5e-2), \
        float(jnp.max(jnp.abs(out_sb - ref_small)))

    print("KERNEL_OK")
</pallas_src>

<mosaic_0001>
module attributes {stable_mosaic.version = 11 : i64} {
  func.func @mlp_kernel(%arg0: i32, %arg1: memref<16x16xf32, #tpu.memory_space<vmem>>, %arg2: memref<16x384xf32, #tpu.memory_space<vmem>>, %arg3: memref<1x384xf32, #tpu.memory_space<vmem>>, %arg4: memref<384x896xf32, #tpu.memory_space<vmem>>, %arg5: memref<1x896xf32, #tpu.memory_space<vmem>>, %arg6: memref<896x512xf32, #tpu.memory_space<vmem>>, %arg7: memref<1x512xf32, #tpu.memory_space<vmem>>, %arg8: memref<512x384xf32, #tpu.memory_space<vmem>>, %arg9: memref<1x384xf32, #tpu.memory_space<vmem>>, %arg10: memref<384x896xf32, #tpu.memory_space<vmem>>, %arg11: memref<1x896xf32, #tpu.memory_space<vmem>>, %arg12: memref<896x128xf32, #tpu.memory_space<vmem>>, %arg13: memref<1x128xf32, #tpu.memory_space<vmem>>, %arg14: memref<16x128xf32, #tpu.memory_space<vmem>>) attributes {dimension_semantics = [#tpu.dimension_semantics<parallel>], iteration_bounds = array<i64: 1>, scalar_prefetch = 0 : i64, scratch_operands = 0 : i64, tpu.core_type = #tpu.core_type<tc>, window_params = [{transform_indices = @transform_0, window_bounds = array<i64: 16, 16>}, {pipeline_mode = #tpu.pipeline_mode<synchronous>, transform_indices = @transform_1, window_bounds = array<i64: 16, 384>}, {pipeline_mode = #tpu.pipeline_mode<synchronous>, transform_indices = @transform_2, window_bounds = array<i64: 1, 384>}, {pipeline_mode = #tpu.pipeline_mode<synchronous>, transform_indices = @transform_3, window_bounds = array<i64: 384, 896>}, {pipeline_mode = #tpu.pipeline_mode<synchronous>, transform_indices = @transform_4, window_bounds = array<i64: 1, 896>}, {pipeline_mode = #tpu.pipeline_mode<synchronous>, transform_indices = @transform_5, window_bounds = array<i64: 896, 512>}, {pipeline_mode = #tpu.pipeline_mode<synchronous>, transform_indices = @transform_6, window_bounds = array<i64: 1, 512>}, {pipeline_mode = #tpu.pipeline_mode<synchronous>, transform_indices = @transform_7, window_bounds = array<i64: 512, 384>}, {pipeline_mode = #tpu.pipeline_mode<synchronous>, transform_indices = @transform_8, window_bounds = array<i64: 1, 384>}, {pipeline_mode = #tpu.pipeline_mode<synchronous>, transform_indices = @transform_9, window_bounds = array<i64: 384, 896>}, {pipeline_mode = #tpu.pipeline_mode<synchronous>, transform_indices = @transform_10, window_bounds = array<i64: 1, 896>}, {pipeline_mode = #tpu.pipeline_mode<synchronous>, transform_indices = @transform_11, window_bounds = array<i64: 896, 128>}, {pipeline_mode = #tpu.pipeline_mode<synchronous>, transform_indices = @transform_12, window_bounds = array<i64: 1, 128>}, {transform_indices = @transform_13, window_bounds = array<i64: 16, 128>}]} {
    %c0 = arith.constant 0 : index
    %c0_0 = arith.constant 0 : index
    %0 = vector.load %arg1[%c0, %c0_0] : memref<16x16xf32, #tpu.memory_space<vmem>>, vector<16x16xf32>
    %c0_1 = arith.constant 0 : index
    %c0_2 = arith.constant 0 : index
    %1 = vector.load %arg2[%c0_1, %c0_2] : memref<16x384xf32, #tpu.memory_space<vmem>>, vector<16x384xf32>
    %cst = arith.constant dense<0.000000e+00> : vector<16x384xf32>
    %2 = tpu.matmul %0, %1, %cst {dimension_numbers = #tpu.dot_dimension_numbers<[1], [0], [0], [1], [0, 0, 1, 1], [], []>} : vector<16x16xf32>, vector<16x384xf32>, vector<16x384xf32> -> vector<16x384xf32>
    %c0_3 = arith.constant 0 : index
    %c0_4 = arith.constant 0 : index
    %3 = vector.load %arg3[%c0_3, %c0_4] : memref<1x384xf32, #tpu.memory_space<vmem>>, vector<1x384xf32>
    %4 = vector.broadcast %3 : vector<1x384xf32> to vector<16x384xf32>
    %5 = arith.addf %2, %4 : vector<16x384xf32>
    %cst_5 = arith.constant 0.00999999977 : f32
    %6 = vector.broadcast %cst_5 : f32 to vector<16x384xf32>
    %7 = arith.mulf %6, %5 : vector<16x384xf32>
    %8 = arith.maximumf %5, %7 : vector<16x384xf32>
    %c0_6 = arith.constant 0 : index
    %c0_7 = arith.constant 0 : index
    %9 = vector.load %arg4[%c0_6, %c0_7] : memref<384x896xf32, #tpu.memory_space<vmem>>, vector<384x896xf32>
    %cst_8 = arith.constant dense<0.000000e+00> : vector<16x896xf32>
    %10 = tpu.matmul %8, %9, %cst_8 {dimension_numbers = #tpu.dot_dimension_numbers<[1], [0], [0], [1], [0, 0, 1, 1], [], []>} : vector<16x384xf32>, vector<384x896xf32>, vector<16x896xf32> -> vector<16x896xf32>
    %c0_9 = arith.constant 0 : index
    %c0_10 = arith.constant 0 : index
    %11 = vector.load %arg5[%c0_9, %c0_10] : memref<1x896xf32, #tpu.memory_space<vmem>>, vector<1x896xf32>
    %12 = vector.broadcast %11 : vector<1x896xf32> to vector<16x896xf32>
    %13 = arith.addf %10, %12 : vector<16x896xf32>
    %cst_11 = arith.constant 0.000000e+00 : f32
    %14 = vector.broadcast %cst_11 : f32 to vector<16x896xf32>
    %15 = arith.maximumf %13, %14 : vector<16x896xf32>
    %c0_12 = arith.constant 0 : index
    %c0_13 = arith.constant 0 : index
    %16 = vector.load %arg6[%c0_12, %c0_13] : memref<896x512xf32, #tpu.memory_space<vmem>>, vector<896x512xf32>
    %cst_14 = arith.constant dense<0.000000e+00> : vector<16x512xf32>
    %17 = tpu.matmul %15, %16, %cst_14 {dimension_numbers = #tpu.dot_dimension_numbers<[1], [0], [0], [1], [0, 0, 1, 1], [], []>} : vector<16x896xf32>, vector<896x512xf32>, vector<16x512xf32> -> vector<16x512xf32>
    %c0_15 = arith.constant 0 : index
    %c0_16 = arith.constant 0 : index
    %18 = vector.load %arg7[%c0_15, %c0_16] : memref<1x512xf32, #tpu.memory_space<vmem>>, vector<1x512xf32>
    %19 = vector.broadcast %18 : vector<1x512xf32> to vector<16x512xf32>
    %20 = arith.addf %17, %19 : vector<16x512xf32>
    %cst_17 = arith.constant 0.000000e+00 : f32
    %21 = vector.broadcast %cst_17 : f32 to vector<16x512xf32>
    %22 = arith.maximumf %20, %21 : vector<16x512xf32>
    %c0_18 = arith.constant 0 : index
    %c0_19 = arith.constant 0 : index
    %23 = vector.load %arg8[%c0_18, %c0_19] : memref<512x384xf32, #tpu.memory_space<vmem>>, vector<512x384xf32>
    %cst_20 = arith.constant dense<0.000000e+00> : vector<16x384xf32>
    %24 = tpu.matmul %22, %23, %cst_20 {dimension_numbers = #tpu.dot_dimension_numbers<[1], [0], [0], [1], [0, 0, 1, 1], [], []>} : vector<16x512xf32>, vector<512x384xf32>, vector<16x384xf32> -> vector<16x384xf32>
    %c0_21 = arith.constant 0 : index
    %c0_22 = arith.constant 0 : index
    %25 = vector.load %arg9[%c0_21, %c0_22] : memref<1x384xf32, #tpu.memory_space<vmem>>, vector<1x384xf32>
    %26 = vector.broadcast %25 : vector<1x384xf32> to vector<16x384xf32>
    %27 = arith.addf %24, %26 : vector<16x384xf32>
    %cst_23 = arith.constant 0.000000e+00 : f32
    %28 = vector.broadcast %cst_23 : f32 to vector<16x384xf32>
    %29 = arith.maximumf %27, %28 : vector<16x384xf32>
    %c0_24 = arith.constant 0 : index
    %c0_25 = arith.constant 0 : index
    %30 = vector.load %arg10[%c0_24, %c0_25] : memref<384x896xf32, #tpu.memory_space<vmem>>, vector<384x896xf32>
    %cst_26 = arith.constant dense<0.000000e+00> : vector<16x896xf32>
    %31 = tpu.matmul %29, %30, %cst_26 {dimension_numbers = #tpu.dot_dimension_numbers<[1], [0], [0], [1], [0, 0, 1, 1], [], []>} : vector<16x384xf32>, vector<384x896xf32>, vector<16x896xf32> -> vector<16x896xf32>
    %c0_27 = arith.constant 0 : index
    %c0_28 = arith.constant 0 : index
    %32 = vector.load %arg11[%c0_27, %c0_28] : memref<1x896xf32, #tpu.memory_space<vmem>>, vector<1x896xf32>
    %33 = vector.broadcast %32 : vector<1x896xf32> to vector<16x896xf32>
    %34 = arith.addf %31, %33 : vector<16x896xf32>
    %cst_29 = arith.constant 0.000000e+00 : f32
    %35 = vector.broadcast %cst_29 : f32 to vector<16x896xf32>
    %36 = arith.maximumf %34, %35 : vector<16x896xf32>
    %c0_30 = arith.constant 0 : index
    %c0_31 = arith.constant 0 : index
    %37 = vector.load %arg12[%c0_30, %c0_31] : memref<896x128xf32, #tpu.memory_space<vmem>>, vector<896x128xf32>
    %cst_32 = arith.constant dense<0.000000e+00> : vector<16x128xf32>
    %38 = tpu.matmul %36, %37, %cst_32 {dimension_numbers = #tpu.dot_dimension_numbers<[1], [0], [0], [1], [0, 0, 1, 1], [], []>} : vector<16x896xf32>, vector<896x128xf32>, vector<16x128xf32> -> vector<16x128xf32>
    %c0_33 = arith.constant 0 : index
    %c0_34 = arith.constant 0 : index
    %39 = vector.load %arg13[%c0_33, %c0_34] : memref<1x128xf32, #tpu.memory_space<vmem>>, vector<1x128xf32>
    %40 = vector.broadcast %39 : vector<1x128xf32> to vector<16x128xf32>
    %41 = arith.addf %38, %40 : vector<16x128xf32>
    %c0_35 = arith.constant 0 : index
    %c0_36 = arith.constant 0 : index
    %42 = vector.load %arg14[%c0_35, %c0_36] : memref<16x128xf32, #tpu.memory_space<vmem>>, vector<16x128xf32>
    tpu.vector_store %arg14[%c0_35, %c0_36], %41 {strides = array<i32>} : memref<16x128xf32, #tpu.memory_space<vmem>>, vector<16x128xf32>,
    return
  }
  func.func @transform_0(%arg0: i32) -> (i32, i32) {
    %c0_i32 = arith.constant 0 : i32
    %c0_i32_0 = arith.constant 0 : i32
    return %arg0, %c0_i32 : i32, i32
  }
  func.func @transform_1(%arg0: i32) -> (i32, i32) {
    %c0_i32 = arith.constant 0 : i32
    %c0_i32_0 = arith.constant 0 : i32
    %c0_i32_1 = arith.constant 0 : i32
    return %c0_i32, %c0_i32_0 : i32, i32
  }
  func.func @transform_2(%arg0: i32) -> (i32, i32) {
    %c0_i32 = arith.constant 0 : i32
    %c0_i32_0 = arith.constant 0 : i32
    %c0_i32_1 = arith.constant 0 : i32
    return %c0_i32, %c0_i32_0 : i32, i32
  }
  func.func @transform_3(%arg0: i32) -> (i32, i32) {
    %c0_i32 = arith.constant 0 : i32
    %c0_i32_0 = arith.constant 0 : i32
    %c0_i32_1 = arith.constant 0 : i32
    return %c0_i32, %c0_i32_0 : i32, i32
  }
  func.func @transform_4(%arg0: i32) -> (i32, i32) {
    %c0_i32 = arith.constant 0 : i32
    %c0_i32_0 = arith.constant 0 : i32
    %c0_i32_1 = arith.constant 0 : i32
    return %c0_i32, %c0_i32_0 : i32, i32
  }
  func.func @transform_5(%arg0: i32) -> (i32, i32) {
    %c0_i32 = arith.constant 0 : i32
    %c0_i32_0 = arith.constant 0 : i32
    %c0_i32_1 = arith.constant 0 : i32
    return %c0_i32, %c0_i32_0 : i32, i32
  }
  func.func @transform_6(%arg0: i32) -> (i32, i32) {
    %c0_i32 = arith.constant 0 : i32
    %c0_i32_0 = arith.constant 0 : i32
    %c0_i32_1 = arith.constant 0 : i32
    return %c0_i32, %c0_i32_0 : i32, i32
  }
  func.func @transform_7(%arg0: i32) -> (i32, i32) {
    %c0_i32 = arith.constant 0 : i32
    %c0_i32_0 = arith.constant 0 : i32
    %c0_i32_1 = arith.constant 0 : i32
    return %c0_i32, %c0_i32_0 : i32, i32
  }
  func.func @transform_8(%arg0: i32) -> (i32, i32) {
    %c0_i32 = arith.constant 0 : i32
    %c0_i32_0 = arith.constant 0 : i32
    %c0_i32_1 = arith.constant 0 : i32
    return %c0_i32, %c0_i32_0 : i32, i32
  }
  func.func @transform_9(%arg0: i32) -> (i32, i32) {
    %c0_i32 = arith.constant 0 : i32
    %c0_i32_0 = arith.constant 0 : i32
    %c0_i32_1 = arith.constant 0 : i32
    return %c0_i32, %c0_i32_0 : i32, i32
  }
  func.func @transform_10(%arg0: i32) -> (i32, i32) {
    %c0_i32 = arith.constant 0 : i32
    %c0_i32_0 = arith.constant 0 : i32
    %c0_i32_1 = arith.constant 0 : i32
    return %c0_i32, %c0_i32_0 : i32, i32
  }
  func.func @transform_11(%arg0: i32) -> (i32, i32) {
    %c0_i32 = arith.constant 0 : i32
    %c0_i32_0 = arith.constant 0 : i32
    %c0_i32_1 = arith.constant 0 : i32
    return %c0_i32, %c0_i32_0 : i32, i32
  }
  func.func @transform_12(%arg0: i32) -> (i32, i32) {
    %c0_i32 = arith.constant 0 : i32
    %c0_i32_0 = arith.constant 0 : i32
    %c0_i32_1 = arith.constant 0 : i32
    return %c0_i32, %c0_i32_0 : i32, i32
  }
  func.func @transform_13(%arg0: i32) -> (i32, i32) {
    %c0_i32 = arith.constant 0 : i32
    %c0_i32_0 = arith.constant 0 : i32
    return %arg0, %c0_i32 : i32, i32
  }
}

</mosaic_0001>

<llo_original>
// kernel: fwd.1
$region0: #{fwd.1}
  #allocation0 [shape = 'u32[]', space=smem, size = 0x4, offset = 0x4, fixed_abs, tag = 'smem constant byte address 0x4 - core index']
  #allocation1 [shape = 'u32[72,128]{1,0:T(1,128)}', space=vmem, size = 0x9000, scoped, tag = 'internal scratch']
  %s0 = inlined_call_operand.hbm [shape: f32[16,16], index: 0, kind: input, shape index: {}]
  %s1 = inlined_call_operand.hbm [shape: f32[16,384], index: 1, kind: input, shape index: {}]
  %s2 = inlined_call_operand.hbm [shape: f32[1,384], index: 2, kind: input, shape index: {}]
  %s3 = inlined_call_operand.hbm [shape: f32[384,896], index: 3, kind: input, shape index: {}]
  %s4 = inlined_call_operand.hbm [shape: f32[1,896], index: 4, kind: input, shape index: {}]
  %s5 = inlined_call_operand.hbm [shape: f32[896,512], index: 5, kind: input, shape index: {}]
  %s6 = inlined_call_operand.hbm [shape: f32[1,512], index: 6, kind: input, shape index: {}]
  %s7 = inlined_call_operand.hbm [shape: f32[512,384], index: 7, kind: input, shape index: {}]
  %s8 = inlined_call_operand.hbm [shape: f32[1,384], index: 8, kind: input, shape index: {}]
  %s9 = inlined_call_operand.hbm [shape: f32[384,896], index: 9, kind: input, shape index: {}]
  %s10 = inlined_call_operand.hbm [shape: f32[1,896], index: 10, kind: input, shape index: {}]
  %s11 = inlined_call_operand.hbm [shape: f32[896,128], index: 11, kind: input, shape index: {}]
  %s12 = inlined_call_operand.hbm [shape: f32[1,128], index: 12, kind: input, shape index: {}]
  %s13 = inlined_call_operand.vmem [shape: f32[16,128], index: 13, kind: output, shape index: {}]
  %s14 = sld [smem:[#allocation0]]
  $region114: #{fwd.1} parent=0
    _
  %s16 = ssub.s32 1, %s14
  %s17 = scalar_select 0, %s16, %s14
  $region1: #{fwd.1} parent=0
    #allocation2 [shape = 'u8[8192]{0}', space=vmem, size = 0x2000, scoped, tag = 'input window, operand 0, single buffered']
    #allocation3 [shape = 's32[1]{0}', space=sflag, size = 0x4, scoped, tag = 'scoped memory for fwd.1']
    #allocation4 [shape = 'u8[24576]{0}', space=vmem, size = 0x6000, scoped, tag = 'input window, operand 1, single buffered']
    #allocation5 [shape = 's32[1]{0}', space=sflag, size = 0x4, scoped, tag = 'scoped memory for fwd.1']
    #allocation6 [shape = 'u8[1536]{0}', space=vmem, size = 0x800, scoped, tag = 'input window, operand 2, single buffered']
    #allocation7 [shape = 'u8[1376256]{0}', space=vmem, size = 0x150000, scoped, tag = 'input window, operand 3, single buffered']
    #allocation8 [shape = 's32[1]{0}', space=sflag, size = 0x4, scoped, tag = 'scoped memory for fwd.1']
    #allocation9 [shape = 'u8[3584]{0}', space=vmem, size = 0x1000, scoped, tag = 'input window, operand 4, single buffered']
    #allocation10 [shape = 'u8[1835008]{0}', space=vmem, size = 0x1c0000, scoped, tag = 'input window, operand 5, single buffered']
    #allocation11 [shape = 's32[1]{0}', space=sflag, size = 0x4, scoped, tag = 'scoped memory for fwd.1']
    #allocation12 [shape = 'u8[2048]{0}', space=vmem, size = 0x800, scoped, tag = 'input window, operand 6, single buffered']
    #allocation13 [shape = 'u8[786432]{0}', space=vmem, size = 0xc0000, scoped, tag = 'input window, operand 7, single buffered']
    #allocation14 [shape = 's32[1]{0}', space=sflag, size = 0x4, scoped, tag = 'scoped memory for fwd.1']
    #allocation15 [shape = 'u8[1536]{0}', space=vmem, size = 0x800, scoped, tag = 'input window, operand 8, single buffered']
    #allocation16 [shape = 'u8[1376256]{0}', space=vmem, size = 0x150000, scoped, tag = 'input window, operand 9, single buffered']
    #allocation17 [shape = 's32[1]{0}', space=sflag, size = 0x4, scoped, tag = 'scoped memory for fwd.1']
    #allocation18 [shape = 'u8[3584]{0}', space=vmem, size = 0x1000, scoped, tag = 'input window, operand 10, single buffered']
    #allocation19 [shape = 'u8[458752]{0}', space=vmem, size = 0x70000, scoped, tag = 'input window, operand 11, single buffered']
    #allocation20 [shape = 's32[1]{0}', space=sflag, size = 0x4, scoped, tag = 'scoped memory for fwd.1']
    #allocation21 [shape = 'u8[512]{0}', space=vmem, size = 0x400, scoped, tag = 'input window, operand 12, single buffered']
    %18 = vsyncpa [#allocation3], 0
    %19 = vsyncpa [#allocation5], 0
    %20 = vsyncpa [#allocation8], 0
    %21 = vsyncpa [#allocation11], 0
    %22 = vsyncpa [#allocation14], 0
    %23 = vsyncpa [#allocation17], 0
    %24 = vsyncpa [#allocation20], 0
    // Predicated region
    $region2: #{fwd.1} parent=1 // pred_check
      _
    $region3: #{fwd.1} parent=1 // pred_check_branch
      %26 = sbr.rel (0) target = $region5
    $region4: #{fwd.1} parent=1 // pred_region
      %28 = vsyncadd [#allocation3], 0
      %s29 = sshll.u32 %s0, 4
      %s30 = int_to_ptr.hbm [resolvable:$true] %s29
      %s31 = sshll.u32 [#allocation2], 4
      %s32 = int_to_ptr.vmem [resolvable:$true] %s31
      %37 = dma.hbm_to_vmem [thread:$0]  %s30, 256, %s32, [#allocation3], 128, 128, 8
    $region5: #{fwd.1} parent=1 // pred_fallthru
      _
    // Predicated region
    $region6: #{fwd.1} parent=1 // pred_check
      _
    $region7: #{fwd.1} parent=1 // pred_check_branch
      %39 = sbr.rel (0) target = $region9
    $region8: #{fwd.1} parent=1 // pred_region
      %41 = vsyncadd [#allocation5], 0
      %s42 = sshll.u32 %s1, 4
      %s43 = int_to_ptr.hbm [resolvable:$true] %s42
      %s44 = sshll.u32 [#allocation4], 4
      %s45 = int_to_ptr.vmem [resolvable:$true] %s44
      %50 = dma.hbm_to_vmem [thread:$0]  %s43, 768, %s45, [#allocation5], 384, 384, 24
    $region9: #{fwd.1} parent=1 // pred_fallthru
      _
    // Predicated region
    $region10: #{fwd.1} parent=1 // pred_check
      _
    $region11: #{fwd.1} parent=1 // pred_check_branch
      %52 = sbr.rel (0) target = $region13
    $region12: #{fwd.1} parent=1 // pred_region
      %54 = vsyncadd [#allocation5], 0
      %s56 = sshll.u32 %s2, 4
      %s57 = int_to_ptr.hbm [resolvable:$true] %s56
      %s58 = sshll.u32 [#allocation6], 4
      %s59 = int_to_ptr.vmem [resolvable:$true] %s58
      %61 = dma.hbm_to_vmem [thread:$0]  %s57, 48, %s59, [#allocation5]
    $region13: #{fwd.1} parent=1 // pred_fallthru
      _
    // Predicated region
    $region14: #{fwd.1} parent=1 // pred_check
      _
    $region15: #{fwd.1} parent=1 // pred_check_branch
      %63 = sbr.rel (0) target = $region17
    $region16: #{fwd.1} parent=1 // pred_region
      %65 = vsyncadd [#allocation8], 0
      %s66 = sshll.u32 %s3, 4
      %s67 = int_to_ptr.hbm [resolvable:$true] %s66
      %s68 = sshll.u32 [#allocation7], 4
      %s69 = int_to_ptr.vmem [resolvable:$true] %s68
      %74 = dma.hbm_to_vmem [thread:$0]  %s67, 43008, %s69, [#allocation8], 896, 896, 56
    $region17: #{fwd.1} parent=1 // pred_fallthru
      _
    // Predicated region
    $region18: #{fwd.1} parent=1 // pred_check
      _
    $region19: #{fwd.1} parent=1 // pred_check_branch
      %76 = sbr.rel (0) target = $region21
    $region20: #{fwd.1} parent=1 // pred_region
      %78 = vsyncadd [#allocation8], 0
      %s80 = sshll.u32 %s4, 4
      %s81 = int_to_ptr.hbm [resolvable:$true] %s80
      %s82 = sshll.u32 [#allocation9], 4
      %s83 = int_to_ptr.vmem [resolvable:$true] %s82
      %85 = dma.hbm_to_vmem [thread:$0]  %s81, 112, %s83, [#allocation8]
    $region21: #{fwd.1} parent=1 // pred_fallthru
      _
    // Predicated region
    $region22: #{fwd.1} parent=1 // pred_check
      _
    $region23: #{fwd.1} parent=1 // pred_check_branch
      %87 = sbr.rel (0) target = $region25
    $region24: #{fwd.1} parent=1 // pred_region
      %89 = vsyncadd [#allocation11], 0
      %s90 = sshll.u32 %s5, 4
      %s91 = int_to_ptr.hbm [resolvable:$true] %s90
      %s92 = sshll.u32 [#allocation10], 4
      %s93 = int_to_ptr.vmem [resolvable:$true] %s92
      %98 = dma.hbm_to_vmem [thread:$0]  %s91, 57344, %s93, [#allocation11], 512, 512, 32
    $region25: #{fwd.1} parent=1 // pred_fallthru
      _
    // Predicated region
    $region26: #{fwd.1} parent=1 // pred_check
      _
    $region27: #{fwd.1} parent=1 // pred_check_branch
      %100 = sbr.rel (0) target = $region29
    $region28: #{fwd.1} parent=1 // pred_region
      %102 = vsyncadd [#allocation11], 0
      %s104 = sshll.u32 %s6, 4
      %s105 = int_to_ptr.hbm [resolvable:$true] %s104
      %s106 = sshll.u32 [#allocation12], 4
      %s107 = int_to_ptr.vmem [resolvable:$true] %s106
      %109 = dma.hbm_to_vmem [thread:$0]  %s105, 64, %s107, [#allocation11]
    $region29: #{fwd.1} parent=1 // pred_fallthru
      _
    // Predicated region
    $region30: #{fwd.1} parent=1 // pred_check
      _
    $region31: #{fwd.1} parent=1 // pred_check_branch
      %111 = sbr.rel (0) target = $region33
    $region32: #{fwd.1} parent=1 // pred_region
      %113 = vsyncadd [#allocation14], 0
      %s114 = sshll.u32 %s7, 4
      %s115 = int_to_ptr.hbm [resolvable:$true] %s114
      %s116 = sshll.u32 [#allocation13], 4
      %s117 = int_to_ptr.vmem [resolvable:$true] %s116
      %122 = dma.hbm_to_vmem [thread:$0]  %s115, 24576, %s117, [#allocation14], 384, 384, 24
    $region33: #{fwd.1} parent=1 // pred_fallthru
      _
    // Predicated region
    $region34: #{fwd.1} parent=1 // pred_check
      _
    $region35: #{fwd.1} parent=1 // pred_check_branch
      %124 = sbr.rel (0) target = $region37
    $region36: #{fwd.1} parent=1 // pred_region
      %126 = vsyncadd [#allocation14], 0
      %s128 = sshll.u32 %s8, 4
      %s129 = int_to_ptr.hbm [resolvable:$true] %s128
      %s130 = sshll.u32 [#allocation15], 4
      %s131 = int_to_ptr.vmem [resolvable:$true] %s130
      %133 = dma.hbm_to_vmem [thread:$0]  %s129, 48, %s131, [#allocation14]
    $region37: #{fwd.1} parent=1 // pred_fallthru
      _
    // Predicated region
    $region38: #{fwd.1} parent=1 // pred_check
      _
    $region39: #{fwd.1} parent=1 // pred_check_branch
      %135 = sbr.rel (0) target = $region41
    $region40: #{fwd.1} parent=1 // pred_region
      %137 = vsyncadd [#allocation17], 0
      %s138 = sshll.u32 %s9, 4
      %s139 = int_to_ptr.hbm [resolvable:$true] %s138
      %s140 = sshll.u32 [#allocation16], 4
      %s141 = int_to_ptr.vmem [resolvable:$true] %s140
      %146 = dma.hbm_to_vmem [thread:$0]  %s139, 43008, %s141, [#allocation17], 896, 896, 56
    $region41: #{fwd.1} parent=1 // pred_fallthru
      _
    // Predicated region
    $region42: #{fwd.1} parent=1 // pred_check
      _
    $region43: #{fwd.1} parent=1 // pred_check_branch
      %148 = sbr.rel (0) target = $region45
    $region44: #{fwd.1} parent=1 // pred_region
      %150 = vsyncadd [#allocation17], 0
      %s152 = sshll.u32 %s10, 4
      %s153 = int_to_ptr.hbm [resolvable:$true] %s152
      %s154 = sshll.u32 [#allocation18], 4
      %s155 = int_to_ptr.vmem [resolvable:$true] %s154
      %157 = dma.hbm_to_vmem [thread:$0]  %s153, 112, %s155, [#allocation17]
    $region45: #{fwd.1} parent=1 // pred_fallthru
      _
    // Predicated region
    $region46: #{fwd.1} parent=1 // pred_check
      _
    $region47: #{fwd.1} parent=1 // pred_check_branch
      %159 = sbr.rel (0) target = $region49
    $region48: #{fwd.1} parent=1 // pred_region
      %161 = vsyncadd [#allocation20], 0
      %s162 = sshll.u32 %s11, 4
      %s163 = int_to_ptr.hbm [resolvable:$true] %s162
      %s164 = sshll.u32 [#allocation19], 4
      %s165 = int_to_ptr.vmem [resolvable:$true] %s164
      %170 = dma.hbm_to_vmem [thread:$0]  %s163, 14336, %s165, [#allocation20], 128, 128, 8
    $region49: #{fwd.1} parent=1 // pred_fallthru
      _
    // Predicated region
    $region50: #{fwd.1} parent=1 // pred_check
      _
    $region51: #{fwd.1} parent=1 // pred_check_branch
      %172 = sbr.rel (0) target = $region53
    $region52: #{fwd.1} parent=1 // pred_region
      %174 = vsyncadd [#allocation20], 0
      %s176 = sshll.u32 %s12, 4
      %s177 = int_to_ptr.hbm [resolvable:$true] %s176
      %s178 = sshll.u32 [#allocation21], 4
      %s179 = int_to_ptr.vmem [resolvable:$true] %s178
      %181 = dma.hbm_to_vmem [thread:$0]  %s177, 16, %s179, [#allocation20]
    $region53: #{fwd.1} parent=1 // pred_fallthru
      _
    // Predicated region
    $region54: #{fwd.1} parent=1 // pred_check
      _
    $region55: #{fwd.1} parent=1 // pred_check_branch
      %183 = sbr.rel (0) target = $region57
    $region56: #{fwd.1} parent=1 // pred_region
      %185 = dma.done [#allocation3], 256
    $region57: #{fwd.1} parent=1 // pred_fallthru
      _
    // Predicated region
    $region58: #{fwd.1} parent=1 // pred_check
      _
    $region59: #{fwd.1} parent=1 // pred_check_branch
      %187 = sbr.rel (0) target = $region61
    $region60: #{fwd.1} parent=1 // pred_region
      %189 = dma.done [#allocation5], 768
    $region61: #{fwd.1} parent=1 // pred_fallthru
      _
    // Predicated region
    $region62: #{fwd.1} parent=1 // pred_check
      _
    $region63: #{fwd.1} parent=1 // pred_check_branch
      %191 = sbr.rel (0) target = $region65
    $region64: #{fwd.1} parent=1 // pred_region
      %193 = dma.done [#allocation5], 48
    $region65: #{fwd.1} parent=1 // pred_fallthru
      _
    // Predicated region
    $region66: #{fwd.1} parent=1 // pred_check
      _
    $region67: #{fwd.1} parent=1 // pred_check_branch
      %195 = sbr.rel (0) target = $region69
    $region68: #{fwd.1} parent=1 // pred_region
      %197 = dma.done [#allocation8], 43008
    $region69: #{fwd.1} parent=1 // pred_fallthru
      _
    // Predicated region
    $region70: #{fwd.1} parent=1 // pred_check
      _
    $region71: #{fwd.1} parent=1 // pred_check_branch
      %199 = sbr.rel (0) target = $region73
    $region72: #{fwd.1} parent=1 // pred_region
      %201 = dma.done [#allocation8], 112
    $region73: #{fwd.1} parent=1 // pred_fallthru
      _
    // Predicated region
    $region74: #{fwd.1} parent=1 // pred_check
      _
    $region75: #{fwd.1} parent=1 // pred_check_branch
      %203 = sbr.rel (0) target = $region77
    $region76: #{fwd.1} parent=1 // pred_region
      %205 = dma.done [#allocation11], 57344
    $region77: #{fwd.1} parent=1 // pred_fallthru
      _
    // Predicated region
    $region78: #{fwd.1} parent=1 // pred_check
      _
    $region79: #{fwd.1} parent=1 // pred_check_branch
      %207 = sbr.rel (0) target = $region81
    $region80: #{fwd.1} parent=1 // pred_region
      %209 = dma.done [#allocation11], 64
    $region81: #{fwd.1} parent=1 // pred_fallthru
      _
    // Predicated region
    $region82: #{fwd.1} parent=1 // pred_check
      _
    $region83: #{fwd.1} parent=1 // pred_check_branch
      %211 = sbr.rel (0) target = $region85
    $region84: #{fwd.1} parent=1 // pred_region
      %213 = dma.done [#allocation14], 24576
    $region85: #{fwd.1} parent=1 // pred_fallthru
      _
    // Predicated region
    $region86: #{fwd.1} parent=1 // pred_check
      _
    $region87: #{fwd.1} parent=1 // pred_check_branch
      %215 = sbr.rel (0) target = $region89
    $region88: #{fwd.1} parent=1 // pred_region
      %217 = dma.done [#allocation14], 48
    $region89: #{fwd.1} parent=1 // pred_fallthru
      _
    // Predicated region
    $region90: #{fwd.1} parent=1 // pred_check
      _
    $region91: #{fwd.1} parent=1 // pred_check_branch
      %219 = sbr.rel (0) target = $region93
    $region92: #{fwd.1} parent=1 // pred_region
      %221 = dma.done [#allocation17], 43008
    $region93: #{fwd.1} parent=1 // pred_fallthru
      _
    // Predicated region
    $region94: #{fwd.1} parent=1 // pred_check
      _
    $region95: #{fwd.1} parent=1 // pred_check_branch
      %223 = sbr.rel (0) target = $region97
    $region96: #{fwd.1} parent=1 // pred_region
      %225 = dma.done [#allocation17], 112
    $region97: #{fwd.1} parent=1 // pred_fallthru
      _
    // Predicated region
    $region98: #{fwd.1} parent=1 // pred_check
      _
    $region99: #{fwd.1} parent=1 // pred_check_branch
      %227 = sbr.rel (0) target = $region101
    $region100: #{fwd.1} parent=1 // pred_region
      %229 = dma.done [#allocation20], 14336
    $region101: #{fwd.1} parent=1 // pred_fallthru
      _
    // Predicated region
    $region102: #{fwd.1} parent=1 // pred_check
      _
    $region103: #{fwd.1} parent=1 // pred_check_branch
      %231 = sbr.rel (0) target = $region105
    $region104: #{fwd.1} parent=1 // pred_region
      %233 = dma.done [#allocation20], 16
    $region105: #{fwd.1} parent=1 // pred_fallthru
      _
    %v234 = vld [vmem:[#allocation2] sm:$0xff]
    %v235 = vld [vmem:[#allocation2 + $0x8] sm:$0xff]
    %v236 = vld [vmem:[#allocation4] sm:$0xff]
    %v237 = vld [vmem:[#allocation4 + $0x8] sm:$0xff]
    %v238 = vld [vmem:[#allocation4 + $0x10] sm:$0xff]
    %v239 = vld [vmem:[#allocation4 + $0x18] sm:$0xff]
    %v240 = vld [vmem:[#allocation4 + $0x20] sm:$0xff]
    %v241 = vld [vmem:[#allocation4 + $0x28] sm:$0xff]
    %v242 = vld [vmem:[#allocation6] sm:$0x7]
    %v244 = vperm.slane %v242, 0
    %v245 = vperm.slane %v242, 1
    %v246 = vperm.slane %v242, 2
    %vm250 = vcmask 130048
    %v252 = vsel %vm250, %v234, 0
    %v255 = vsel %vm250, %v235, 0
    %257 = vmatpush.msra.mxu0 0.0
    %258 = vmatpush.msra.mxu0 0.0
    %259 = vmatpush.msra.mxu0 0.0
    %260 = vmatpush.msra.mxu0 0.0
    %261 = vmatpush.msra.mxu0 0.0
    %262 = vmatpush.msra.mxu0 0.0
    %263 = vmatpush.msra.mxu0 0.0
    %264 = vmatpush.msra.mxu0 0.0
    %265 = vmatpush.msra.mxu0 0.0
    %266 = vmatpush.msra.mxu0 0.0
    %267 = vmatpush.msra.mxu0 0.0
    %268 = vmatpush.msra.mxu0 0.0
    %269 = vmatpush.msra.mxu0 0.0
    %270 = vmatpush.msra.mxu0 0.0
    %271 = vmatpush.msra.mxu0 %v239
    %272 = vmatpush.msra.mxu0 %v236
    %273 = vmatmul.f32.gmra.mxu0 %v252
    %v274 = vpop.f32.mrf.mxu0
    %v275 = vadd.f32 %v244, %v274
    %276 = vmatmul.f32.gmra.mxu0 %v255
    %v277 = vpop.f32.mrf.mxu0
    %v278 = vadd.f32 %v244, %v277
    %279 = vdwg.mxu0
    %280 = vmatpush.msra.mxu0 0.0
    %281 = vmatpush.msra.mxu0 0.0
    %282 = vmatpush.msra.mxu0 0.0
    %283 = vmatpush.msra.mxu0 0.0
    %284 = vmatpush.msra.mxu0 0.0
    %285 = vmatpush.msra.mxu0 0.0
    %286 = vmatpush.msra.mxu0 0.0
    %287 = vmatpush.msra.mxu0 0.0
    %288 = vmatpush.msra.mxu0 0.0
    %289 = vmatpush.msra.mxu0 0.0
    %290 = vmatpush.msra.mxu0 0.0
    %291 = vmatpush.msra.mxu0 0.0
    %292 = vmatpush.msra.mxu0 0.0
    %293 = vmatpush.msra.mxu0 0.0
    %294 = vmatpush.msra.mxu0 %v240
    %295 = vmatpush.msra.mxu0 %v237
    %296 = vmatmul.f32.gmra.mxu0 %v252
    %v297 = vpop.f32.mrf.mxu0
    %v298 = vadd.f32 %v245, %v297
    %299 = vmatmul.f32.gmra.mxu0 %v255
    %v300 = vpop.f32.mrf.mxu0
    %v301 = vadd.f32 %v245, %v300
    %302 = vdwg.mxu0
    %303 = vmatpush.msra.mxu0 0.0
    %304 = vmatpush.msra.mxu0 0.0
    %305 = vmatpush.msra.mxu0 0.0
    %306 = vmatpush.msra.mxu0 0.0
    %307 = vmatpush.msra.mxu0 0.0
    %308 = vmatpush.msra.mxu0 0.0
    %309 = vmatpush.msra.mxu0 0.0
    %310 = vmatpush.msra.mxu0 0.0
    %311 = vmatpush.msra.mxu0 0.0
    %312 = vmatpush.msra.mxu0 0.0
    %313 = vmatpush.msra.mxu0 0.0
    %314 = vmatpush.msra.mxu0 0.0
    %315 = vmatpush.msra.mxu0 0.0
    %316 = vmatpush.msra.mxu0 0.0
    %317 = vmatpush.msra.mxu0 %v241
    %318 = vmatpush.msra.mxu0 %v238
    %319 = vmatmul.f32.gmra.mxu0 %v252
    %v320 = vpop.f32.mrf.mxu0
    %v321 = vadd.f32 %v246, %v320
    %322 = vmatmul.f32.gmra.mxu0 %v255
    %v323 = vpop.f32.mrf.mxu0
    %v324 = vadd.f32 %v246, %v323
    %325 = vdwg.mxu0
    %v326 = vmul.f32 %v275, 0.01
    %v327 = vmul.f32 %v298, 0.01
    %v328 = vmul.f32 %v321, 0.01
    %v329 = vmul.f32 %v278, 0.01
    %v330 = vmul.f32 %v301, 0.01
    %v331 = vmul.f32 %v324, 0.01
    %v332 = vmax.f32 %v275, %v326
    %v333 = vmax.f32 %v298, %v327
    %v334 = vmax.f32 %v321, %v328
    %v335 = vmax.f32 %v278, %v329
    %v336 = vmax.f32 %v301, %v330
    %v337 = vmax.f32 %v324, %v331
    %v338 = vld [vmem:[#allocation7] sm:$0xff]
    %v339 = vld [vmem:[#allocation7 + $0x8] sm:$0xff]
    %v340 = vld [vmem:[#allocation7 + $0x10] sm:$0xff]
    %v341 = vld [vmem:[#allocation7 + $0x18] sm:$0xff]
    %v342 = vld [vmem:[#allocation7 + $0x20] sm:$0xff]
    %v343 = vld [vmem:[#allocation7 + $0x28] sm:$0xff]
    %v344 = vld [vmem:[#allocation7 + $0x30] sm:$0xff]
    %v345 = vld [vmem:[#allocation7 + $0x38] sm:$0xff]
    %v346 = vld [vmem:[#allocation7 + $0x40] sm:$0xff]
    %v347 = vld [vmem:[#allocation7 + $0x48] sm:$0xff]
    %v348 = vld [vmem:[#allocation7 + $0x50] sm:$0xff]
    %v349 = vld [vmem:[#allocation7 + $0x58] sm:$0xff]
    %v350 = vld [vmem:[#allocation7 + $0x60] sm:$0xff]
    %v351 = vld [vmem:[#allocation7 + $0x68] sm:$0xff]
    %v352 = vld [vmem:[#allocation7 + $0x70] sm:$0xff]
    %v353 = vld [vmem:[#allocation7 + $0x78] sm:$0xff]
    %v354 = vld [vmem:[#allocation7 + $0x80] sm:$0xff]
    %v355 = vld [vmem:[#allocation7 + $0x88] sm:$0xff]
    %v356 = vld [vmem:[#allocation7 + $0x90] sm:$0xff]
    %v357 = vld [vmem:[#allocation7 + $0x98] sm:$0xff]
    %v358 = vld [vmem:[#allocation7 + $0xa0] sm:$0xff]
    %v359 = vld [vmem:[#allocation7 + $0xa8] sm:$0xff]
    %v360 = vld [vmem:[#allocation7 + $0xb0] sm:$0xff]
    %v361 = vld [vmem:[#allocation7 + $0xb8] sm:$0xff]
    %v362 = vld [vmem:[#allocation7 + $0xc0] sm:$0xff]
    %v363 = vld [vmem:[#allocation7 + $0xc8] sm:$0xff]
    %v364 = vld [vmem:[#allocation7 + $0xd0] sm:$0xff]
    %v365 = vld [vmem:[#allocation7 + $0xd8] sm:$0xff]
    %v366 = vld [vmem:[#allocation7 + $0xe0] sm:$0xff]
    %v367 = vld [vmem:[#allocation7 + $0xe8] sm:$0xff]
    %v368 = vld [vmem:[#allocation7 + $0xf0] sm:$0xff]
    %v369 = vld [vmem:[#allocation7 + $0xf8] sm:$0xff]
    %v370 = vld [vmem:[#allocation7 + $0x100] sm:$0xff]
    %v371 = vld [vmem:[#allocation7 + $0x108] sm:$0xff]
    %v372 = vld [vmem:[#allocation7 + $0x110] sm:$0xff]
    %v373 = vld [vmem:[#allocation7 + $0x118] sm:$0xff]
    %v374 = vld [vmem:[#allocation7 + $0x120] sm:$0xff]
    %v375 = vld [vmem:[#allocation7 + $0x128] sm:$0xff]
    %v376 = vld [vmem:[#allocation7 + $0x130] sm:$0xff]
    %v377 = vld [vmem:[#allocation7 + $0x138] sm:$0xff]
    %v378 = vld [vmem:[#allocation7 + $0x140] sm:$0xff]
    %v379 = vld [vmem:[#allocation7 + $0x148] sm:$0xff]
    %v380 = vld [vmem:[#allocation7 + $0x150] sm:$0xff]
    %v381 = vld [vmem:[#allocation7 + $0x158] sm:$0xff]
    %v382 = vld [vmem:[#allocation7 + $0x160] sm:$0xff]
    %v383 = vld [vmem:[#allocation7 + $0x168] sm:$0xff]
    %v384 = vld [vmem:[#allocation7 + $0x170] sm:$0xff]
    %v385 = vld [vmem:[#allocation7 + $0x178] sm:$0xff]
    %v386 = vld [vmem:[#allocation7 + $0x180] sm:$0xff]
    %v387 = vld [vmem:[#allocation7 + $0x188] sm:$0xff]
    %v388 = vld [vmem:[#allocation7 + $0x190] sm:$0xff]
    %v389 = vld [vmem:[#allocation7 + $0x198] sm:$0xff]
    %v390 = vld [vmem:[#allocation7 + $0x1a0] sm:$0xff]
    %v391 = vld [vmem:[#allocation7 + $0x1a8] sm:$0xff]
    %v392 = vld [vmem:[#allocation7 + $0x1b0] sm:$0xff]
    %v393 = vld [vmem:[#allocation7 + $0x1b8] sm:$0xff]
    %v394 = vld [vmem:[#allocation7 + $0x1c0] sm:$0xff]
    %v395 = vld [vmem:[#allocation7 + $0x1c8] sm:$0xff]
    %v396 = vld [vmem:[#allocation7 + $0x1d0] sm:$0xff]
    %v397 = vld [vmem:[#allocation7 + $0x1d8] sm:$0xff]
    %v398 = vld [vmem:[#allocation7 + $0x1e0] sm:$0xff]
    %v399 = vld [vmem:[#allocation7 + $0x1e8] sm:$0xff]
    %v400 = vld [vmem:[#allocation7 + $0x1f0] sm:$0xff]
    %v401 = vld [vmem:[#allocation7 + $0x1f8] sm:$0xff]
    %v402 = vld [vmem:[#allocation7 + $0x200] sm:$0xff]
    %v403 = vld [vmem:[#allocation7 + $0x208] sm:$0xff]
    %v404 = vld [vmem:[#allocation7 + $0x210] sm:$0xff]
    %v405 = vld [vmem:[#allocation7 + $0x218] sm:$0xff]
    %v406 = vld [vmem:[#allocation7 + $0x220] sm:$0xff]
    %v407 = vld [vmem:[#allocation7 + $0x228] sm:$0xff]
    %v408 = vld [vmem:[#allocation7 + $0x230] sm:$0xff]
    %v409 = vld [vmem:[#allocation7 + $0x238] sm:$0xff]
    %v410 = vld [vmem:[#allocation7 + $0x240] sm:$0xff]
    %v411 = vld [vmem:[#allocation7 + $0x248] sm:$0xff]
    %v412 = vld [vmem:[#allocation7 + $0x250] sm:$0xff]
    %v413 = vld [vmem:[#allocation7 + $0x258] sm:$0xff]
    %v414 = vld [vmem:[#allocation7 + $0x260] sm:$0xff]
    %v415 = vld [vmem:[#allocation7 + $0x268] sm:$0xff]
    %v416 = vld [vmem:[#allocation7 + $0x270] sm:$0xff]
    %v417 = vld [vmem:[#allocation7 + $0x278] sm:$0xff]
    %v418 = vld [vmem:[#allocation7 + $0x280] sm:$0xff]
    %v419 = vld [vmem:[#allocation7 + $0x288] sm:$0xff]
    %v420 = vld [vmem:[#allocation7 + $0x290] sm:$0xff]
    %v421 = vld [vmem:[#allocation7 + $0x298] sm:$0xff]
    %v422 = vld [vmem:[#allocation7 + $0x2a0] sm:$0xff]
    %v423 = vld [vmem:[#allocation7 + $0x2a8] sm:$0xff]
    %v424 = vld [vmem:[#allocation7 + $0x2b0] sm:$0xff]
    %v425 = vld [vmem:[#allocation7 + $0x2b8] sm:$0xff]
    %v426 = vld [vmem:[#allocation7 + $0x2c0] sm:$0xff]
    %v427 = vld [vmem:[#allocation7 + $0x2c8] sm:$0xff]
    %v428 = vld [vmem:[#allocation7 + $0x2d0] sm:$0xff]
    %v429 = vld [vmem:[#allocation7 + $0x2d8] sm:$0xff]
    %v430 = vld [vmem:[#allocation7 + $0x2e0] sm:$0xff]
    %v431 = vld [vmem:[#allocation7 + $0x2e8] sm:$0xff]
    %v432 = vld [vmem:[#allocation7 + $0x2f0] sm:$0xff]
    %v433 = vld [vmem:[#allocation7 + $0x2f8] sm:$0xff]
    %v434 = vld [vmem:[#allocation7 + $0x300] sm:$0xff]
    %v435 = vld [vmem:[#allocation7 + $0x308] sm:$0xff]
    %v436 = vld [vmem:[#allocation7 + $0x310] sm:$0xff]
    %v437 = vld [vmem:[#allocation7 + $0x318] sm:$0xff]
    %v438 = vld [vmem:[#allocation7 + $0x320] sm:$0xff]
    %v439 = vld [vmem:[#allocation7 + $0x328] sm:$0xff]
    %v440 = vld [vmem:[#allocation7 + $0x330] sm:$0xff]
    %v441 = vld [vmem:[#allocation7 + $0x338] sm:$0xff]
    %v442 = vld [vmem:[#allocation7 + $0x340] sm:$0xff]
    %v443 = vld [vmem:[#allocation7 + $0x348] sm:$0xff]
    %v444 = vld [vmem:[#allocation7 + $0x350] sm:$0xff]
    %v445 = vld [vmem:[#allocation7 + $0x358] sm:$0xff]
    %v446 = vld [vmem:[#allocation7 + $0x360] sm:$0xff]
    %v447 = vld [vmem:[#allocation7 + $0x368] sm:$0xff]
    %v448 = vld [vmem:[#allocation7 + $0x370] sm:$0xff]
    %v449 = vld [vmem:[#allocation7 + $0x378] sm:$0xff]
    %v450 = vld [vmem:[#allocation7 + $0x380] sm:$0xff]
    %v451 = vld [vmem:[#allocation7 + $0x388] sm:$0xff]
    %v452 = vld [vmem:[#allocation7 + $0x390] sm:$0xff]
    %v453 = vld [vmem:[#allocation7 + $0x398] sm:$0xff]
    %v454 = vld [vmem:[#allocation7 + $0x3a0] sm:$0xff]
    %v455 = vld [vmem:[#allocation7 + $0x3a8] sm:$0xff]
    %v456 = vld [vmem:[#allocation7 + $0x3b0] sm:$0xff]
    %v457 = vld [vmem:[#allocation7 + $0x3b8] sm:$0xff]
    %v458 = vld [vmem:[#allocation7 + $0x3c0] sm:$0xff]
    %v459 = vld [vmem:[#allocation7 + $0x3c8] sm:$0xff]
    %v460 = vld [vmem:[#allocation7 + $0x3d0] sm:$0xff]
    %v461 = vld [vmem:[#allocation7 + $0x3d8] sm:$0xff]
    %v462 = vld [vmem:[#allocation7 + $0x3e0] sm:$0xff]
    %v463 = vld [vmem:[#allocation7 + $0x3e8] sm:$0xff]
    %v464 = vld [vmem:[#allocation7 + $0x3f0] sm:$0xff]
    %v465 = vld [vmem:[#allocation7 + $0x3f8] sm:$0xff]
    %v466 = vld [vmem:[#allocation7 + $0x400] sm:$0xff]
    %v467 = vld [vmem:[#allocation7 + $0x408] sm:$0xff]
    %v468 = vld [vmem:[#allocation7 + $0x410] sm:$0xff]
    %v469 = vld [vmem:[#allocation7 + $0x418] sm:$0xff]
    %v470 = vld [vmem:[#allocation7 + $0x420] sm:$0xff]
    %v471 = vld [vmem:[#allocation7 + $0x428] sm:$0xff]
    %v472 = vld [vmem:[#allocation7 + $0x430] sm:$0xff]
    %v473 = vld [vmem:[#allocation7 + $0x438] sm:$0xff]
    %v474 = vld [vmem:[#allocation7 + $0x440] sm:$0xff]
    %v475 = vld [vmem:[#allocation7 + $0x448] sm:$0xff]
    %v476 = vld [vmem:[#allocation7 + $0x450] sm:$0xff]
    %v477 = vld [vmem:[#allocation7 + $0x458] sm:$0xff]
    %v478 = vld [vmem:[#allocation7 + $0x460] sm:$0xff]
    %v479 = vld [vmem:[#allocation7 + $0x468] sm:$0xff]
    %v480 = vld [vmem:[#allocation7 + $0x470] sm:$0xff]
    %v481 = vld [vmem:[#allocation7 + $0x478] sm:$0xff]
    %v482 = vld [vmem:[#allocation7 + $0x480] sm:$0xff]
    %v483 = vld [vmem:[#allocation7 + $0x488] sm:$0xff]
    %v484 = vld [vmem:[#allocation7 + $0x490] sm:$0xff]
    %v485 = vld [vmem:[#allocation7 + $0x498] sm:$0xff]
    %v486 = vld [vmem:[#allocation7 + $0x4a0] sm:$0xff]
    %v487 = vld [vmem:[#allocation7 + $0x4a8] sm:$0xff]
    %v488 = vld [vmem:[#allocation7 + $0x4b0] sm:$0xff]
    %v489 = vld [vmem:[#allocation7 + $0x4b8] sm:$0xff]
    %v490 = vld [vmem:[#allocation7 + $0x4c0] sm:$0xff]
    %v491 = vld [vmem:[#allocation7 + $0x4c8] sm:$0xff]
    %v492 = vld [vmem:[#allocation7 + $0x4d0] sm:$0xff]
    %v493 = vld [vmem:[#allocation7 + $0x4d8] sm:$0xff]
    %v494 = vld [vmem:[#allocation7 + $0x4e0] sm:$0xff]
    %v495 = vld [vmem:[#allocation7 + $0x4e8] sm:$0xff]
    %v496 = vld [vmem:[#allocation7 + $0x4f0] sm:$0xff]
    %v497 = vld [vmem:[#allocation7 + $0x4f8] sm:$0xff]
    %v498 = vld [vmem:[#allocation7 + $0x500] sm:$0xff]
    %v499 = vld [vmem:[#allocation7 + $0x508] sm:$0xff]
    %v500 = vld [vmem:[#allocation7 + $0x510] sm:$0xff]
    %v501 = vld [vmem:[#allocation7 + $0x518] sm:$0xff]
    %v502 = vld [vmem:[#allocation7 + $0x520] sm:$0xff]
    %v503 = vld [vmem:[#allocation7 + $0x528] sm:$0xff]
    %v504 = vld [vmem:[#allocation7 + $0x530] sm:$0xff]
    %v505 = vld [vmem:[#allocation7 + $0x538] sm:$0xff]
    %v506 = vld [vmem:[#allocation7 + $0x540] sm:$0xff]
    %v507 = vld [vmem:[#allocation7 + $0x548] sm:$0xff]
    %v508 = vld [vmem:[#allocation7 + $0x550] sm:$0xff]
    %v509 = vld [vmem:[#allocation7 + $0x558] sm:$0xff]
    %v510 = vld [vmem:[#allocation7 + $0x560] sm:$0xff]
    %v511 = vld [vmem:[#allocation7 + $0x568] sm:$0xff]
    %v512 = vld [vmem:[#allocation7 + $0x570] sm:$0xff]
    %v513 = vld [vmem:[#allocation7 + $0x578] sm:$0xff]
    %v514 = vld [vmem:[#allocation7 + $0x580] sm:$0xff]
    %v515 = vld [vmem:[#allocation7 + $0x588] sm:$0xff]
    %v516 = vld [vmem:[#allocation7 + $0x590] sm:$0xff]
    %v517 = vld [vmem:[#allocation7 + $0x598] sm:$0xff]
    %v518 = vld [vmem:[#allocation7 + $0x5a0] sm:$0xff]
    %v519 = vld [vmem:[#allocation7 + $0x5a8] sm:$0xff]
    %v520 = vld [vmem:[#allocation7 + $0x5b0] sm:$0xff]
    %v521 = vld [vmem:[#allocation7 + $0x5b8] sm:$0xff]
    %v522 = vld [vmem:[#allocation7 + $0x5c0] sm:$0xff]
    %v523 = vld [vmem:[#allocation7 + $0x5c8] sm:$0xff]
    %v524 = vld [vmem:[#allocation7 + $0x5d0] sm:$0xff]
    %v525 = vld [vmem:[#allocation7 + $0x5d8] sm:$0xff]
    %v526 = vld [vmem:[#allocation7 + $0x5e0] sm:$0xff]
    %v527 = vld [vmem:[#allocation7 + $0x5e8] sm:$0xff]
    %v528 = vld [vmem:[#allocation7 + $0x5f0] sm:$0xff]
    %v529 = vld [vmem:[#allocation7 + $0x5f8] sm:$0xff]
    %v530 = vld [vmem:[#allocation7 + $0x600] sm:$0xff]
    %v531 = vld [vmem:[#allocation7 + $0x608] sm:$0xff]
    %v532 = vld [vmem:[#allocation7 + $0x610] sm:$0xff]
    %v533 = vld [vmem:[#allocation7 + $0x618] sm:$0xff]
    %v534 = vld [vmem:[#allocation7 + $0x620] sm:$0xff]
    %v535 = vld [vmem:[#allocation7 + $0x628] sm:$0xff]
    %v536 = vld [vmem:[#allocation7 + $0x630] sm:$0xff]
    %v537 = vld [vmem:[#allocation7 + $0x638] sm:$0xff]
    %v538 = vld [vmem:[#allocation7 + $0x640] sm:$0xff]
    %v539 = vld [vmem:[#allocation7 + $0x648] sm:$0xff]
    %v540 = vld [vmem:[#allocation7 + $0x650] sm:$0xff]
    %v541 = vld [vmem:[#allocation7 + $0x658] sm:$0xff]
    %v542 = vld [vmem:[#allocation7 + $0x660] sm:$0xff]
    %v543 = vld [vmem:[#allocation7 + $0x668] sm:$0xff]
    %v544 = vld [vmem:[#allocation7 + $0x670] sm:$0xff]
    %v545 = vld [vmem:[#allocation7 + $0x678] sm:$0xff]
    %v546 = vld [vmem:[#allocation7 + $0x680] sm:$0xff]
    %v547 = vld [vmem:[#allocation7 + $0x688] sm:$0xff]
    %v548 = vld [vmem:[#allocation7 + $0x690] sm:$0xff]
    %v549 = vld [vmem:[#allocation7 + $0x698] sm:$0xff]
    %v550 = vld [vmem:[#allocation7 + $0x6a0] sm:$0xff]
    %v551 = vld [vmem:[#allocation7 + $0x6a8] sm:$0xff]
    %v552 = vld [vmem:[#allocation7 + $0x6b0] sm:$0xff]
    %v553 = vld [vmem:[#allocation7 + $0x6b8] sm:$0xff]
    %v554 = vld [vmem:[#allocation7 + $0x6c0] sm:$0xff]
    %v555 = vld [vmem:[#allocation7 + $0x6c8] sm:$0xff]
    %v556 = vld [vmem:[#allocation7 + $0x6d0] sm:$0xff]
    %v557 = vld [vmem:[#allocation7 + $0x6d8] sm:$0xff]
    %v558 = vld [vmem:[#allocation7 + $0x6e0] sm:$0xff]
    %v559 = vld [vmem:[#allocation7 + $0x6e8] sm:$0xff]
    %v560 = vld [vmem:[#allocation7 + $0x6f0] sm:$0xff]
    %v561 = vld [vmem:[#allocation7 + $0x6f8] sm:$0xff]
    %v562 = vld [vmem:[#allocation7 + $0x700] sm:$0xff]
    %v563 = vld [vmem:[#allocation7 + $0x708] sm:$0xff]
    %v564 = vld [vmem:[#allocation7 + $0x710] sm:$0xff]
    %v565 = vld [vmem:[#allocation7 + $0x718] sm:$0xff]
    %v566 = vld [vmem:[#allocation7 + $0x720] sm:$0xff]
    %v567 = vld [vmem:[#allocation7 + $0x728] sm:$0xff]
    %v568 = vld [vmem:[#allocation7 + $0x730] sm:$0xff]
    %v569 = vld [vmem:[#allocation7 + $0x738] sm:$0xff]
    %v570 = vld [vmem:[#allocation7 + $0x740] sm:$0xff]
    %v571 = vld [vmem:[#allocation7 + $0x748] sm:$0xff]
    %v572 = vld [vmem:[#allocation7 + $0x750] sm:$0xff]
    %v573 = vld [vmem:[#allocation7 + $0x758] sm:$0xff]
    %v574 = vld [vmem:[#allocation7 + $0x760] sm:$0xff]
    %v575 = vld [vmem:[#allocation7 + $0x768] sm:$0xff]
    %v576 = vld [vmem:[#allocation7 + $0x770] sm:$0xff]
    %v577 = vld [vmem:[#allocation7 + $0x778] sm:$0xff]
    %v578 = vld [vmem:[#allocation7 + $0x780] sm:$0xff]
    %v579 = vld [vmem:[#allocation7 + $0x788] sm:$0xff]
    %v580 = vld [vmem:[#allocation7 + $0x790] sm:$0xff]
    %v581 = vld [vmem:[#allocation7 + $0x798] sm:$0xff]
    %v582 = vld [vmem:[#allocation7 + $0x7a0] sm:$0xff]
    %v583 = vld [vmem:[#allocation7 + $0x7a8] sm:$0xff]
    %v584 = vld [vmem:[#allocation7 + $0x7b0] sm:$0xff]
    %v585 = vld [vmem:[#allocation7 + $0x7b8] sm:$0xff]
    %v586 = vld [vmem:[#allocation7 + $0x7c0] sm:$0xff]
    %v587 = vld [vmem:[#allocation7 + $0x7c8] sm:$0xff]
    %v588 = vld [vmem:[#allocation7 + $0x7d0] sm:$0xff]
    %v589 = vld [vmem:[#allocation7 + $0x7d8] sm:$0xff]
    %v590 = vld [vmem:[#allocation7 + $0x7e0] sm:$0xff]
    %v591 = vld [vmem:[#allocation7 + $0x7e8] sm:$0xff]
    %v592 = vld [vmem:[#allocation7 + $0x7f0] sm:$0xff]
    %v593 = vld [vmem:[#allocation7 + $0x7f8] sm:$0xff]
    %v594 = vld [vmem:[#allocation7 + $0x800] sm:$0xff]
    %v595 = vld [vmem:[#allocation7 + $0x808] sm:$0xff]
    %v596 = vld [vmem:[#allocation7 + $0x810] sm:$0xff]
    %v597 = vld [vmem:[#allocation7 + $0x818] sm:$0xff]
    %v598 = vld [vmem:[#allocation7 + $0x820] sm:$0xff]
    %v599 = vld [vmem:[#allocation7 + $0x828] sm:$0xff]
    %v600 = vld [vmem:[#allocation7 + $0x830] sm:$0xff]
    %v601 = vld [vmem:[#allocation7 + $0x838] sm:$0xff]
    %v602 = vld [vmem:[#allocation7 + $0x840] sm:$0xff]
    %v603 = vld [vmem:[#allocation7 + $0x848] sm:$0xff]
    %v604 = vld [vmem:[#allocation7 + $0x850] sm:$0xff]
    %v605 = vld [vmem:[#allocation7 + $0x858] sm:$0xff]
    %v606 = vld [vmem:[#allocation7 + $0x860] sm:$0xff]
    %v607 = vld [vmem:[#allocation7 + $0x868] sm:$0xff]
    %v608 = vld [vmem:[#allocation7 + $0x870] sm:$0xff]
    %v609 = vld [vmem:[#allocation7 + $0x878] sm:$0xff]
    %v610 = vld [vmem:[#allocation7 + $0x880] sm:$0xff]
    %v611 = vld [vmem:[#allocation7 + $0x888] sm:$0xff]
    %v612 = vld [vmem:[#allocation7 + $0x890] sm:$0xff]
    %v613 = vld [vmem:[#allocation7 + $0x898] sm:$0xff]
    %v614 = vld [vmem:[#allocation7 + $0x8a0] sm:$0xff]
    %v615 = vld [vmem:[#allocation7 + $0x8a8] sm:$0xff]
    %v616 = vld [vmem:[#allocation7 + $0x8b0] sm:$0xff]
    %v617 = vld [vmem:[#allocation7 + $0x8b8] sm:$0xff]
    %v618 = vld [vmem:[#allocation7 + $0x8c0] sm:$0xff]
    %v619 = vld [vmem:[#allocation7 + $0x8c8] sm:$0xff]
    %v620 = vld [vmem:[#allocation7 + $0x8d0] sm:$0xff]
    %v621 = vld [vmem:[#allocation7 + $0x8d8] sm:$0xff]
    %v622 = vld [vmem:[#allocation7 + $0x8e0] sm:$0xff]
    %v623 = vld [vmem:[#allocation7 + $0x8e8] sm:$0xff]
    %v624 = vld [vmem:[#allocation7 + $0x8f0] sm:$0xff]
    %v625 = vld [vmem:[#allocation7 + $0x8f8] sm:$0xff]
    %v626 = vld [vmem:[#allocation7 + $0x900] sm:$0xff]
    %v627 = vld [vmem:[#allocation7 + $0x908] sm:$0xff]
    %v628 = vld [vmem:[#allocation7 + $0x910] sm:$0xff]
    %v629 = vld [vmem:[#allocation7 + $0x918] sm:$0xff]
    %v630 = vld [vmem:[#allocation7 + $0x920] sm:$0xff]
    %v631 = vld [vmem:[#allocation7 + $0x928] sm:$0xff]
    %v632 = vld [vmem:[#allocation7 + $0x930] sm:$0xff]
    %v633 = vld [vmem:[#allocation7 + $0x938] sm:$0xff]
    %v634 = vld [vmem:[#allocation7 + $0x940] sm:$0xff]
    %v635 = vld [vmem:[#allocation7 + $0x948] sm:$0xff]
    %v636 = vld [vmem:[#allocation7 + $0x950] sm:$0xff]
    %v637 = vld [vmem:[#allocation7 + $0x958] sm:$0xff]
    %v638 = vld [vmem:[#allocation7 + $0x960] sm:$0xff]
    %v639 = vld [vmem:[#allocation7 + $0x968] sm:$0xff]
    %v640 = vld [vmem:[#allocation7 + $0x970] sm:$0xff]
    %v641 = vld [vmem:[#allocation7 + $0x978] sm:$0xff]
    %v642 = vld [vmem:[#allocation7 + $0x980] sm:$0xff]
    %v643 = vld [vmem:[#allocation7 + $0x988] sm:$0xff]
    %v644 = vld [vmem:[#allocation7 + $0x990] sm:$0xff]
    %v645 = vld [vmem:[#allocation7 + $0x998] sm:$0xff]
    %v646 = vld [vmem:[#allocation7 + $0x9a0] sm:$0xff]
    %v647 = vld [vmem:[#allocation7 + $0x9a8] sm:$0xff]
    %v648 = vld [vmem:[#allocation7 + $0x9b0] sm:$0xff]
    %v649 = vld [vmem:[#allocation7 + $0x9b8] sm:$0xff]
    %v650 = vld [vmem:[#allocation7 + $0x9c0] sm:$0xff]
    %v651 = vld [vmem:[#allocation7 + $0x9c8] sm:$0xff]
    %v652 = vld [vmem:[#allocation7 + $0x9d0] sm:$0xff]
    %v653 = vld [vmem:[#allocation7 + $0x9d8] sm:$0xff]
    %v654 = vld [vmem:[#allocation7 + $0x9e0] sm:$0xff]
    %v655 = vld [vmem:[#allocation7 + $0x9e8] sm:$0xff]
    %v656 = vld [vmem:[#allocation7 + $0x9f0] sm:$0xff]
    %v657 = vld [vmem:[#allocation7 + $0x9f8] sm:$0xff]
    %v658 = vld [vmem:[#allocation7 + $0xa00] sm:$0xff]
    %v659 = vld [vmem:[#allocation7 + $0xa08] sm:$0xff]
    %v660 = vld [vmem:[#allocation7 + $0xa10] sm:$0xff]
    %v661 = vld [vmem:[#allocation7 + $0xa18] sm:$0xff]
    %v662 = vld [vmem:[#allocation7 + $0xa20] sm:$0xff]
    %v663 = vld [vmem:[#allocation7 + $0xa28] sm:$0xff]
    %v664 = vld [vmem:[#allocation7 + $0xa30] sm:$0xff]
    %v665 = vld [vmem:[#allocation7 + $0xa38] sm:$0xff]
    %v666 = vld [vmem:[#allocation7 + $0xa40] sm:$0xff]
    %v667 = vld [vmem:[#allocation7 + $0xa48] sm:$0xff]
    %v668 = vld [vmem:[#allocation7 + $0xa50] sm:$0xff]
    %v669 = vld [vmem:[#allocation7 + $0xa58] sm:$0xff]
    %v670 = vld [vmem:[#allocation7 + $0xa60] sm:$0xff]
    %v671 = vld [vmem:[#allocation7 + $0xa68] sm:$0xff]
    %v672 = vld [vmem:[#allocation7 + $0xa70] sm:$0xff]
    %v673 = vld [vmem:[#allocation7 + $0xa78] sm:$0xff]
    %v674 = vld [vmem:[#allocation9] sm:$0xff]
    %v676 = vperm.slane %v674, 0
    %v677 = vperm.slane %v674, 1
    %v678 = vperm.slane %v674, 2
    %v679 = vperm.slane %v674, 3
    %v680 = vperm.slane %v674, 4
    %v681 = vperm.slane %v674, 5
    %v682 = vperm.slane %v674, 6
    %690 = vmatpush.msra.mxu0 %v443
    %691 = vmatpush.msra.mxu0 %v436
    %692 = vmatpush.msra.mxu0 %v429
    %693 = vmatpush.msra.mxu0 %v422
    %694 = vmatpush.msra.mxu0 %v415
    %695 = vmatpush.msra.mxu0 %v408
    %696 = vmatpush.msra.mxu0 %v401
    %697 = vmatpush.msra.mxu0 %v394
    %698 = vmatpush.msra.mxu0 %v387
    %699 = vmatpush.msra.mxu0 %v380
    %700 = vmatpush.msra.mxu0 %v373
    %701 = vmatpush.msra.mxu0 %v366
    %702 = vmatpush.msra.mxu0 %v359
    %703 = vmatpush.msra.mxu0 %v352
    %704 = vmatpush.msra.mxu0 %v345
    %705 = vmatpush.msra.mxu0 %v338
    %706 = vmatmul.f32.gmra.mxu0 %v332
    %v707 = vpop.f32.mrf.mxu0
    %v708 = vadd.f32 %v676, %v707
    %709 = vmatmul.f32.gmra.mxu0 %v335
    %v710 = vpop.f32.mrf.mxu0
    %v711 = vadd.f32 %v676, %v710
    %712 = vdwg.mxu0
    %713 = vmatpush.msra.mxu0 %v555
    %714 = vmatpush.msra.mxu0 %v548
    %715 = vmatpush.msra.mxu0 %v541
    %716 = vmatpush.msra.mxu0 %v534
    %717 = vmatpush.msra.mxu0 %v527
    %718 = vmatpush.msra.mxu0 %v520
    %719 = vmatpush.msra.mxu0 %v513
    %720 = vmatpush.msra.mxu0 %v506
    %721 = vmatpush.msra.mxu0 %v499
    %722 = vmatpush.msra.mxu0 %v492
    %723 = vmatpush.msra.mxu0 %v485
    %724 = vmatpush.msra.mxu0 %v478
    %725 = vmatpush.msra.mxu0 %v471
    %726 = vmatpush.msra.mxu0 %v464
    %727 = vmatpush.msra.mxu0 %v457
    %728 = vmatpush.msra.mxu0 %v450
    %729 = vmatmul.f32.gmra.mxu0 %v333
    %v730 = vpop.f32.mrf.mxu0
    %v731 = vadd.f32 %v708, %v730
    %732 = vmatmul.f32.gmra.mxu0 %v336
    %v733 = vpop.f32.mrf.mxu0
    %v734 = vadd.f32 %v711, %v733
    %735 = vdwg.mxu0
    %736 = vmatpush.msra.mxu0 %v667
    %737 = vmatpush.msra.mxu0 %v660
    %738 = vmatpush.msra.mxu0 %v653
    %739 = vmatpush.msra.mxu0 %v646
    %740 = vmatpush.msra.mxu0 %v639
    %741 = vmatpush.msra.mxu0 %v632
    %742 = vmatpush.msra.mxu0 %v625
    %743 = vmatpush.msra.mxu0 %v618
    %744 = vmatpush.msra.mxu0 %v611
    %745 = vmatpush.msra.mxu0 %v604
    %746 = vmatpush.msra.mxu0 %v597
    %747 = vmatpush.msra.mxu0 %v590
    %748 = vmatpush.msra.mxu0 %v583
    %749 = vmatpush.msra.mxu0 %v576
    %750 = vmatpush.msra.mxu0 %v569
    %751 = vmatpush.msra.mxu0 %v562
    %752 = vmatmul.f32.gmra.mxu0 %v334
    %v753 = vpop.f32.mrf.mxu0
    %v754 = vadd.f32 %v731, %v753
    %755 = vmatmul.f32.gmra.mxu0 %v337
    %v756 = vpop.f32.mrf.mxu0
    %v757 = vadd.f32 %v734, %v756
    %758 = vdwg.mxu0
    %759 = vmatpush.msra.mxu0 %v444
    %760 = vmatpush.msra.mxu0 %v437
    %761 = vmatpush.msra.mxu0 %v430
    %762 = vmatpush.msra.mxu0 %v423
    %763 = vmatpush.msra.mxu0 %v416
    %764 = vmatpush.msra.mxu0 %v409
    %765 = vmatpush.msra.mxu0 %v402
    %766 = vmatpush.msra.mxu0 %v395
    %767 = vmatpush.msra.mxu0 %v388
    %768 = vmatpush.msra.mxu0 %v381
    %769 = vmatpush.msra.mxu0 %v374
    %770 = vmatpush.msra.mxu0 %v367
    %771 = vmatpush.msra.mxu0 %v360
    %772 = vmatpush.msra.mxu0 %v353
    %773 = vmatpush.msra.mxu0 %v346
    %774 = vmatpush.msra.mxu0 %v339
    %775 = vmatmul.f32.gmra.mxu0 %v332
    %v776 = vpop.f32.mrf.mxu0
    %v777 = vadd.f32 %v677, %v776
    %778 = vmatmul.f32.gmra.mxu0 %v335
    %v779 = vpop.f32.mrf.mxu0
    %v780 = vadd.f32 %v677, %v779
    %781 = vdwg.mxu0
    %782 = vmatpush.msra.mxu0 %v556
    %783 = vmatpush.msra.mxu0 %v549
    %784 = vmatpush.msra.mxu0 %v542
    %785 = vmatpush.msra.mxu0 %v535
    %786 = vmatpush.msra.mxu0 %v528
    %787 = vmatpush.msra.mxu0 %v521
    %788 = vmatpush.msra.mxu0 %v514
    %789 = vmatpush.msra.mxu0 %v507
    %790 = vmatpush.msra.mxu0 %v500
    %791 = vmatpush.msra.mxu0 %v493
    %792 = vmatpush.msra.mxu0 %v486
    %793 = vmatpush.msra.mxu0 %v479
    %794 = vmatpush.msra.mxu0 %v472
    %795 = vmatpush.msra.mxu0 %v465
    %796 = vmatpush.msra.mxu0 %v458
    %797 = vmatpush.msra.mxu0 %v451
    %798 = vmatmul.f32.gmra.mxu0 %v333
    %v799 = vpop.f32.mrf.mxu0
    %v800 = vadd.f32 %v777, %v799
    %801 = vmatmul.f32.gmra.mxu0 %v336
    %v802 = vpop.f32.mrf.mxu0
    %v803 = vadd.f32 %v780, %v802
    %804 = vdwg.mxu0
    %805 = vmatpush.msra.mxu0 %v668
    %806 = vmatpush.msra.mxu0 %v661
    %807 = vmatpush.msra.mxu0 %v654
    %808 = vmatpush.msra.mxu0 %v647
    %809 = vmatpush.msra.mxu0 %v640
    %810 = vmatpush.msra.mxu0 %v633
    %811 = vmatpush.msra.mxu0 %v626
    %812 = vmatpush.msra.mxu0 %v619
    %813 = vmatpush.msra.mxu0 %v612
    %814 = vmatpush.msra.mxu0 %v605
    %815 = vmatpush.msra.mxu0 %v598
    %816 = vmatpush.msra.mxu0 %v591
    %817 = vmatpush.msra.mxu0 %v584
    %818 = vmatpush.msra.mxu0 %v577
    %819 = vmatpush.msra.mxu0 %v570
    %820 = vmatpush.msra.mxu0 %v563
    %821 = vmatmul.f32.gmra.mxu0 %v334
    %v822 = vpop.f32.mrf.mxu0
    %v823 = vadd.f32 %v800, %v822
    %824 = vmatmul.f32.gmra.mxu0 %v337
    %v825 = vpop.f32.mrf.mxu0
    %v826 = vadd.f32 %v803, %v825
    %827 = vdwg.mxu0
    %828 = vmatpush.msra.mxu0 %v445
    %829 = vmatpush.msra.mxu0 %v438
    %830 = vmatpush.msra.mxu0 %v431
    %831 = vmatpush.msra.mxu0 %v424
    %832 = vmatpush.msra.mxu0 %v417
    %833 = vmatpush.msra.mxu0 %v410
    %834 = vmatpush.msra.mxu0 %v403
    %835 = vmatpush.msra.mxu0 %v396
    %836 = vmatpush.msra.mxu0 %v389
    %837 = vmatpush.msra.mxu0 %v382
    %838 = vmatpush.msra.mxu0 %v375
    %839 = vmatpush.msra.mxu0 %v368
    %840 = vmatpush.msra.mxu0 %v361
    %841 = vmatpush.msra.mxu0 %v354
    %842 = vmatpush.msra.mxu0 %v347
    %843 = vmatpush.msra.mxu0 %v340
    %844 = vmatmul.f32.gmra.mxu0 %v332
    %v845 = vpop.f32.mrf.mxu0
    %v846 = vadd.f32 %v678, %v845
    %847 = vmatmul.f32.gmra.mxu0 %v335
    %v848 = vpop.f32.mrf.mxu0
    %v849 = vadd.f32 %v678, %v848
    %850 = vdwg.mxu0
    %851 = vmatpush.msra.mxu0 %v557
    %852 = vmatpush.msra.mxu0 %v550
    %853 = vmatpush.msra.mxu0 %v543
    %854 = vmatpush.msra.mxu0 %v536
    %855 = vmatpush.msra.mxu0 %v529
    %856 = vmatpush.msra.mxu0 %v522
    %857 = vmatpush.msra.mxu0 %v515
    %858 = vmatpush.msra.mxu0 %v508
    %859 = vmatpush.msra.mxu0 %v501
    %860 = vmatpush.msra.mxu0 %v494
    %861 = vmatpush.msra.mxu0 %v487
    %862 = vmatpush.msra.mxu0 %v480
    %863 = vmatpush.msra.mxu0 %v473
    %864 = vmatpush.msra.mxu0 %v466
    %865 = vmatpush.msra.mxu0 %v459
    %866 = vmatpush.msra.mxu0 %v452
    %867 = vmatmul.f32.gmra.mxu0 %v333
    %v868 = vpop.f32.mrf.mxu0
    %v869 = vadd.f32 %v846, %v868
    %870 = vmatmul.f32.gmra.mxu0 %v336
    %v871 = vpop.f32.mrf.mxu0
    %v872 = vadd.f32 %v849, %v871
    %873 = vdwg.mxu0
    %874 = vmatpush.msra.mxu0 %v669
    %875 = vmatpush.msra.mxu0 %v662
    %876 = vmatpush.msra.mxu0 %v655
    %877 = vmatpush.msra.mxu0 %v648
    %878 = vmatpush.msra.mxu0 %v641
    %879 = vmatpush.msra.mxu0 %v634
    %880 = vmatpush.msra.mxu0 %v627
    %881 = vmatpush.msra.mxu0 %v620
    %882 = vmatpush.msra.mxu0 %v613
    %883 = vmatpush.msra.mxu0 %v606
    %884 = vmatpush.msra.mxu0 %v599
    %885 = vmatpush.msra.mxu0 %v592
    %886 = vmatpush.msra.mxu0 %v585
    %887 = vmatpush.msra.mxu0 %v578
    %888 = vmatpush.msra.mxu0 %v571
    %889 = vmatpush.msra.mxu0 %v564
    %890 = vmatmul.f32.gmra.mxu0 %v334
    %v891 = vpop.f32.mrf.mxu0
    %v892 = vadd.f32 %v869, %v891
    %893 = vmatmul.f32.gmra.mxu0 %v337
    %v894 = vpop.f32.mrf.mxu0
    %v895 = vadd.f32 %v872, %v894
    %896 = vdwg.mxu0
    %897 = vmatpush.msra.mxu0 %v446
    %898 = vmatpush.msra.mxu0 %v439
    %899 = vmatpush.msra.mxu0 %v432
    %900 = vmatpush.msra.mxu0 %v425
    %901 = vmatpush.msra.mxu0 %v418
    %902 = vmatpush.msra.mxu0 %v411
    %903 = vmatpush.msra.mxu0 %v404
    %904 = vmatpush.msra.mxu0 %v397
    %905 = vmatpush.msra.mxu0 %v390
    %906 = vmatpush.msra.mxu0 %v383
    %907 = vmatpush.msra.mxu0 %v376
    %908 = vmatpush.msra.mxu0 %v369
    %909 = vmatpush.msra.mxu0 %v362
    %910 = vmatpush.msra.mxu0 %v355
    %911 = vmatpush.msra.mxu0 %v348
    %912 = vmatpush.msra.mxu0 %v341
    %913 = vmatmul.f32.gmra.mxu0 %v332
    %v914 = vpop.f32.mrf.mxu0
    %v915 = vadd.f32 %v679, %v914
    %916 = vmatmul.f32.gmra.mxu0 %v335
    %v917 = vpop.f32.mrf.mxu0
    %v918 = vadd.f32 %v679, %v917
    %919 = vdwg.mxu0
    %920 = vmatpush.msra.mxu0 %v558
    %921 = vmatpush.msra.mxu0 %v551
    %922 = vmatpush.msra.mxu0 %v544
    %923 = vmatpush.msra.mxu0 %v537
    %924 = vmatpush.msra.mxu0 %v530
    %925 = vmatpush.msra.mxu0 %v523
    %926 = vmatpush.msra.mxu0 %v516
    %927 = vmatpush.msra.mxu0 %v509
    %928 = vmatpush.msra.mxu0 %v502
    %929 = vmatpush.msra.mxu0 %v495
    %930 = vmatpush.msra.mxu0 %v488
    %931 = vmatpush.msra.mxu0 %v481
    %932 = vmatpush.msra.mxu0 %v474
    %933 = vmatpush.msra.mxu0 %v467
    %934 = vmatpush.msra.mxu0 %v460
    %935 = vmatpush.msra.mxu0 %v453
    %936 = vmatmul.f32.gmra.mxu0 %v333
    %v937 = vpop.f32.mrf.mxu0
    %v938 = vadd.f32 %v915, %v937
    %939 = vmatmul.f32.gmra.mxu0 %v336
    %v940 = vpop.f32.mrf.mxu0
    %v941 = vadd.f32 %v918, %v940
    %942 = vdwg.mxu0
    %943 = vmatpush.msra.mxu0 %v670
    %944 = vmatpush.msra.mxu0 %v663
    %945 = vmatpush.msra.mxu0 %v656
    %946 = vmatpush.msra.mxu0 %v649
    %947 = vmatpush.msra.mxu0 %v642
    %948 = vmatpush.msra.mxu0 %v635
    %949 = vmatpush.msra.mxu0 %v628
    %950 = vmatpush.msra.mxu0 %v621
    %951 = vmatpush.msra.mxu0 %v614
    %952 = vmatpush.msra.mxu0 %v607
    %953 = vmatpush.msra.mxu0 %v600
    %954 = vmatpush.msra.mxu0 %v593
    %955 = vmatpush.msra.mxu0 %v586
    %956 = vmatpush.msra.mxu0 %v579
    %957 = vmatpush.msra.mxu0 %v572
    %958 = vmatpush.msra.mxu0 %v565
    %959 = vmatmul.f32.gmra.mxu0 %v334
    %v960 = vpop.f32.mrf.mxu0
    %v961 = vadd.f32 %v938, %v960
    %962 = vmatmul.f32.gmra.mxu0 %v337
    %v963 = vpop.f32.mrf.mxu0
    %v964 = vadd.f32 %v941, %v963
    %965 = vdwg.mxu0
    %966 = vmatpush.msra.mxu0 %v447
    %967 = vmatpush.msra.mxu0 %v440
    %968 = vmatpush.msra.mxu0 %v433
    %969 = vmatpush.msra.mxu0 %v426
    %970 = vmatpush.msra.mxu0 %v419
    %971 = vmatpush.msra.mxu0 %v412
    %972 = vmatpush.msra.mxu0 %v405
    %973 = vmatpush.msra.mxu0 %v398
    %974 = vmatpush.msra.mxu0 %v391
    %975 = vmatpush.msra.mxu0 %v384
    %976 = vmatpush.msra.mxu0 %v377
    %977 = vmatpush.msra.mxu0 %v370
    %978 = vmatpush.msra.mxu0 %v363
    %979 = vmatpush.msra.mxu0 %v356
    %980 = vmatpush.msra.mxu0 %v349
    %981 = vmatpush.msra.mxu0 %v342
    %982 = vmatmul.f32.gmra.mxu0 %v332
    %v983 = vpop.f32.mrf.mxu0
    %v984 = vadd.f32 %v680, %v983
    %985 = vmatmul.f32.gmra.mxu0 %v335
    %v986 = vpop.f32.mrf.mxu0
    %v987 = vadd.f32 %v680, %v986
    %988 = vdwg.mxu0
    %989 = vmatpush.msra.mxu0 %v559
    %990 = vmatpush.msra.mxu0 %v552
    %991 = vmatpush.msra.mxu0 %v545
    %992 = vmatpush.msra.mxu0 %v538
    %993 = vmatpush.msra.mxu0 %v531
    %994 = vmatpush.msra.mxu0 %v524
    %995 = vmatpush.msra.mxu0 %v517
    %996 = vmatpush.msra.mxu0 %v510
    %997 = vmatpush.msra.mxu0 %v503
    %998 = vmatpush.msra.mxu0 %v496
    %999 = vmatpush.msra.mxu0 %v489
    %1000 = vmatpush.msra.mxu0 %v482
    %1001 = vmatpush.msra.mxu0 %v475
    %1002 = vmatpush.msra.mxu0 %v468
    %1003 = vmatpush.msra.mxu0 %v461
    %1004 = vmatpush.msra.mxu0 %v454
    %1005 = vmatmul.f32.gmra.mxu0 %v333
    %v1006 = vpop.f32.mrf.mxu0
    %v1007 = vadd.f32 %v984, %v1006
    %1008 = vmatmul.f32.gmra.mxu0 %v336
    %v1009 = vpop.f32.mrf.mxu0
    %v1010 = vadd.f32 %v987, %v1009
    %1011 = vdwg.mxu0
    %1012 = vmatpush.msra.mxu0 %v671
    %1013 = vmatpush.msra.mxu0 %v664
    %1014 = vmatpush.msra.mxu0 %v657
    %1015 = vmatpush.msra.mxu0 %v650
    %1016 = vmatpush.msra.mxu0 %v643
    %1017 = vmatpush.msra.mxu0 %v636
    %1018 = vmatpush.msra.mxu0 %v629
    %1019 = vmatpush.msra.mxu0 %v622
    %1020 = vmatpush.msra.mxu0 %v615
    %1021 = vmatpush.msra.mxu0 %v608
    %1022 = vmatpush.msra.mxu0 %v601
    %1023 = vmatpush.msra.mxu0 %v594
    %1024 = vmatpush.msra.mxu0 %v587
    %1025 = vmatpush.msra.mxu0 %v580
    %1026 = vmatpush.msra.mxu0 %v573
    %1027 = vmatpush.msra.mxu0 %v566
    %1028 = vmatmul.f32.gmra.mxu0 %v334
    %v1029 = vpop.f32.mrf.mxu0
    %v1030 = vadd.f32 %v1007, %v1029
    %1031 = vmatmul.f32.gmra.mxu0 %v337
    %v1032 = vpop.f32.mrf.mxu0
    %v1033 = vadd.f32 %v1010, %v1032
    %1034 = vdwg.mxu0
    %1035 = vmatpush.msra.mxu0 %v448
    %1036 = vmatpush.msra.mxu0 %v441
    %1037 = vmatpush.msra.mxu0 %v434
    %1038 = vmatpush.msra.mxu0 %v427
    %1039 = vmatpush.msra.mxu0 %v420
    %1040 = vmatpush.msra.mxu0 %v413
    %1041 = vmatpush.msra.mxu0 %v406
    %1042 = vmatpush.msra.mxu0 %v399
    %1043 = vmatpush.msra.mxu0 %v392
    %1044 = vmatpush.msra.mxu0 %v385
    %1045 = vmatpush.msra.mxu0 %v378
    %1046 = vmatpush.msra.mxu0 %v371
    %1047 = vmatpush.msra.mxu0 %v364
    %1048 = vmatpush.msra.mxu0 %v357
    %1049 = vmatpush.msra.mxu0 %v350
    %1050 = vmatpush.msra.mxu0 %v343
    %1051 = vmatmul.f32.gmra.mxu0 %v332
    %v1052 = vpop.f32.mrf.mxu0
    %v1053 = vadd.f32 %v681, %v1052
    %1054 = vmatmul.f32.gmra.mxu0 %v335
    %v1055 = vpop.f32.mrf.mxu0
    %v1056 = vadd.f32 %v681, %v1055
    %1057 = vdwg.mxu0
    %1058 = vmatpush.msra.mxu0 %v560
    %1059 = vmatpush.msra.mxu0 %v553
    %1060 = vmatpush.msra.mxu0 %v546
    %1061 = vmatpush.msra.mxu0 %v539
    %1062 = vmatpush.msra.mxu0 %v532
    %1063 = vmatpush.msra.mxu0 %v525
    %1064 = vmatpush.msra.mxu0 %v518
    %1065 = vmatpush.msra.mxu0 %v511
    %1066 = vmatpush.msra.mxu0 %v504
    %1067 = vmatpush.msra.mxu0 %v497
    %1068 = vmatpush.msra.mxu0 %v490
    %1069 = vmatpush.msra.mxu0 %v483
    %1070 = vmatpush.msra.mxu0 %v476
    %1071 = vmatpush.msra.mxu0 %v469
    %1072 = vmatpush.msra.mxu0 %v462
    %1073 = vmatpush.msra.mxu0 %v455
    %1074 = vmatmul.f32.gmra.mxu0 %v333
    %v1075 = vpop.f32.mrf.mxu0
    %v1076 = vadd.f32 %v1053, %v1075
    %1077 = vmatmul.f32.gmra.mxu0 %v336
    %v1078 = vpop.f32.mrf.mxu0
    %v1079 = vadd.f32 %v1056, %v1078
    %1080 = vdwg.mxu0
    %1081 = vmatpush.msra.mxu0 %v672
    %1082 = vmatpush.msra.mxu0 %v665
    %1083 = vmatpush.msra.mxu0 %v658
    %1084 = vmatpush.msra.mxu0 %v651
    %1085 = vmatpush.msra.mxu0 %v644
    %1086 = vmatpush.msra.mxu0 %v637
    %1087 = vmatpush.msra.mxu0 %v630
    %1088 = vmatpush.msra.mxu0 %v623
    %1089 = vmatpush.msra.mxu0 %v616
    %1090 = vmatpush.msra.mxu0 %v609
    %1091 = vmatpush.msra.mxu0 %v602
    %1092 = vmatpush.msra.mxu0 %v595
    %1093 = vmatpush.msra.mxu0 %v588
    %1094 = vmatpush.msra.mxu0 %v581
    %1095 = vmatpush.msra.mxu0 %v574
    %1096 = vmatpush.msra.mxu0 %v567
    %1097 = vmatmul.f32.gmra.mxu0 %v334
    %v1098 = vpop.f32.mrf.mxu0
    %v1099 = vadd.f32 %v1076, %v1098
    %1100 = vmatmul.f32.gmra.mxu0 %v337
    %v1101 = vpop.f32.mrf.mxu0
    %v1102 = vadd.f32 %v1079, %v1101
    %1103 = vdwg.mxu0
    %1104 = vmatpush.msra.mxu0 %v449
    %1105 = vmatpush.msra.mxu0 %v442
    %1106 = vmatpush.msra.mxu0 %v435
    %1107 = vmatpush.msra.mxu0 %v428
    %1108 = vmatpush.msra.mxu0 %v421
    %1109 = vmatpush.msra.mxu0 %v414
    %1110 = vmatpush.msra.mxu0 %v407
    %1111 = vmatpush.msra.mxu0 %v400
    %1112 = vmatpush.msra.mxu0 %v393
    %1113 = vmatpush.msra.mxu0 %v386
    %1114 = vmatpush.msra.mxu0 %v379
    %1115 = vmatpush.msra.mxu0 %v372
    %1116 = vmatpush.msra.mxu0 %v365
    %1117 = vmatpush.msra.mxu0 %v358
    %1118 = vmatpush.msra.mxu0 %v351
    %1119 = vmatpush.msra.mxu0 %v344
    %1120 = vmatmul.f32.gmra.mxu0 %v332
    %v1121 = vpop.f32.mrf.mxu0
    %v1122 = vadd.f32 %v682, %v1121
    %1123 = vmatmul.f32.gmra.mxu0 %v335
    %v1124 = vpop.f32.mrf.mxu0
    %v1125 = vadd.f32 %v682, %v1124
    %1126 = vdwg.mxu0
    %1127 = vmatpush.msra.mxu0 %v561
    %1128 = vmatpush.msra.mxu0 %v554
    %1129 = vmatpush.msra.mxu0 %v547
    %1130 = vmatpush.msra.mxu0 %v540
    %1131 = vmatpush.msra.mxu0 %v533
    %1132 = vmatpush.msra.mxu0 %v526
    %1133 = vmatpush.msra.mxu0 %v519
    %1134 = vmatpush.msra.mxu0 %v512
    %1135 = vmatpush.msra.mxu0 %v505
    %1136 = vmatpush.msra.mxu0 %v498
    %1137 = vmatpush.msra.mxu0 %v491
    %1138 = vmatpush.msra.mxu0 %v484
    %1139 = vmatpush.msra.mxu0 %v477
    %1140 = vmatpush.msra.mxu0 %v470
    %1141 = vmatpush.msra.mxu0 %v463
    %1142 = vmatpush.msra.mxu0 %v456
    %1143 = vmatmul.f32.gmra.mxu0 %v333
    %v1144 = vpop.f32.mrf.mxu0
    %v1145 = vadd.f32 %v1122, %v1144
    %1146 = vmatmul.f32.gmra.mxu0 %v336
    %v1147 = vpop.f32.mrf.mxu0
    %v1148 = vadd.f32 %v1125, %v1147
    %1149 = vdwg.mxu0
    %1150 = vmatpush.msra.mxu0 %v673
    %1151 = vmatpush.msra.mxu0 %v666
    %1152 = vmatpush.msra.mxu0 %v659
    %1153 = vmatpush.msra.mxu0 %v652
    %1154 = vmatpush.msra.mxu0 %v645
    %1155 = vmatpush.msra.mxu0 %v638
    %1156 = vmatpush.msra.mxu0 %v631
    %1157 = vmatpush.msra.mxu0 %v624
    %1158 = vmatpush.msra.mxu0 %v617
    %1159 = vmatpush.msra.mxu0 %v610
    %1160 = vmatpush.msra.mxu0 %v603
    %1161 = vmatpush.msra.mxu0 %v596
    %1162 = vmatpush.msra.mxu0 %v589
    %1163 = vmatpush.msra.mxu0 %v582
    %1164 = vmatpush.msra.mxu0 %v575
    %1165 = vmatpush.msra.mxu0 %v568
    %1166 = vmatmul.f32.gmra.mxu0 %v334
    %v1167 = vpop.f32.mrf.mxu0
    %v1168 = vadd.f32 %v1145, %v1167
    %1169 = vmatmul.f32.gmra.mxu0 %v337
    %v1170 = vpop.f32.mrf.mxu0
    %v1171 = vadd.f32 %v1148, %v1170
    %1172 = vdwg.mxu0
    %v1173 = vmax.f32 %v754, 0.0
    %v1174 = vmax.f32 %v823, 0.0
    %v1175 = vmax.f32 %v892, 0.0
    %v1176 = vmax.f32 %v961, 0.0
    %v1177 = vmax.f32 %v1030, 0.0
    %v1178 = vmax.f32 %v1099, 0.0
    %v1179 = vmax.f32 %v1168, 0.0
    %v1180 = vmax.f32 %v757, 0.0
    %v1181 = vmax.f32 %v826, 0.0
    %v1182 = vmax.f32 %v895, 0.0
    %v1183 = vmax.f32 %v964, 0.0
    %v1184 = vmax.f32 %v1033, 0.0
    %v1185 = vmax.f32 %v1102, 0.0
    %v1186 = vmax.f32 %v1171, 0.0
    %v1187 = vld [vmem:[#allocation10] sm:$0xff]
    %v1188 = vld [vmem:[#allocation10 + $0x8] sm:$0xff]
    %v1189 = vld [vmem:[#allocation10 + $0x10] sm:$0xff]
    %v1190 = vld [vmem:[#allocation10 + $0x18] sm:$0xff]
    %v1191 = vld [vmem:[#allocation10 + $0x20] sm:$0xff]
    %v1192 = vld [vmem:[#allocation10 + $0x28] sm:$0xff]
    %v1193 = vld [vmem:[#allocation10 + $0x30] sm:$0xff]
    %v1194 = vld [vmem:[#allocation10 + $0x38] sm:$0xff]
    %v1195 = vld [vmem:[#allocation10 + $0x40] sm:$0xff]
    %v1196 = vld [vmem:[#allocation10 + $0x48] sm:$0xff]
    %v1197 = vld [vmem:[#allocation10 + $0x50] sm:$0xff]
    %v1198 = vld [vmem:[#allocation10 + $0x58] sm:$0xff]
    %v1199 = vld [vmem:[#allocation10 + $0x60] sm:$0xff]
    %v1200 = vld [vmem:[#allocation10 + $0x68] sm:$0xff]
    %v1201 = vld [vmem:[#allocation10 + $0x70] sm:$0xff]
    %v1202 = vld [vmem:[#allocation10 + $0x78] sm:$0xff]
    %v1203 = vld [vmem:[#allocation10 + $0x80] sm:$0xff]
    %v1204 = vld [vmem:[#allocation10 + $0x88] sm:$0xff]
    %v1205 = vld [vmem:[#allocation10 + $0x90] sm:$0xff]
    %v1206 = vld [vmem:[#allocation10 + $0x98] sm:$0xff]
    %v1207 = vld [vmem:[#allocation10 + $0xa0] sm:$0xff]
    %v1208 = vld [vmem:[#allocation10 + $0xa8] sm:$0xff]
    %v1209 = vld [vmem:[#allocation10 + $0xb0] sm:$0xff]
    %v1210 = vld [vmem:[#allocation10 + $0xb8] sm:$0xff]
    %v1211 = vld [vmem:[#allocation10 + $0xc0] sm:$0xff]
    %v1212 = vld [vmem:[#allocation10 + $0xc8] sm:$0xff]
    %v1213 = vld [vmem:[#allocation10 + $0xd0] sm:$0xff]
    %v1214 = vld [vmem:[#allocation10 + $0xd8] sm:$0xff]
    %v1215 = vld [vmem:[#allocation10 + $0xe0] sm:$0xff]
    %v1216 = vld [vmem:[#allocation10 + $0xe8] sm:$0xff]
    %v1217 = vld [vmem:[#allocation10 + $0xf0] sm:$0xff]
    %v1218 = vld [vmem:[#allocation10 + $0xf8] sm:$0xff]
    %v1219 = vld [vmem:[#allocation10 + $0x100] sm:$0xff]
    %v1220 = vld [vmem:[#allocation10 + $0x108] sm:$0xff]
    %v1221 = vld [vmem:[#allocation10 + $0x110] sm:$0xff]
    %v1222 = vld [vmem:[#allocation10 + $0x118] sm:$0xff]
    %v1223 = vld [vmem:[#allocation10 + $0x120] sm:$0xff]
    %v1224 = vld [vmem:[#allocation10 + $0x128] sm:$0xff]
    %v1225 = vld [vmem:[#allocation10 + $0x130] sm:$0xff]
    %v1226 = vld [vmem:[#allocation10 + $0x138] sm:$0xff]
    %v1227 = vld [vmem:[#allocation10 + $0x140] sm:$0xff]
    %v1228 = vld [vmem:[#allocation10 + $0x148] sm:$0xff]
    %v1229 = vld [vmem:[#allocation10 + $0x150] sm:$0xff]
    %v1230 = vld [vmem:[#allocation10 + $0x158] sm:$0xff]
    %v1231 = vld [vmem:[#allocation10 + $0x160] sm:$0xff]
    %v1232 = vld [vmem:[#allocation10 + $0x168] sm:$0xff]
    %v1233 = vld [vmem:[#allocation10 + $0x170] sm:$0xff]
    %v1234 = vld [vmem:[#allocation10 + $0x178] sm:$0xff]
    %v1235 = vld [vmem:[#allocation10 + $0x180] sm:$0xff]
    %v1236 = vld [vmem:[#allocation10 + $0x188] sm:$0xff]
    %v1237 = vld [vmem:[#allocation10 + $0x190] sm:$0xff]
    %v1238 = vld [vmem:[#allocation10 + $0x198] sm:$0xff]
    %v1239 = vld [vmem:[#allocation10 + $0x1a0] sm:$0xff]
    %v1240 = vld [vmem:[#allocation10 + $0x1a8] sm:$0xff]
    %v1241 = vld [vmem:[#allocation10 + $0x1b0] sm:$0xff]
    %v1242 = vld [vmem:[#allocation10 + $0x1b8] sm:$0xff]
    %v1243 = vld [vmem:[#allocation10 + $0x1c0] sm:$0xff]
    %v1244 = vld [vmem:[#allocation10 + $0x1c8] sm:$0xff]
    %v1245 = vld [vmem:[#allocation10 + $0x1d0] sm:$0xff]
    %v1246 = vld [vmem:[#allocation10 + $0x1d8] sm:$0xff]
    %v1247 = vld [vmem:[#allocation10 + $0x1e0] sm:$0xff]
    %v1248 = vld [vmem:[#allocation10 + $0x1e8] sm:$0xff]
    %v1249 = vld [vmem:[#allocation10 + $0x1f0] sm:$0xff]
    %v1250 = vld [vmem:[#allocation10 + $0x1f8] sm:$0xff]
    %v1251 = vld [vmem:[#allocation10 + $0x200] sm:$0xff]
    %v1252 = vld [vmem:[#allocation10 + $0x208] sm:$0xff]
    %v1253 = vld [vmem:[#allocation10 + $0x210] sm:$0xff]
    %v1254 = vld [vmem:[#allocation10 + $0x218] sm:$0xff]
    %v1255 = vld [vmem:[#allocation10 + $0x220] sm:$0xff]
    %v1256 = vld [vmem:[#allocation10 + $0x228] sm:$0xff]
    %v1257 = vld [vmem:[#allocation10 + $0x230] sm:$0xff]
    %v1258 = vld [vmem:[#allocation10 + $0x238] sm:$0xff]
    %v1259 = vld [vmem:[#allocation10 + $0x240] sm:$0xff]
    %v1260 = vld [vmem:[#allocation10 + $0x248] sm:$0xff]
    %v1261 = vld [vmem:[#allocation10 + $0x250] sm:$0xff]
    %v1262 = vld [vmem:[#allocation10 + $0x258] sm:$0xff]
    %v1263 = vld [vmem:[#allocation10 + $0x260] sm:$0xff]
    %v1264 = vld [vmem:[#allocation10 + $0x268] sm:$0xff]
    %v1265 = vld [vmem:[#allocation10 + $0x270] sm:$0xff]
    %v1266 = vld [vmem:[#allocation10 + $0x278] sm:$0xff]
    %v1267 = vld [vmem:[#allocation10 + $0x280] sm:$0xff]
    %v1268 = vld [vmem:[#allocation10 + $0x288] sm:$0xff]
    %v1269 = vld [vmem:[#allocation10 + $0x290] sm:$0xff]
    %v1270 = vld [vmem:[#allocation10 + $0x298] sm:$0xff]
    %v1271 = vld [vmem:[#allocation10 + $0x2a0] sm:$0xff]
    %v1272 = vld [vmem:[#allocation10 + $0x2a8] sm:$0xff]
    %v1273 = vld [vmem:[#allocation10 + $0x2b0] sm:$0xff]
    %v1274 = vld [vmem:[#allocation10 + $0x2b8] sm:$0xff]
    %v1275 = vld [vmem:[#allocation10 + $0x2c0] sm:$0xff]
    %v1276 = vld [vmem:[#allocation10 + $0x2c8] sm:$0xff]
    %v1277 = vld [vmem:[#allocation10 + $0x2d0] sm:$0xff]
    %v1278 = vld [vmem:[#allocation10 + $0x2d8] sm:$0xff]
    %v1279 = vld [vmem:[#allocation10 + $0x2e0] sm:$0xff]
    %v1280 = vld [vmem:[#allocation10 + $0x2e8] sm:$0xff]
    %v1281 = vld [vmem:[#allocation10 + $0x2f0] sm:$0xff]
    %v1282 = vld [vmem:[#allocation10 + $0x2f8] sm:$0xff]
    %v1283 = vld [vmem:[#allocation10 + $0x300] sm:$0xff]
    %v1284 = vld [vmem:[#allocation10 + $0x308] sm:$0xff]
    %v1285 = vld [vmem:[#allocation10 + $0x310] sm:$0xff]
    %v1286 = vld [vmem:[#allocation10 + $0x318] sm:$0xff]
    %v1287 = vld [vmem:[#allocation10 + $0x320] sm:$0xff]
    %v1288 = vld [vmem:[#allocation10 + $0x328] sm:$0xff]
    %v1289 = vld [vmem:[#allocation10 + $0x330] sm:$0xff]
    %v1290 = vld [vmem:[#allocation10 + $0x338] sm:$0xff]
    %v1291 = vld [vmem:[#allocation10 + $0x340] sm:$0xff]
    %v1292 = vld [vmem:[#allocation10 + $0x348] sm:$0xff]
    %v1293 = vld [vmem:[#allocation10 + $0x350] sm:$0xff]
    %v1294 = vld [vmem:[#allocation10 + $0x358] sm:$0xff]
    %v1295 = vld [vmem:[#allocation10 + $0x360] sm:$0xff]
    %v1296 = vld [vmem:[#allocation10 + $0x368] sm:$0xff]
    %v1297 = vld [vmem:[#allocation10 + $0x370] sm:$0xff]
    %v1298 = vld [vmem:[#allocation10 + $0x378] sm:$0xff]
    %v1299 = vld [vmem:[#allocation10 + $0x380] sm:$0xff]
    %v1300 = vld [vmem:[#allocation10 + $0x388] sm:$0xff]
    %v1301 = vld [vmem:[#allocation10 + $0x390] sm:$0xff]
    %v1302 = vld [vmem:[#allocation10 + $0x398] sm:$0xff]
    %v1303 = vld [vmem:[#allocation10 + $0x3a0] sm:$0xff]
    %v1304 = vld [vmem:[#allocation10 + $0x3a8] sm:$0xff]
    %v1305 = vld [vmem:[#allocation10 + $0x3b0] sm:$0xff]
    %v1306 = vld [vmem:[#allocation10 + $0x3b8] sm:$0xff]
    %v1307 = vld [vmem:[#allocation10 + $0x3c0] sm:$0xff]
    %v1308 = vld [vmem:[#allocation10 + $0x3c8] sm:$0xff]
    %v1309 = vld [vmem:[#allocation10 + $0x3d0] sm:$0xff]
    %v1310 = vld [vmem:[#allocation10 + $0x3d8] sm:$0xff]
    %v1311 = vld [vmem:[#allocation10 + $0x3e0] sm:$0xff]
    %v1312 = vld [vmem:[#allocation10 + $0x3e8] sm:$0xff]
    %v1313 = vld [vmem:[#allocation10 + $0x3f0] sm:$0xff]
    %v1314 = vld [vmem:[#allocation10 + $0x3f8] sm:$0xff]
    %v1315 = vld [vmem:[#allocation10 + $0x400] sm:$0xff]
    %v1316 = vld [vmem:[#allocation10 + $0x408] sm:$0xff]
    %v1317 = vld [vmem:[#allocation10 + $0x410] sm:$0xff]
    %v1318 = vld [vmem:[#allocation10 + $0x418] sm:$0xff]
    %v1319 = vld [vmem:[#allocation10 + $0x420] sm:$0xff]
    %v1320 = vld [vmem:[#allocation10 + $0x428] sm:$0xff]
    %v1321 = vld [vmem:[#allocation10 + $0x430] sm:$0xff]
    %v1322 = vld [vmem:[#allocation10 + $0x438] sm:$0xff]
    %v1323 = vld [vmem:[#allocation10 + $0x440] sm:$0xff]
    %v1324 = vld [vmem:[#allocation10 + $0x448] sm:$0xff]
    %v1325 = vld [vmem:[#allocation10 + $0x450] sm:$0xff]
    %v1326 = vld [vmem:[#allocation10 + $0x458] sm:$0xff]
    %v1327 = vld [vmem:[#allocation10 + $0x460] sm:$0xff]
    %v1328 = vld [vmem:[#allocation10 + $0x468] sm:$0xff]
    %v1329 = vld [vmem:[#allocation10 + $0x470] sm:$0xff]
    %v1330 = vld [vmem:[#allocation10 + $0x478] sm:$0xff]
    %v1331 = vld [vmem:[#allocation10 + $0x480] sm:$0xff]
    %v1332 = vld [vmem:[#allocation10 + $0x488] sm:$0xff]
    %v1333 = vld [vmem:[#allocation10 + $0x490] sm:$0xff]
    %v1334 = vld [vmem:[#allocation10 + $0x498] sm:$0xff]
    %v1335 = vld [vmem:[#allocation10 + $0x4a0] sm:$0xff]
    %v1336 = vld [vmem:[#allocation10 + $0x4a8] sm:$0xff]
    %v1337 = vld [vmem:[#allocation10 + $0x4b0] sm:$0xff]
    %v1338 = vld [vmem:[#allocation10 + $0x4b8] sm:$0xff]
    %v1339 = vld [vmem:[#allocation10 + $0x4c0] sm:$0xff]
    %v1340 = vld [vmem:[#allocation10 + $0x4c8] sm:$0xff]
    %v1341 = vld [vmem:[#allocation10 + $0x4d0] sm:$0xff]
    %v1342 = vld [vmem:[#allocation10 + $0x4d8] sm:$0xff]
    %v1343 = vld [vmem:[#allocation10 + $0x4e0] sm:$0xff]
    %v1344 = vld [vmem:[#allocation10 + $0x4e8] sm:$0xff]
    %v1345 = vld [vmem:[#allocation10 + $0x4f0] sm:$0xff]
    %v1346 = vld [vmem:[#allocation10 + $0x4f8] sm:$0xff]
    %v1347 = vld [vmem:[#allocation10 + $0x500] sm:$0xff]
    %v1348 = vld [vmem:[#allocation10 + $0x508] sm:$0xff]
    %v1349 = vld [vmem:[#allocation10 + $0x510] sm:$0xff]
    %v1350 = vld [vmem:[#allocation10 + $0x518] sm:$0xff]
    %v1351 = vld [vmem:[#allocation10 + $0x520] sm:$0xff]
    %v1352 = vld [vmem:[#allocation10 + $0x528] sm:$0xff]
    %v1353 = vld [vmem:[#allocation10 + $0x530] sm:$0xff]
    %v1354 = vld [vmem:[#allocation10 + $0x538] sm:$0xff]
    %v1355 = vld [vmem:[#allocation10 + $0x540] sm:$0xff]
    %v1356 = vld [vmem:[#allocation10 + $0x548] sm:$0xff]
    %v1357 = vld [vmem:[#allocation10 + $0x550] sm:$0xff]
    %v1358 = vld [vmem:[#allocation10 + $0x558] sm:$0xff]
    %v1359 = vld [vmem:[#allocation10 + $0x560] sm:$0xff]
    %v1360 = vld [vmem:[#allocation10 + $0x568] sm:$0xff]
    %v1361 = vld [vmem:[#allocation10 + $0x570] sm:$0xff]
    %v1362 = vld [vmem:[#allocation10 + $0x578] sm:$0xff]
    %v1363 = vld [vmem:[#allocation10 + $0x580] sm:$0xff]
    %v1364 = vld [vmem:[#allocation10 + $0x588] sm:$0xff]
    %v1365 = vld [vmem:[#allocation10 + $0x590] sm:$0xff]
    %v1366 = vld [vmem:[#allocation10 + $0x598] sm:$0xff]
    %v1367 = vld [vmem:[#allocation10 + $0x5a0] sm:$0xff]
    %v1368 = vld [vmem:[#allocation10 + $0x5a8] sm:$0xff]
    %v1369 = vld [vmem:[#allocation10 + $0x5b0] sm:$0xff]
    %v1370 = vld [vmem:[#allocation10 + $0x5b8] sm:$0xff]
    %v1371 = vld [vmem:[#allocation10 + $0x5c0] sm:$0xff]
    %v1372 = vld [vmem:[#allocation10 + $0x5c8] sm:$0xff]
    %v1373 = vld [vmem:[#allocation10 + $0x5d0] sm:$0xff]
    %v1374 = vld [vmem:[#allocation10 + $0x5d8] sm:$0xff]
    %v1375 = vld [vmem:[#allocation10 + $0x5e0] sm:$0xff]
    %v1376 = vld [vmem:[#allocation10 + $0x5e8] sm:$0xff]
    %v1377 = vld [vmem:[#allocation10 + $0x5f0] sm:$0xff]
    %v1378 = vld [vmem:[#allocation10 + $0x5f8] sm:$0xff]
    %v1379 = vld [vmem:[#allocation10 + $0x600] sm:$0xff]
    %v1380 = vld [vmem:[#allocation10 + $0x608] sm:$0xff]
    %v1381 = vld [vmem:[#allocation10 + $0x610] sm:$0xff]
    %v1382 = vld [vmem:[#allocation10 + $0x618] sm:$0xff]
    %v1383 = vld [vmem:[#allocation10 + $0x620] sm:$0xff]
    %v1384 = vld [vmem:[#allocation10 + $0x628] sm:$0xff]
    %v1385 = vld [vmem:[#allocation10 + $0x630] sm:$0xff]
    %v1386 = vld [vmem:[#allocation10 + $0x638] sm:$0xff]
    %v1387 = vld [vmem:[#allocation10 + $0x640] sm:$0xff]
    %v1388 = vld [vmem:[#allocation10 + $0x648] sm:$0xff]
    %v1389 = vld [vmem:[#allocation10 + $0x650] sm:$0xff]
    %v1390 = vld [vmem:[#allocation10 + $0x658] sm:$0xff]
    %v1391 = vld [vmem:[#allocation10 + $0x660] sm:$0xff]
    %v1392 = vld [vmem:[#allocation10 + $0x668] sm:$0xff]
    %v1393 = vld [vmem:[#allocation10 + $0x670] sm:$0xff]
    %v1394 = vld [vmem:[#allocation10 + $0x678] sm:$0xff]
    %v1395 = vld [vmem:[#allocation10 + $0x680] sm:$0xff]
    %v1396 = vld [vmem:[#allocation10 + $0x688] sm:$0xff]
    %v1397 = vld [vmem:[#allocation10 + $0x690] sm:$0xff]
    %v1398 = vld [vmem:[#allocation10 + $0x698] sm:$0xff]
    %v1399 = vld [vmem:[#allocation10 + $0x6a0] sm:$0xff]
    %v1400 = vld [vmem:[#allocation10 + $0x6a8] sm:$0xff]
    %v1401 = vld [vmem:[#allocation10 + $0x6b0] sm:$0xff]
    %v1402 = vld [vmem:[#allocation10 + $0x6b8] sm:$0xff]
    %v1403 = vld [vmem:[#allocation10 + $0x6c0] sm:$0xff]
    %v1404 = vld [vmem:[#allocation10 + $0x6c8] sm:$0xff]
    %v1405 = vld [vmem:[#allocation10 + $0x6d0] sm:$0xff]
    %v1406 = vld [vmem:[#allocation10 + $0x6d8] sm:$0xff]
    %v1407 = vld [vmem:[#allocation10 + $0x6e0] sm:$0xff]
    %v1408 = vld [vmem:[#allocation10 + $0x6e8] sm:$0xff]
    %v1409 = vld [vmem:[#allocation10 + $0x6f0] sm:$0xff]
    %v1410 = vld [vmem:[#allocation10 + $0x6f8] sm:$0xff]
    %v1411 = vld [vmem:[#allocation10 + $0x700] sm:$0xff]
    %v1412 = vld [vmem:[#allocation10 + $0x708] sm:$0xff]
    %v1413 = vld [vmem:[#allocation10 + $0x710] sm:$0xff]
    %v1414 = vld [vmem:[#allocation10 + $0x718] sm:$0xff]
    %v1415 = vld [vmem:[#allocation10 + $0x720] sm:$0xff]
    %v1416 = vld [vmem:[#allocation10 + $0x728] sm:$0xff]
    %v1417 = vld [vmem:[#allocation10 + $0x730] sm:$0xff]
    %v1418 = vld [vmem:[#allocation10 + $0x738] sm:$0xff]
    %v1419 = vld [vmem:[#allocation10 + $0x740] sm:$0xff]
    %v1420 = vld [vmem:[#allocation10 + $0x748] sm:$0xff]
    %v1421 = vld [vmem:[#allocation10 + $0x750] sm:$0xff]
    %v1422 = vld [vmem:[#allocation10 + $0x758] sm:$0xff]
    %v1423 = vld [vmem:[#allocation10 + $0x760] sm:$0xff]
    %v1424 = vld [vmem:[#allocation10 + $0x768] sm:$0xff]
    %v1425 = vld [vmem:[#allocation10 + $0x770] sm:$0xff]
    %v1426 = vld [vmem:[#allocation10 + $0x778] sm:$0xff]
    %v1427 = vld [vmem:[#allocation10 + $0x780] sm:$0xff]
    %v1428 = vld [vmem:[#allocation10 + $0x788] sm:$0xff]
    %v1429 = vld [vmem:[#allocation10 + $0x790] sm:$0xff]
    %v1430 = vld [vmem:[#allocation10 + $0x798] sm:$0xff]
    %v1431 = vld [vmem:[#allocation10 + $0x7a0] sm:$0xff]
    %v1432 = vld [vmem:[#allocation10 + $0x7a8] sm:$0xff]
    %v1433 = vld [vmem:[#allocation10 + $0x7b0] sm:$0xff]
    %v1434 = vld [vmem:[#allocation10 + $0x7b8] sm:$0xff]
    %v1435 = vld [vmem:[#allocation10 + $0x7c0] sm:$0xff]
    %v1436 = vld [vmem:[#allocation10 + $0x7c8] sm:$0xff]
    %v1437 = vld [vmem:[#allocation10 + $0x7d0] sm:$0xff]
    %v1438 = vld [vmem:[#allocation10 + $0x7d8] sm:$0xff]
    %v1439 = vld [vmem:[#allocation10 + $0x7e0] sm:$0xff]
    %v1440 = vld [vmem:[#allocation10 + $0x7e8] sm:$0xff]
    %v1441 = vld [vmem:[#allocation10 + $0x7f0] sm:$0xff]
    %v1442 = vld [vmem:[#allocation10 + $0x7f8] sm:$0xff]
    %v1443 = vld [vmem:[#allocation10 + $0x800] sm:$0xff]
    %v1444 = vld [vmem:[#allocation10 + $0x808] sm:$0xff]
    %v1445 = vld [vmem:[#allocation10 + $0x810] sm:$0xff]
    %v1446 = vld [vmem:[#allocation10 + $0x818] sm:$0xff]
    %v1447 = vld [vmem:[#allocation10 + $0x820] sm:$0xff]
    %v1448 = vld [vmem:[#allocation10 + $0x828] sm:$0xff]
    %v1449 = vld [vmem:[#allocation10 + $0x830] sm:$0xff]
    %v1450 = vld [vmem:[#allocation10 + $0x838] sm:$0xff]
    %v1451 = vld [vmem:[#allocation10 + $0x840] sm:$0xff]
    %v1452 = vld [vmem:[#allocation10 + $0x848] sm:$0xff]
    %v1453 = vld [vmem:[#allocation10 + $0x850] sm:$0xff]
    %v1454 = vld [vmem:[#allocation10 + $0x858] sm:$0xff]
    %v1455 = vld [vmem:[#allocation10 + $0x860] sm:$0xff]
    %v1456 = vld [vmem:[#allocation10 + $0x868] sm:$0xff]
    %v1457 = vld [vmem:[#allocation10 + $0x870] sm:$0xff]
    %v1458 = vld [vmem:[#allocation10 + $0x878] sm:$0xff]
    %v1459 = vld [vmem:[#allocation10 + $0x880] sm:$0xff]
    %v1460 = vld [vmem:[#allocation10 + $0x888] sm:$0xff]
    %v1461 = vld [vmem:[#allocation10 + $0x890] sm:$0xff]
    %v1462 = vld [vmem:[#allocation10 + $0x898] sm:$0xff]
    %v1463 = vld [vmem:[#allocation10 + $0x8a0] sm:$0xff]
    %v1464 = vld [vmem:[#allocation10 + $0x8a8] sm:$0xff]
    %v1465 = vld [vmem:[#allocation10 + $0x8b0] sm:$0xff]
    %v1466 = vld [vmem:[#allocation10 + $0x8b8] sm:$0xff]
    %v1467 = vld [vmem:[#allocation10 + $0x8c0] sm:$0xff]
    %v1468 = vld [vmem:[#allocation10 + $0x8c8] sm:$0xff]
    %v1469 = vld [vmem:[#allocation10 + $0x8d0] sm:$0xff]
    %v1470 = vld [vmem:[#allocation10 + $0x8d8] sm:$0xff]
    %v1471 = vld [vmem:[#allocation10 + $0x8e0] sm:$0xff]
    %v1472 = vld [vmem:[#allocation10 + $0x8e8] sm:$0xff]
    %v1473 = vld [vmem:[#allocation10 + $0x8f0] sm:$0xff]
    %v1474 = vld [vmem:[#allocation10 + $0x8f8] sm:$0xff]
    %v1475 = vld [vmem:[#allocation10 + $0x900] sm:$0xff]
    %v1476 = vld [vmem:[#allocation10 + $0x908] sm:$0xff]
    %v1477 = vld [vmem:[#allocation10 + $0x910] sm:$0xff]
    %v1478 = vld [vmem:[#allocation10 + $0x918] sm:$0xff]
    %v1479 = vld [vmem:[#allocation10 + $0x920] sm:$0xff]
    %v1480 = vld [vmem:[#allocation10 + $0x928] sm:$0xff]
    %v1481 = vld [vmem:[#allocation10 + $0x930] sm:$0xff]
    %v1482 = vld [vmem:[#allocation10 + $0x938] sm:$0xff]
    %v1483 = vld [vmem:[#allocation10 + $0x940] sm:$0xff]
    %v1484 = vld [vmem:[#allocation10 + $0x948] sm:$0xff]
    %v1485 = vld [vmem:[#allocation10 + $0x950] sm:$0xff]
    %v1486 = vld [vmem:[#allocation10 + $0x958] sm:$0xff]
    %v1487 = vld [vmem:[#allocation10 + $0x960] sm:$0xff]
    %v1488 = vld [vmem:[#allocation10 + $0x968] sm:$0xff]
    %v1489 = vld [vmem:[#allocation10 + $0x970] sm:$0xff]
    %v1490 = vld [vmem:[#allocation10 + $0x978] sm:$0xff]
    %v1491 = vld [vmem:[#allocation10 + $0x980] sm:$0xff]
    %v1492 = vld [vmem:[#allocation10 + $0x988] sm:$0xff]
    %v1493 = vld [vmem:[#allocation10 + $0x990] sm:$0xff]
    %v1494 = vld [vmem:[#allocation10 + $0x998] sm:$0xff]
    %v1495 = vld [vmem:[#allocation10 + $0x9a0] sm:$0xff]
    %v1496 = vld [vmem:[#allocation10 + $0x9a8] sm:$0xff]
    %v1497 = vld [vmem:[#allocation10 + $0x9b0] sm:$0xff]
    %v1498 = vld [vmem:[#allocation10 + $0x9b8] sm:$0xff]
    %v1499 = vld [vmem:[#allocation10 + $0x9c0] sm:$0xff]
    %v1500 = vld [vmem:[#allocation10 + $0x9c8] sm:$0xff]
    %v1501 = vld [vmem:[#allocation10 + $0x9d0] sm:$0xff]
    %v1502 = vld [vmem:[#allocation10 + $0x9d8] sm:$0xff]
    %v1503 = vld [vmem:[#allocation10 + $0x9e0] sm:$0xff]
    %v1504 = vld [vmem:[#allocation10 + $0x9e8] sm:$0xff]
    %v1505 = vld [vmem:[#allocation10 + $0x9f0] sm:$0xff]
    %v1506 = vld [vmem:[#allocation10 + $0x9f8] sm:$0xff]
    %v1507 = vld [vmem:[#allocation10 + $0xa00] sm:$0xff]
    %v1508 = vld [vmem:[#allocation10 + $0xa08] sm:$0xff]
    %v1509 = vld [vmem:[#allocation10 + $0xa10] sm:$0xff]
    %v1510 = vld [vmem:[#allocation10 + $0xa18] sm:$0xff]
    %v1511 = vld [vmem:[#allocation10 + $0xa20] sm:$0xff]
    %v1512 = vld [vmem:[#allocation10 + $0xa28] sm:$0xff]
    %v1513 = vld [vmem:[#allocation10 + $0xa30] sm:$0xff]
    %v1514 = vld [vmem:[#allocation10 + $0xa38] sm:$0xff]
    %v1515 = vld [vmem:[#allocation10 + $0xa40] sm:$0xff]
    %v1516 = vld [vmem:[#allocation10 + $0xa48] sm:$0xff]
    %v1517 = vld [vmem:[#allocation10 + $0xa50] sm:$0xff]
    %v1518 = vld [vmem:[#allocation10 + $0xa58] sm:$0xff]
    %v1519 = vld [vmem:[#allocation10 + $0xa60] sm:$0xff]
    %v1520 = vld [vmem:[#allocation10 + $0xa68] sm:$0xff]
    %v1521 = vld [vmem:[#allocation10 + $0xa70] sm:$0xff]
    %v1522 = vld [vmem:[#allocation10 + $0xa78] sm:$0xff]
    %v1523 = vld [vmem:[#allocation10 + $0xa80] sm:$0xff]
    %v1524 = vld [vmem:[#allocation10 + $0xa88] sm:$0xff]
    %v1525 = vld [vmem:[#allocation10 + $0xa90] sm:$0xff]
    %v1526 = vld [vmem:[#allocation10 + $0xa98] sm:$0xff]
    %v1527 = vld [vmem:[#allocation10 + $0xaa0] sm:$0xff]
    %v1528 = vld [vmem:[#allocation10 + $0xaa8] sm:$0xff]
    %v1529 = vld [vmem:[#allocation10 + $0xab0] sm:$0xff]
    %v1530 = vld [vmem:[#allocation10 + $0xab8] sm:$0xff]
    %v1531 = vld [vmem:[#allocation10 + $0xac0] sm:$0xff]
    %v1532 = vld [vmem:[#allocation10 + $0xac8] sm:$0xff]
    %v1533 = vld [vmem:[#allocation10 + $0xad0] sm:$0xff]
    %v1534 = vld [vmem:[#allocation10 + $0xad8] sm:$0xff]
    %v1535 = vld [vmem:[#allocation10 + $0xae0] sm:$0xff]
    %v1536 = vld [vmem:[#allocation10 + $0xae8] sm:$0xff]
    %v1537 = vld [vmem:[#allocation10 + $0xaf0] sm:$0xff]
    %v1538 = vld [vmem:[#allocation10 + $0xaf8] sm:$0xff]
    %v1539 = vld [vmem:[#allocation10 + $0xb00] sm:$0xff]
    %v1540 = vld [vmem:[#allocation10 + $0xb08] sm:$0xff]
    %v1541 = vld [vmem:[#allocation10 + $0xb10] sm:$0xff]
    %v1542 = vld [vmem:[#allocation10 + $0xb18] sm:$0xff]
    %v1543 = vld [vmem:[#allocation10 + $0xb20] sm:$0xff]
    %v1544 = vld [vmem:[#allocation10 + $0xb28] sm:$0xff]
    %v1545 = vld [vmem:[#allocation10 + $0xb30] sm:$0xff]
    %v1546 = vld [vmem:[#allocation10 + $0xb38] sm:$0xff]
    %v1547 = vld [vmem:[#allocation10 + $0xb40] sm:$0xff]
    %v1548 = vld [vmem:[#allocation10 + $0xb48] sm:$0xff]
    %v1549 = vld [vmem:[#allocation10 + $0xb50] sm:$0xff]
    %v1550 = vld [vmem:[#allocation10 + $0xb58] sm:$0xff]
    %v1551 = vld [vmem:[#allocation10 + $0xb60] sm:$0xff]
    %v1552 = vld [vmem:[#allocation10 + $0xb68] sm:$0xff]
    %v1553 = vld [vmem:[#allocation10 + $0xb70] sm:$0xff]
    %v1554 = vld [vmem:[#allocation10 + $0xb78] sm:$0xff]
    %v1555 = vld [vmem:[#allocation10 + $0xb80] sm:$0xff]
    %v1556 = vld [vmem:[#allocation10 + $0xb88] sm:$0xff]
    %v1557 = vld [vmem:[#allocation10 + $0xb90] sm:$0xff]
    %v1558 = vld [vmem:[#allocation10 + $0xb98] sm:$0xff]
    %v1559 = vld [vmem:[#allocation10 + $0xba0] sm:$0xff]
    %v1560 = vld [vmem:[#allocation10 + $0xba8] sm:$0xff]
    %v1561 = vld [vmem:[#allocation10 + $0xbb0] sm:$0xff]
    %v1562 = vld [vmem:[#allocation10 + $0xbb8] sm:$0xff]
    %v1563 = vld [vmem:[#allocation10 + $0xbc0] sm:$0xff]
    %v1564 = vld [vmem:[#allocation10 + $0xbc8] sm:$0xff]
    %v1565 = vld [vmem:[#allocation10 + $0xbd0] sm:$0xff]
    %v1566 = vld [vmem:[#allocation10 + $0xbd8] sm:$0xff]
    %v1567 = vld [vmem:[#allocation10 + $0xbe0] sm:$0xff]
    %v1568 = vld [vmem:[#allocation10 + $0xbe8] sm:$0xff]
    %v1569 = vld [vmem:[#allocation10 + $0xbf0] sm:$0xff]
    %v1570 = vld [vmem:[#allocation10 + $0xbf8] sm:$0xff]
    %v1571 = vld [vmem:[#allocation10 + $0xc00] sm:$0xff]
    %v1572 = vld [vmem:[#allocation10 + $0xc08] sm:$0xff]
    %v1573 = vld [vmem:[#allocation10 + $0xc10] sm:$0xff]
    %v1574 = vld [vmem:[#allocation10 + $0xc18] sm:$0xff]
    %v1575 = vld [vmem:[#allocation10 + $0xc20] sm:$0xff]
    %v1576 = vld [vmem:[#allocation10 + $0xc28] sm:$0xff]
    %v1577 = vld [vmem:[#allocation10 + $0xc30] sm:$0xff]
    %v1578 = vld [vmem:[#allocation10 + $0xc38] sm:$0xff]
    %v1579 = vld [vmem:[#allocation10 + $0xc40] sm:$0xff]
    %v1580 = vld [vmem:[#allocation10 + $0xc48] sm:$0xff]
    %v1581 = vld [vmem:[#allocation10 + $0xc50] sm:$0xff]
    %v1582 = vld [vmem:[#allocation10 + $0xc58] sm:$0xff]
    %v1583 = vld [vmem:[#allocation10 + $0xc60] sm:$0xff]
    %v1584 = vld [vmem:[#allocation10 + $0xc68] sm:$0xff]
    %v1585 = vld [vmem:[#allocation10 + $0xc70] sm:$0xff]
    %v1586 = vld [vmem:[#allocation10 + $0xc78] sm:$0xff]
    %v1587 = vld [vmem:[#allocation10 + $0xc80] sm:$0xff]
    %v1588 = vld [vmem:[#allocation10 + $0xc88] sm:$0xff]
    %v1589 = vld [vmem:[#allocation10 + $0xc90] sm:$0xff]
    %v1590 = vld [vmem:[#allocation10 + $0xc98] sm:$0xff]
    %v1591 = vld [vmem:[#allocation10 + $0xca0] sm:$0xff]
    %v1592 = vld [vmem:[#allocation10 + $0xca8] sm:$0xff]
    %v1593 = vld [vmem:[#allocation10 + $0xcb0] sm:$0xff]
    %v1594 = vld [vmem:[#allocation10 + $0xcb8] sm:$0xff]
    %v1595 = vld [vmem:[#allocation10 + $0xcc0] sm:$0xff]
    %v1596 = vld [vmem:[#allocation10 + $0xcc8] sm:$0xff]
    %v1597 = vld [vmem:[#allocation10 + $0xcd0] sm:$0xff]
    %v1598 = vld [vmem:[#allocation10 + $0xcd8] sm:$0xff]
    %v1599 = vld [vmem:[#allocation10 + $0xce0] sm:$0xff]
    %v1600 = vld [vmem:[#allocation10 + $0xce8] sm:$0xff]
    %v1601 = vld [vmem:[#allocation10 + $0xcf0] sm:$0xff]
    %v1602 = vld [vmem:[#allocation10 + $0xcf8] sm:$0xff]
    %v1603 = vld [vmem:[#allocation10 + $0xd00] sm:$0xff]
    %v1604 = vld [vmem:[#allocation10 + $0xd08] sm:$0xff]
    %v1605 = vld [vmem:[#allocation10 + $0xd10] sm:$0xff]
    %v1606 = vld [vmem:[#allocation10 + $0xd18] sm:$0xff]
    %v1607 = vld [vmem:[#allocation10 + $0xd20] sm:$0xff]
    %v1608 = vld [vmem:[#allocation10 + $0xd28] sm:$0xff]
    %v1609 = vld [vmem:[#allocation10 + $0xd30] sm:$0xff]
    %v1610 = vld [vmem:[#allocation10 + $0xd38] sm:$0xff]
    %v1611 = vld [vmem:[#allocation10 + $0xd40] sm:$0xff]
    %v1612 = vld [vmem:[#allocation10 + $0xd48] sm:$0xff]
    %v1613 = vld [vmem:[#allocation10 + $0xd50] sm:$0xff]
    %v1614 = vld [vmem:[#allocation10 + $0xd58] sm:$0xff]
    %v1615 = vld [vmem:[#allocation10 + $0xd60] sm:$0xff]
    %v1616 = vld [vmem:[#allocation10 + $0xd68] sm:$0xff]
    %v1617 = vld [vmem:[#allocation10 + $0xd70] sm:$0xff]
    %v1618 = vld [vmem:[#allocation10 + $0xd78] sm:$0xff]
    %v1619 = vld [vmem:[#allocation10 + $0xd80] sm:$0xff]
    %v1620 = vld [vmem:[#allocation10 + $0xd88] sm:$0xff]
    %v1621 = vld [vmem:[#allocation10 + $0xd90] sm:$0xff]
    %v1622 = vld [vmem:[#allocation10 + $0xd98] sm:$0xff]
    %v1623 = vld [vmem:[#allocation10 + $0xda0] sm:$0xff]
    %v1624 = vld [vmem:[#allocation10 + $0xda8] sm:$0xff]
    %v1625 = vld [vmem:[#allocation10 + $0xdb0] sm:$0xff]
    %v1626 = vld [vmem:[#allocation10 + $0xdb8] sm:$0xff]
    %v1627 = vld [vmem:[#allocation10 + $0xdc0] sm:$0xff]
    %v1628 = vld [vmem:[#allocation10 + $0xdc8] sm:$0xff]
    %v1629 = vld [vmem:[#allocation10 + $0xdd0] sm:$0xff]
    %v1630 = vld [vmem:[#allocation10 + $0xdd8] sm:$0xff]
    %v1631 = vld [vmem:[#allocation10 + $0xde0] sm:$0xff]
    %v1632 = vld [vmem:[#allocation10 + $0xde8] sm:$0xff]
    %v1633 = vld [vmem:[#allocation10 + $0xdf0] sm:$0xff]
    %v1634 = vld [vmem:[#allocation10 + $0xdf8] sm:$0xff]
    %v1635 = vld [vmem:[#allocation12] sm:$0xf]
    %v1637 = vperm.slane %v1635, 0
    %v1638 = vperm.slane %v1635, 1
    %v1639 = vperm.slane %v1635, 2
    %v1640 = vperm.slane %v1635, 3
    %1645 = vmatpush.msra.mxu0 %v1247
    %1646 = vmatpush.msra.mxu0 %v1243
    %1647 = vmatpush.msra.mxu0 %v1239
    %1648 = vmatpush.msra.mxu0 %v1235
    %1649 = vmatpush.msra.mxu0 %v1231
    %1650 = vmatpush.msra.mxu0 %v1227
    %1651 = vmatpush.msra.mxu0 %v1223
    %1652 = vmatpush.msra.mxu0 %v1219
    %1653 = vmatpush.msra.mxu0 %v1215
    %1654 = vmatpush.msra.mxu0 %v1211
    %1655 = vmatpush.msra.mxu0 %v1207
    %1656 = vmatpush.msra.mxu0 %v1203
    %1657 = vmatpush.msra.mxu0 %v1199
    %1658 = vmatpush.msra.mxu0 %v1195
    %1659 = vmatpush.msra.mxu0 %v1191
    %1660 = vmatpush.msra.mxu0 %v1187
    %1661 = vmatmul.f32.gmra.mxu0 %v1173
    %v1662 = vpop.f32.mrf.mxu0
    %v1663 = vadd.f32 %v1637, %v1662
    %1664 = vmatmul.f32.gmra.mxu0 %v1180
    %v1665 = vpop.f32.mrf.mxu0
    %v1666 = vadd.f32 %v1637, %v1665
    %1667 = vdwg.mxu0
    %1668 = vmatpush.msra.mxu0 %v1311
    %1669 = vmatpush.msra.mxu0 %v1307
    %1670 = vmatpush.msra.mxu0 %v1303
    %1671 = vmatpush.msra.mxu0 %v1299
    %1672 = vmatpush.msra.mxu0 %v1295
    %1673 = vmatpush.msra.mxu0 %v1291
    %1674 = vmatpush.msra.mxu0 %v1287
    %1675 = vmatpush.msra.mxu0 %v1283
    %1676 = vmatpush.msra.mxu0 %v1279
    %1677 = vmatpush.msra.mxu0 %v1275
    %1678 = vmatpush.msra.mxu0 %v1271
    %1679 = vmatpush.msra.mxu0 %v1267
    %1680 = vmatpush.msra.mxu0 %v1263
    %1681 = vmatpush.msra.mxu0 %v1259
    %1682 = vmatpush.msra.mxu0 %v1255
    %1683 = vmatpush.msra.mxu0 %v1251
    %1684 = vmatmul.f32.gmra.mxu0 %v1174
    %v1685 = vpop.f32.mrf.mxu0
    %v1686 = vadd.f32 %v1663, %v1685
    %1687 = vmatmul.f32.gmra.mxu0 %v1181
    %v1688 = vpop.f32.mrf.mxu0
    %v1689 = vadd.f32 %v1666, %v1688
    %1690 = vdwg.mxu0
    %1691 = vmatpush.msra.mxu0 %v1375
    %1692 = vmatpush.msra.mxu0 %v1371
    %1693 = vmatpush.msra.mxu0 %v1367
    %1694 = vmatpush.msra.mxu0 %v1363
    %1695 = vmatpush.msra.mxu0 %v1359
    %1696 = vmatpush.msra.mxu0 %v1355
    %1697 = vmatpush.msra.mxu0 %v1351
    %1698 = vmatpush.msra.mxu0 %v1347
    %1699 = vmatpush.msra.mxu0 %v1343
    %1700 = vmatpush.msra.mxu0 %v1339
    %1701 = vmatpush.msra.mxu0 %v1335
    %1702 = vmatpush.msra.mxu0 %v1331
    %1703 = vmatpush.msra.mxu0 %v1327
    %1704 = vmatpush.msra.mxu0 %v1323
    %1705 = vmatpush.msra.mxu0 %v1319
    %1706 = vmatpush.msra.mxu0 %v1315
    %1707 = vmatmul.f32.gmra.mxu0 %v1175
    %v1708 = vpop.f32.mrf.mxu0
    %v1709 = vadd.f32 %v1686, %v1708
    %1710 = vmatmul.f32.gmra.mxu0 %v1182
    %v1711 = vpop.f32.mrf.mxu0
    %v1712 = vadd.f32 %v1689, %v1711
    %1713 = vdwg.mxu0
    %1714 = vmatpush.msra.mxu0 %v1439
    %1715 = vmatpush.msra.mxu0 %v1435
    %1716 = vmatpush.msra.mxu0 %v1431
    %1717 = vmatpush.msra.mxu0 %v1427
    %1718 = vmatpush.msra.mxu0 %v1423
    %1719 = vmatpush.msra.mxu0 %v1419
    %1720 = vmatpush.msra.mxu0 %v1415
    %1721 = vmatpush.msra.mxu0 %v1411
    %1722 = vmatpush.msra.mxu0 %v1407
    %1723 = vmatpush.msra.mxu0 %v1403
    %1724 = vmatpush.msra.mxu0 %v1399
    %1725 = vmatpush.msra.mxu0 %v1395
    %1726 = vmatpush.msra.mxu0 %v1391
    %1727 = vmatpush.msra.mxu0 %v1387
    %1728 = vmatpush.msra.mxu0 %v1383
    %1729 = vmatpush.msra.mxu0 %v1379
    %1730 = vmatmul.f32.gmra.mxu0 %v1176
    %v1731 = vpop.f32.mrf.mxu0
    %v1732 = vadd.f32 %v1709, %v1731
    %1733 = vmatmul.f32.gmra.mxu0 %v1183
    %v1734 = vpop.f32.mrf.mxu0
    %v1735 = vadd.f32 %v1712, %v1734
    %1736 = vdwg.mxu0
    %1737 = vmatpush.msra.mxu0 %v1503
    %1738 = vmatpush.msra.mxu0 %v1499
    %1739 = vmatpush.msra.mxu0 %v1495
    %1740 = vmatpush.msra.mxu0 %v1491
    %1741 = vmatpush.msra.mxu0 %v1487
    %1742 = vmatpush.msra.mxu0 %v1483
    %1743 = vmatpush.msra.mxu0 %v1479
    %1744 = vmatpush.msra.mxu0 %v1475
    %1745 = vmatpush.msra.mxu0 %v1471
    %1746 = vmatpush.msra.mxu0 %v1467
    %1747 = vmatpush.msra.mxu0 %v1463
    %1748 = vmatpush.msra.mxu0 %v1459
    %1749 = vmatpush.msra.mxu0 %v1455
    %1750 = vmatpush.msra.mxu0 %v1451
    %1751 = vmatpush.msra.mxu0 %v1447
    %1752 = vmatpush.msra.mxu0 %v1443
    %1753 = vmatmul.f32.gmra.mxu0 %v1177
    %v1754 = vpop.f32.mrf.mxu0
    %v1755 = vadd.f32 %v1732, %v1754
    %1756 = vmatmul.f32.gmra.mxu0 %v1184
    %v1757 = vpop.f32.mrf.mxu0
    %v1758 = vadd.f32 %v1735, %v1757
    %1759 = vdwg.mxu0
    %1760 = vmatpush.msra.mxu0 %v1567
    %1761 = vmatpush.msra.mxu0 %v1563
    %1762 = vmatpush.msra.mxu0 %v1559
    %1763 = vmatpush.msra.mxu0 %v1555
    %1764 = vmatpush.msra.mxu0 %v1551
    %1765 = vmatpush.msra.mxu0 %v1547
    %1766 = vmatpush.msra.mxu0 %v1543
    %1767 = vmatpush.msra.mxu0 %v1539
    %1768 = vmatpush.msra.mxu0 %v1535
    %1769 = vmatpush.msra.mxu0 %v1531
    %1770 = vmatpush.msra.mxu0 %v1527
    %1771 = vmatpush.msra.mxu0 %v1523
    %1772 = vmatpush.msra.mxu0 %v1519
    %1773 = vmatpush.msra.mxu0 %v1515
    %1774 = vmatpush.msra.mxu0 %v1511
    %1775 = vmatpush.msra.mxu0 %v1507
    %1776 = vmatmul.f32.gmra.mxu0 %v1178
    %v1777 = vpop.f32.mrf.mxu0
    %v1778 = vadd.f32 %v1755, %v1777
    %1779 = vmatmul.f32.gmra.mxu0 %v1185
    %v1780 = vpop.f32.mrf.mxu0
    %v1781 = vadd.f32 %v1758, %v1780
    %1782 = vdwg.mxu0
    %1783 = vmatpush.msra.mxu0 %v1631
    %1784 = vmatpush.msra.mxu0 %v1627
    %1785 = vmatpush.msra.mxu0 %v1623
    %1786 = vmatpush.msra.mxu0 %v1619
    %1787 = vmatpush.msra.mxu0 %v1615
    %1788 = vmatpush.msra.mxu0 %v1611
    %1789 = vmatpush.msra.mxu0 %v1607
    %1790 = vmatpush.msra.mxu0 %v1603
    %1791 = vmatpush.msra.mxu0 %v1599
    %1792 = vmatpush.msra.mxu0 %v1595
    %1793 = vmatpush.msra.mxu0 %v1591
    %1794 = vmatpush.msra.mxu0 %v1587
    %1795 = vmatpush.msra.mxu0 %v1583
    %1796 = vmatpush.msra.mxu0 %v1579
    %1797 = vmatpush.msra.mxu0 %v1575
    %1798 = vmatpush.msra.mxu0 %v1571
    %1799 = vmatmul.f32.gmra.mxu0 %v1179
    %v1800 = vpop.f32.mrf.mxu0
    %v1801 = vadd.f32 %v1778, %v1800
    %1802 = vmatmul.f32.gmra.mxu0 %v1186
    %v1803 = vpop.f32.mrf.mxu0
    %v1804 = vadd.f32 %v1781, %v1803
    %1805 = vdwg.mxu0
    %1806 = vmatpush.msra.mxu0 %v1248
    %1807 = vmatpush.msra.mxu0 %v1244
    %1808 = vmatpush.msra.mxu0 %v1240
    %1809 = vmatpush.msra.mxu0 %v1236
    %1810 = vmatpush.msra.mxu0 %v1232
    %1811 = vmatpush.msra.mxu0 %v1228
    %1812 = vmatpush.msra.mxu0 %v1224
    %1813 = vmatpush.msra.mxu0 %v1220
    %1814 = vmatpush.msra.mxu0 %v1216
    %1815 = vmatpush.msra.mxu0 %v1212
    %1816 = vmatpush.msra.mxu0 %v1208
    %1817 = vmatpush.msra.mxu0 %v1204
    %1818 = vmatpush.msra.mxu0 %v1200
    %1819 = vmatpush.msra.mxu0 %v1196
    %1820 = vmatpush.msra.mxu0 %v1192
    %1821 = vmatpush.msra.mxu0 %v1188
    %1822 = vmatmul.f32.gmra.mxu0 %v1173
    %v1823 = vpop.f32.mrf.mxu0
    %v1824 = vadd.f32 %v1638, %v1823
    %1825 = vmatmul.f32.gmra.mxu0 %v1180
    %v1826 = vpop.f32.mrf.mxu0
    %v1827 = vadd.f32 %v1638, %v1826
    %1828 = vdwg.mxu0
    %1829 = vmatpush.msra.mxu0 %v1312
    %1830 = vmatpush.msra.mxu0 %v1308
    %1831 = vmatpush.msra.mxu0 %v1304
    %1832 = vmatpush.msra.mxu0 %v1300
    %1833 = vmatpush.msra.mxu0 %v1296
    %1834 = vmatpush.msra.mxu0 %v1292
    %1835 = vmatpush.msra.mxu0 %v1288
    %1836 = vmatpush.msra.mxu0 %v1284
    %1837 = vmatpush.msra.mxu0 %v1280
    %1838 = vmatpush.msra.mxu0 %v1276
    %1839 = vmatpush.msra.mxu0 %v1272
    %1840 = vmatpush.msra.mxu0 %v1268
    %1841 = vmatpush.msra.mxu0 %v1264
    %1842 = vmatpush.msra.mxu0 %v1260
    %1843 = vmatpush.msra.mxu0 %v1256
    %1844 = vmatpush.msra.mxu0 %v1252
    %1845 = vmatmul.f32.gmra.mxu0 %v1174
    %v1846 = vpop.f32.mrf.mxu0
    %v1847 = vadd.f32 %v1824, %v1846
    %1848 = vmatmul.f32.gmra.mxu0 %v1181
    %v1849 = vpop.f32.mrf.mxu0
    %v1850 = vadd.f32 %v1827, %v1849
    %1851 = vdwg.mxu0
    %1852 = vmatpush.msra.mxu0 %v1376
    %1853 = vmatpush.msra.mxu0 %v1372
    %1854 = vmatpush.msra.mxu0 %v1368
    %1855 = vmatpush.msra.mxu0 %v1364
    %1856 = vmatpush.msra.mxu0 %v1360
    %1857 = vmatpush.msra.mxu0 %v1356
    %1858 = vmatpush.msra.mxu0 %v1352
    %1859 = vmatpush.msra.mxu0 %v1348
    %1860 = vmatpush.msra.mxu0 %v1344
    %1861 = vmatpush.msra.mxu0 %v1340
    %1862 = vmatpush.msra.mxu0 %v1336
    %1863 = vmatpush.msra.mxu0 %v1332
    %1864 = vmatpush.msra.mxu0 %v1328
    %1865 = vmatpush.msra.mxu0 %v1324
    %1866 = vmatpush.msra.mxu0 %v1320
    %1867 = vmatpush.msra.mxu0 %v1316
    %1868 = vmatmul.f32.gmra.mxu0 %v1175
    %v1869 = vpop.f32.mrf.mxu0
    %v1870 = vadd.f32 %v1847, %v1869
    %1871 = vmatmul.f32.gmra.mxu0 %v1182
    %v1872 = vpop.f32.mrf.mxu0
    %v1873 = vadd.f32 %v1850, %v1872
    %1874 = vdwg.mxu0
    %1875 = vmatpush.msra.mxu0 %v1440
    %1876 = vmatpush.msra.mxu0 %v1436
    %1877 = vmatpush.msra.mxu0 %v1432
    %1878 = vmatpush.msra.mxu0 %v1428
    %1879 = vmatpush.msra.mxu0 %v1424
    %1880 = vmatpush.msra.mxu0 %v1420
    %1881 = vmatpush.msra.mxu0 %v1416
    %1882 = vmatpush.msra.mxu0 %v1412
    %1883 = vmatpush.msra.mxu0 %v1408
    %1884 = vmatpush.msra.mxu0 %v1404
    %1885 = vmatpush.msra.mxu0 %v1400
    %1886 = vmatpush.msra.mxu0 %v1396
    %1887 = vmatpush.msra.mxu0 %v1392
    %1888 = vmatpush.msra.mxu0 %v1388
    %1889 = vmatpush.msra.mxu0 %v1384
    %1890 = vmatpush.msra.mxu0 %v1380
    %1891 = vmatmul.f32.gmra.mxu0 %v1176
    %v1892 = vpop.f32.mrf.mxu0
    %v1893 = vadd.f32 %v1870, %v1892
    %1894 = vmatmul.f32.gmra.mxu0 %v1183
    %v1895 = vpop.f32.mrf.mxu0
    %v1896 = vadd.f32 %v1873, %v1895
    %1897 = vdwg.mxu0
    %1898 = vmatpush.msra.mxu0 %v1504
    %1899 = vmatpush.msra.mxu0 %v1500
    %1900 = vmatpush.msra.mxu0 %v1496
    %1901 = vmatpush.msra.mxu0 %v1492
    %1902 = vmatpush.msra.mxu0 %v1488
    %1903 = vmatpush.msra.mxu0 %v1484
    %1904 = vmatpush.msra.mxu0 %v1480
    %1905 = vmatpush.msra.mxu0 %v1476
    %1906 = vmatpush.msra.mxu0 %v1472
    %1907 = vmatpush.msra.mxu0 %v1468
    %1908 = vmatpush.msra.mxu0 %v1464
    %1909 = vmatpush.msra.mxu0 %v1460
    %1910 = vmatpush.msra.mxu0 %v1456
    %1911 = vmatpush.msra.mxu0 %v1452
    %1912 = vmatpush.msra.mxu0 %v1448
    %1913 = vmatpush.msra.mxu0 %v1444
    %1914 = vmatmul.f32.gmra.mxu0 %v1177
    %v1915 = vpop.f32.mrf.mxu0
    %v1916 = vadd.f32 %v1893, %v1915
    %1917 = vmatmul.f32.gmra.mxu0 %v1184
    %v1918 = vpop.f32.mrf.mxu0
    %v1919 = vadd.f32 %v1896, %v1918
    %1920 = vdwg.mxu0
    %1921 = vmatpush.msra.mxu0 %v1568
    %1922 = vmatpush.msra.mxu0 %v1564
    %1923 = vmatpush.msra.mxu0 %v1560
    %1924 = vmatpush.msra.mxu0 %v1556
    %1925 = vmatpush.msra.mxu0 %v1552
    %1926 = vmatpush.msra.mxu0 %v1548
    %1927 = vmatpush.msra.mxu0 %v1544
    %1928 = vmatpush.msra.mxu0 %v1540
    %1929 = vmatpush.msra.mxu0 %v1536
    %1930 = vmatpush.msra.mxu0 %v1532
    %1931 = vmatpush.msra.mxu0 %v1528
    %1932 = vmatpush.msra.mxu0 %v1524
    %1933 = vmatpush.msra.mxu0 %v1520
    %1934 = vmatpush.msra.mxu0 %v1516
    %1935 = vmatpush.msra.mxu0 %v1512
    %1936 = vmatpush.msra.mxu0 %v1508
    %1937 = vmatmul.f32.gmra.mxu0 %v1178
    %v1938 = vpop.f32.mrf.mxu0
    %v1939 = vadd.f32 %v1916, %v1938
    %1940 = vmatmul.f32.gmra.mxu0 %v1185
    %v1941 = vpop.f32.mrf.mxu0
    %v1942 = vadd.f32 %v1919, %v1941
    %1943 = vdwg.mxu0
    %1944 = vmatpush.msra.mxu0 %v1632
    %1945 = vmatpush.msra.mxu0 %v1628
    %1946 = vmatpush.msra.mxu0 %v1624
    %1947 = vmatpush.msra.mxu0 %v1620
    %1948 = vmatpush.msra.mxu0 %v1616
    %1949 = vmatpush.msra.mxu0 %v1612
    %1950 = vmatpush.msra.mxu0 %v1608
    %1951 = vmatpush.msra.mxu0 %v1604
    %1952 = vmatpush.msra.mxu0 %v1600
    %1953 = vmatpush.msra.mxu0 %v1596
    %1954 = vmatpush.msra.mxu0 %v1592
    %1955 = vmatpush.msra.mxu0 %v1588
    %1956 = vmatpush.msra.mxu0 %v1584
    %1957 = vmatpush.msra.mxu0 %v1580
    %1958 = vmatpush.msra.mxu0 %v1576
    %1959 = vmatpush.msra.mxu0 %v1572
    %1960 = vmatmul.f32.gmra.mxu0 %v1179
    %v1961 = vpop.f32.mrf.mxu0
    %v1962 = vadd.f32 %v1939, %v1961
    %1963 = vmatmul.f32.gmra.mxu0 %v1186
    %v1964 = vpop.f32.mrf.mxu0
    %v1965 = vadd.f32 %v1942, %v1964
    %1966 = vdwg.mxu0
    %1967 = vmatpush.msra.mxu0 %v1249
    %1968 = vmatpush.msra.mxu0 %v1245
    %1969 = vmatpush.msra.mxu0 %v1241
    %1970 = vmatpush.msra.mxu0 %v1237
    %1971 = vmatpush.msra.mxu0 %v1233
    %1972 = vmatpush.msra.mxu0 %v1229
    %1973 = vmatpush.msra.mxu0 %v1225
    %1974 = vmatpush.msra.mxu0 %v1221
    %1975 = vmatpush.msra.mxu0 %v1217
    %1976 = vmatpush.msra.mxu0 %v1213
    %1977 = vmatpush.msra.mxu0 %v1209
    %1978 = vmatpush.msra.mxu0 %v1205
    %1979 = vmatpush.msra.mxu0 %v1201
    %1980 = vmatpush.msra.mxu0 %v1197
    %1981 = vmatpush.msra.mxu0 %v1193
    %1982 = vmatpush.msra.mxu0 %v1189
    %1983 = vmatmul.f32.gmra.mxu0 %v1173
    %v1984 = vpop.f32.mrf.mxu0
    %v1985 = vadd.f32 %v1639, %v1984
    %1986 = vmatmul.f32.gmra.mxu0 %v1180
    %v1987 = vpop.f32.mrf.mxu0
    %v1988 = vadd.f32 %v1639, %v1987
    %1989 = vdwg.mxu0
    %1990 = vmatpush.msra.mxu0 %v1313
    %1991 = vmatpush.msra.mxu0 %v1309
    %1992 = vmatpush.msra.mxu0 %v1305
    %1993 = vmatpush.msra.mxu0 %v1301
    %1994 = vmatpush.msra.mxu0 %v1297
    %1995 = vmatpush.msra.mxu0 %v1293
    %1996 = vmatpush.msra.mxu0 %v1289
    %1997 = vmatpush.msra.mxu0 %v1285
    %1998 = vmatpush.msra.mxu0 %v1281
    %1999 = vmatpush.msra.mxu0 %v1277
    %2000 = vmatpush.msra.mxu0 %v1273
    %2001 = vmatpush.msra.mxu0 %v1269
    %2002 = vmatpush.msra.mxu0 %v1265
    %2003 = vmatpush.msra.mxu0 %v1261
    %2004 = vmatpush.msra.mxu0 %v1257
    %2005 = vmatpush.msra.mxu0 %v1253
    %2006 = vmatmul.f32.gmra.mxu0 %v1174
    %v2007 = vpop.f32.mrf.mxu0
    %v2008 = vadd.f32 %v1985, %v2007
    %2009 = vmatmul.f32.gmra.mxu0 %v1181
    %v2010 = vpop.f32.mrf.mxu0
    %v2011 = vadd.f32 %v1988, %v2010
    %2012 = vdwg.mxu0
    %2013 = vmatpush.msra.mxu0 %v1377
    %2014 = vmatpush.msra.mxu0 %v1373
    %2015 = vmatpush.msra.mxu0 %v1369
    %2016 = vmatpush.msra.mxu0 %v1365
    %2017 = vmatpush.msra.mxu0 %v1361
    %2018 = vmatpush.msra.mxu0 %v1357
    %2019 = vmatpush.msra.mxu0 %v1353
    %2020 = vmatpush.msra.mxu0 %v1349
    %2021 = vmatpush.msra.mxu0 %v1345
    %2022 = vmatpush.msra.mxu0 %v1341
    %2023 = vmatpush.msra.mxu0 %v1337
    %2024 = vmatpush.msra.mxu0 %v1333
    %2025 = vmatpush.msra.mxu0 %v1329
    %2026 = vmatpush.msra.mxu0 %v1325
    %2027 = vmatpush.msra.mxu0 %v1321
    %2028 = vmatpush.msra.mxu0 %v1317
    %2029 = vmatmul.f32.gmra.mxu0 %v1175
    %v2030 = vpop.f32.mrf.mxu0
    %v2031 = vadd.f32 %v2008, %v2030
    %2032 = vmatmul.f32.gmra.mxu0 %v1182
    %v2033 = vpop.f32.mrf.mxu0
    %v2034 = vadd.f32 %v2011, %v2033
    %2035 = vdwg.mxu0
    %2036 = vmatpush.msra.mxu0 %v1441
    %2037 = vmatpush.msra.mxu0 %v1437
    %2038 = vmatpush.msra.mxu0 %v1433
    %2039 = vmatpush.msra.mxu0 %v1429
    %2040 = vmatpush.msra.mxu0 %v1425
    %2041 = vmatpush.msra.mxu0 %v1421
    %2042 = vmatpush.msra.mxu0 %v1417
    %2043 = vmatpush.msra.mxu0 %v1413
    %2044 = vmatpush.msra.mxu0 %v1409
    %2045 = vmatpush.msra.mxu0 %v1405
    %2046 = vmatpush.msra.mxu0 %v1401
    %2047 = vmatpush.msra.mxu0 %v1397
    %2048 = vmatpush.msra.mxu0 %v1393
    %2049 = vmatpush.msra.mxu0 %v1389
    %2050 = vmatpush.msra.mxu0 %v1385
    %2051 = vmatpush.msra.mxu0 %v1381
    %2052 = vmatmul.f32.gmra.mxu0 %v1176
    %v2053 = vpop.f32.mrf.mxu0
    %v2054 = vadd.f32 %v2031, %v2053
    %2055 = vmatmul.f32.gmra.mxu0 %v1183
    %v2056 = vpop.f32.mrf.mxu0
    %v2057 = vadd.f32 %v2034, %v2056
    %2058 = vdwg.mxu0
    %2059 = vmatpush.msra.mxu0 %v1505
    %2060 = vmatpush.msra.mxu0 %v1501
    %2061 = vmatpush.msra.mxu0 %v1497
    %2062 = vmatpush.msra.mxu0 %v1493
    %2063 = vmatpush.msra.mxu0 %v1489
    %2064 = vmatpush.msra.mxu0 %v1485
    %2065 = vmatpush.msra.mxu0 %v1481
    %2066 = vmatpush.msra.mxu0 %v1477
    %2067 = vmatpush.msra.mxu0 %v1473
    %2068 = vmatpush.msra.mxu0 %v1469
    %2069 = vmatpush.msra.mxu0 %v1465
    %2070 = vmatpush.msra.mxu0 %v1461
    %2071 = vmatpush.msra.mxu0 %v1457
    %2072 = vmatpush.msra.mxu0 %v1453
    %2073 = vmatpush.msra.mxu0 %v1449
    %2074 = vmatpush.msra.mxu0 %v1445
    %2075 = vmatmul.f32.gmra.mxu0 %v1177
    %v2076 = vpop.f32.mrf.mxu0
    %v2077 = vadd.f32 %v2054, %v2076
    %2078 = vmatmul.f32.gmra.mxu0 %v1184
    %v2079 = vpop.f32.mrf.mxu0
    %v2080 = vadd.f32 %v2057, %v2079
    %2081 = vdwg.mxu0
    %2082 = vmatpush.msra.mxu0 %v1569
    %2083 = vmatpush.msra.mxu0 %v1565
    %2084 = vmatpush.msra.mxu0 %v1561
    %2085 = vmatpush.msra.mxu0 %v1557
    %2086 = vmatpush.msra.mxu0 %v1553
    %2087 = vmatpush.msra.mxu0 %v1549
    %2088 = vmatpush.msra.mxu0 %v1545
    %2089 = vmatpush.msra.mxu0 %v1541
    %2090 = vmatpush.msra.mxu0 %v1537
    %2091 = vmatpush.msra.mxu0 %v1533
    %2092 = vmatpush.msra.mxu0 %v1529
    %2093 = vmatpush.msra.mxu0 %v1525
    %2094 = vmatpush.msra.mxu0 %v1521
    %2095 = vmatpush.msra.mxu0 %v1517
    %2096 = vmatpush.msra.mxu0 %v1513
    %2097 = vmatpush.msra.mxu0 %v1509
    %2098 = vmatmul.f32.gmra.mxu0 %v1178
    %v2099 = vpop.f32.mrf.mxu0
    %v2100 = vadd.f32 %v2077, %v2099
    %2101 = vmatmul.f32.gmra.mxu0 %v1185
    %v2102 = vpop.f32.mrf.mxu0
    %v2103 = vadd.f32 %v2080, %v2102
    %2104 = vdwg.mxu0
    %2105 = vmatpush.msra.mxu0 %v1633
    %2106 = vmatpush.msra.mxu0 %v1629
    %2107 = vmatpush.msra.mxu0 %v1625
    %2108 = vmatpush.msra.mxu0 %v1621
    %2109 = vmatpush.msra.mxu0 %v1617
    %2110 = vmatpush.msra.mxu0 %v1613
    %2111 = vmatpush.msra.mxu0 %v1609
    %2112 = vmatpush.msra.mxu0 %v1605
    %2113 = vmatpush.msra.mxu0 %v1601
    %2114 = vmatpush.msra.mxu0 %v1597
    %2115 = vmatpush.msra.mxu0 %v1593
    %2116 = vmatpush.msra.mxu0 %v1589
    %2117 = vmatpush.msra.mxu0 %v1585
    %2118 = vmatpush.msra.mxu0 %v1581
    %2119 = vmatpush.msra.mxu0 %v1577
    %2120 = vmatpush.msra.mxu0 %v1573
    %2121 = vmatmul.f32.gmra.mxu0 %v1179
    %v2122 = vpop.f32.mrf.mxu0
    %v2123 = vadd.f32 %v2100, %v2122
    %2124 = vmatmul.f32.gmra.mxu0 %v1186
    %v2125 = vpop.f32.mrf.mxu0
    %v2126 = vadd.f32 %v2103, %v2125
    %2127 = vdwg.mxu0
    %2128 = vmatpush.msra.mxu0 %v1250
    %2129 = vmatpush.msra.mxu0 %v1246
    %2130 = vmatpush.msra.mxu0 %v1242
    %2131 = vmatpush.msra.mxu0 %v1238
    %2132 = vmatpush.msra.mxu0 %v1234
    %2133 = vmatpush.msra.mxu0 %v1230
    %2134 = vmatpush.msra.mxu0 %v1226
    %2135 = vmatpush.msra.mxu0 %v1222
    %2136 = vmatpush.msra.mxu0 %v1218
    %2137 = vmatpush.msra.mxu0 %v1214
    %2138 = vmatpush.msra.mxu0 %v1210
    %2139 = vmatpush.msra.mxu0 %v1206
    %2140 = vmatpush.msra.mxu0 %v1202
    %2141 = vmatpush.msra.mxu0 %v1198
    %2142 = vmatpush.msra.mxu0 %v1194
    %2143 = vmatpush.msra.mxu0 %v1190
    %2144 = vmatmul.f32.gmra.mxu0 %v1173
    %v2145 = vpop.f32.mrf.mxu0
    %v2146 = vadd.f32 %v1640, %v2145
    %2147 = vmatmul.f32.gmra.mxu0 %v1180
    %v2148 = vpop.f32.mrf.mxu0
    %v2149 = vadd.f32 %v1640, %v2148
    %2150 = vdwg.mxu0
    %2151 = vmatpush.msra.mxu0 %v1314
    %2152 = vmatpush.msra.mxu0 %v1310
    %2153 = vmatpush.msra.mxu0 %v1306
    %2154 = vmatpush.msra.mxu0 %v1302
    %2155 = vmatpush.msra.mxu0 %v1298
    %2156 = vmatpush.msra.mxu0 %v1294
    %2157 = vmatpush.msra.mxu0 %v1290
    %2158 = vmatpush.msra.mxu0 %v1286
    %2159 = vmatpush.msra.mxu0 %v1282
    %2160 = vmatpush.msra.mxu0 %v1278
    %2161 = vmatpush.msra.mxu0 %v1274
    %2162 = vmatpush.msra.mxu0 %v1270
    %2163 = vmatpush.msra.mxu0 %v1266
    %2164 = vmatpush.msra.mxu0 %v1262
    %2165 = vmatpush.msra.mxu0 %v1258
    %2166 = vmatpush.msra.mxu0 %v1254
    %2167 = vmatmul.f32.gmra.mxu0 %v1174
    %v2168 = vpop.f32.mrf.mxu0
    %v2169 = vadd.f32 %v2146, %v2168
    %2170 = vmatmul.f32.gmra.mxu0 %v1181
    %v2171 = vpop.f32.mrf.mxu0
    %v2172 = vadd.f32 %v2149, %v2171
    %2173 = vdwg.mxu0
    %2174 = vmatpush.msra.mxu0 %v1378
    %2175 = vmatpush.msra.mxu0 %v1374
    %2176 = vmatpush.msra.mxu0 %v1370
    %2177 = vmatpush.msra.mxu0 %v1366
    %2178 = vmatpush.msra.mxu0 %v1362
    %2179 = vmatpush.msra.mxu0 %v1358
    %2180 = vmatpush.msra.mxu0 %v1354
    %2181 = vmatpush.msra.mxu0 %v1350
    %2182 = vmatpush.msra.mxu0 %v1346
    %2183 = vmatpush.msra.mxu0 %v1342
    %2184 = vmatpush.msra.mxu0 %v1338
    %2185 = vmatpush.msra.mxu0 %v1334
    %2186 = vmatpush.msra.mxu0 %v1330
    %2187 = vmatpush.msra.mxu0 %v1326
    %2188 = vmatpush.msra.mxu0 %v1322
    %2189 = vmatpush.msra.mxu0 %v1318
    %2190 = vmatmul.f32.gmra.mxu0 %v1175
    %v2191 = vpop.f32.mrf.mxu0
    %v2192 = vadd.f32 %v2169, %v2191
    %2193 = vmatmul.f32.gmra.mxu0 %v1182
    %v2194 = vpop.f32.mrf.mxu0
    %v2195 = vadd.f32 %v2172, %v2194
    %2196 = vdwg.mxu0
    %2197 = vmatpush.msra.mxu0 %v1442
    %2198 = vmatpush.msra.mxu0 %v1438
    %2199 = vmatpush.msra.mxu0 %v1434
    %2200 = vmatpush.msra.mxu0 %v1430
    %2201 = vmatpush.msra.mxu0 %v1426
    %2202 = vmatpush.msra.mxu0 %v1422
    %2203 = vmatpush.msra.mxu0 %v1418
    %2204 = vmatpush.msra.mxu0 %v1414
    %2205 = vmatpush.msra.mxu0 %v1410
    %2206 = vmatpush.msra.mxu0 %v1406
    %2207 = vmatpush.msra.mxu0 %v1402
    %2208 = vmatpush.msra.mxu0 %v1398
    %2209 = vmatpush.msra.mxu0 %v1394
    %2210 = vmatpush.msra.mxu0 %v1390
    %2211 = vmatpush.msra.mxu0 %v1386
    %2212 = vmatpush.msra.mxu0 %v1382
    %2213 = vmatmul.f32.gmra.mxu0 %v1176
    %v2214 = vpop.f32.mrf.mxu0
    %v2215 = vadd.f32 %v2192, %v2214
    %2216 = vmatmul.f32.gmra.mxu0 %v1183
    %v2217 = vpop.f32.mrf.mxu0
    %v2218 = vadd.f32 %v2195, %v2217
    %2219 = vdwg.mxu0
    %2220 = vmatpush.msra.mxu0 %v1506
    %2221 = vmatpush.msra.mxu0 %v1502
    %2222 = vmatpush.msra.mxu0 %v1498
    %2223 = vmatpush.msra.mxu0 %v1494
    %2224 = vmatpush.msra.mxu0 %v1490
    %2225 = vmatpush.msra.mxu0 %v1486
    %2226 = vmatpush.msra.mxu0 %v1482
    %2227 = vmatpush.msra.mxu0 %v1478
    %2228 = vmatpush.msra.mxu0 %v1474
    %2229 = vmatpush.msra.mxu0 %v1470
    %2230 = vmatpush.msra.mxu0 %v1466
    %2231 = vmatpush.msra.mxu0 %v1462
    %2232 = vmatpush.msra.mxu0 %v1458
    %2233 = vmatpush.msra.mxu0 %v1454
    %2234 = vmatpush.msra.mxu0 %v1450
    %2235 = vmatpush.msra.mxu0 %v1446
    %2236 = vmatmul.f32.gmra.mxu0 %v1177
    %v2237 = vpop.f32.mrf.mxu0
    %v2238 = vadd.f32 %v2215, %v2237
    %2239 = vmatmul.f32.gmra.mxu0 %v1184
    %v2240 = vpop.f32.mrf.mxu0
    %v2241 = vadd.f32 %v2218, %v2240
    %2242 = vdwg.mxu0
    %2243 = vmatpush.msra.mxu0 %v1570
    %2244 = vmatpush.msra.mxu0 %v1566
    %2245 = vmatpush.msra.mxu0 %v1562
    %2246 = vmatpush.msra.mxu0 %v1558
    %2247 = vmatpush.msra.mxu0 %v1554
    %2248 = vmatpush.msra.mxu0 %v1550
    %2249 = vmatpush.msra.mxu0 %v1546
    %2250 = vmatpush.msra.mxu0 %v1542
    %2251 = vmatpush.msra.mxu0 %v1538
    %2252 = vmatpush.msra.mxu0 %v1534
    %2253 = vmatpush.msra.mxu0 %v1530
    %2254 = vmatpush.msra.mxu0 %v1526
    %2255 = vmatpush.msra.mxu0 %v1522
    %2256 = vmatpush.msra.mxu0 %v1518
    %2257 = vmatpush.msra.mxu0 %v1514
    %2258 = vmatpush.msra.mxu0 %v1510
    %2259 = vmatmul.f32.gmra.mxu0 %v1178
    %v2260 = vpop.f32.mrf.mxu0
    %v2261 = vadd.f32 %v2238, %v2260
    %2262 = vmatmul.f32.gmra.mxu0 %v1185
    %v2263 = vpop.f32.mrf.mxu0
    %v2264 = vadd.f32 %v2241, %v2263
    %2265 = vdwg.mxu0
    %2266 = vmatpush.msra.mxu0 %v1634
    %2267 = vmatpush.msra.mxu0 %v1630
    %2268 = vmatpush.msra.mxu0 %v1626
    %2269 = vmatpush.msra.mxu0 %v1622
    %2270 = vmatpush.msra.mxu0 %v1618
    %2271 = vmatpush.msra.mxu0 %v1614
    %2272 = vmatpush.msra.mxu0 %v1610
    %2273 = vmatpush.msra.mxu0 %v1606
    %2274 = vmatpush.msra.mxu0 %v1602
    %2275 = vmatpush.msra.mxu0 %v1598
    %2276 = vmatpush.msra.mxu0 %v1594
    %2277 = vmatpush.msra.mxu0 %v1590
    %2278 = vmatpush.msra.mxu0 %v1586
    %2279 = vmatpush.msra.mxu0 %v1582
    %2280 = vmatpush.msra.mxu0 %v1578
    %2281 = vmatpush.msra.mxu0 %v1574
    %2282 = vmatmul.f32.gmra.mxu0 %v1179
    %v2283 = vpop.f32.mrf.mxu0
    %v2284 = vadd.f32 %v2261, %v2283
    %2285 = vmatmul.f32.gmra.mxu0 %v1186
    %v2286 = vpop.f32.mrf.mxu0
    %v2287 = vadd.f32 %v2264, %v2286
    %2288 = vdwg.mxu0
    %v2289 = vmax.f32 %v1801, 0.0
    %v2290 = vmax.f32 %v1962, 0.0
    %v2291 = vmax.f32 %v2123, 0.0
    %v2292 = vmax.f32 %v2284, 0.0
    %v2293 = vmax.f32 %v1804, 0.0
    %v2294 = vmax.f32 %v1965, 0.0
    %v2295 = vmax.f32 %v2126, 0.0
    %v2296 = vmax.f32 %v2287, 0.0
    %v2297 = vld [vmem:[#allocation13] sm:$0xff]
    %v2298 = vld [vmem:[#allocation13 + $0x8] sm:$0xff]
    %v2299 = vld [vmem:[#allocation13 + $0x10] sm:$0xff]
    %v2300 = vld [vmem:[#allocation13 + $0x18] sm:$0xff]
    %v2301 = vld [vmem:[#allocation13 + $0x20] sm:$0xff]
    %v2302 = vld [vmem:[#allocation13 + $0x28] sm:$0xff]
    %v2303 = vld [vmem:[#allocation13 + $0x30] sm:$0xff]
    %v2304 = vld [vmem:[#allocation13 + $0x38] sm:$0xff]
    %v2305 = vld [vmem:[#allocation13 + $0x40] sm:$0xff]
    %v2306 = vld [vmem:[#allocation13 + $0x48] sm:$0xff]
    %v2307 = vld [vmem:[#allocation13 + $0x50] sm:$0xff]
    %v2308 = vld [vmem:[#allocation13 + $0x58] sm:$0xff]
    %v2309 = vld [vmem:[#allocation13 + $0x60] sm:$0xff]
    %v2310 = vld [vmem:[#allocation13 + $0x68] sm:$0xff]
    %v2311 = vld [vmem:[#allocation13 + $0x70] sm:$0xff]
    %v2312 = vld [vmem:[#allocation13 + $0x78] sm:$0xff]
    %v2313 = vld [vmem:[#allocation13 + $0x80] sm:$0xff]
    %v2314 = vld [vmem:[#allocation13 + $0x88] sm:$0xff]
    %v2315 = vld [vmem:[#allocation13 + $0x90] sm:$0xff]
    %v2316 = vld [vmem:[#allocation13 + $0x98] sm:$0xff]
    %v2317 = vld [vmem:[#allocation13 + $0xa0] sm:$0xff]
    %v2318 = vld [vmem:[#allocation13 + $0xa8] sm:$0xff]
    %v2319 = vld [vmem:[#allocation13 + $0xb0] sm:$0xff]
    %v2320 = vld [vmem:[#allocation13 + $0xb8] sm:$0xff]
    %v2321 = vld [vmem:[#allocation13 + $0xc0] sm:$0xff]
    %v2322 = vld [vmem:[#allocation13 + $0xc8] sm:$0xff]
    %v2323 = vld [vmem:[#allocation13 + $0xd0] sm:$0xff]
    %v2324 = vld [vmem:[#allocation13 + $0xd8] sm:$0xff]
    %v2325 = vld [vmem:[#allocation13 + $0xe0] sm:$0xff]
    %v2326 = vld [vmem:[#allocation13 + $0xe8] sm:$0xff]
    %v2327 = vld [vmem:[#allocation13 + $0xf0] sm:$0xff]
    %v2328 = vld [vmem:[#allocation13 + $0xf8] sm:$0xff]
    %v2329 = vld [vmem:[#allocation13 + $0x100] sm:$0xff]
    %v2330 = vld [vmem:[#allocation13 + $0x108] sm:$0xff]
    %v2331 = vld [vmem:[#allocation13 + $0x110] sm:$0xff]
    %v2332 = vld [vmem:[#allocation13 + $0x118] sm:$0xff]
    %v2333 = vld [vmem:[#allocation13 + $0x120] sm:$0xff]
    %v2334 = vld [vmem:[#allocation13 + $0x128] sm:$0xff]
    %v2335 = vld [vmem:[#allocation13 + $0x130] sm:$0xff]
    %v2336 = vld [vmem:[#allocation13 + $0x138] sm:$0xff]
    %v2337 = vld [vmem:[#allocation13 + $0x140] sm:$0xff]
    %v2338 = vld [vmem:[#allocation13 + $0x148] sm:$0xff]
    %v2339 = vld [vmem:[#allocation13 + $0x150] sm:$0xff]
    %v2340 = vld [vmem:[#allocation13 + $0x158] sm:$0xff]
    %v2341 = vld [vmem:[#allocation13 + $0x160] sm:$0xff]
    %v2342 = vld [vmem:[#allocation13 + $0x168] sm:$0xff]
    %v2343 = vld [vmem:[#allocation13 + $0x170] sm:$0xff]
    %v2344 = vld [vmem:[#allocation13 + $0x178] sm:$0xff]
    %v2345 = vld [vmem:[#allocation13 + $0x180] sm:$0xff]
    %v2346 = vld [vmem:[#allocation13 + $0x188] sm:$0xff]
    %v2347 = vld [vmem:[#allocation13 + $0x190] sm:$0xff]
    %v2348 = vld [vmem:[#allocation13 + $0x198] sm:$0xff]
    %v2349 = vld [vmem:[#allocation13 + $0x1a0] sm:$0xff]
    %v2350 = vld [vmem:[#allocation13 + $0x1a8] sm:$0xff]
    %v2351 = vld [vmem:[#allocation13 + $0x1b0] sm:$0xff]
    %v2352 = vld [vmem:[#allocation13 + $0x1b8] sm:$0xff]
    %v2353 = vld [vmem:[#allocation13 + $0x1c0] sm:$0xff]
    %v2354 = vld [vmem:[#allocation13 + $0x1c8] sm:$0xff]
    %v2355 = vld [vmem:[#allocation13 + $0x1d0] sm:$0xff]
    %v2356 = vld [vmem:[#allocation13 + $0x1d8] sm:$0xff]
    %v2357 = vld [vmem:[#allocation13 + $0x1e0] sm:$0xff]
    %v2358 = vld [vmem:[#allocation13 + $0x1e8] sm:$0xff]
    %v2359 = vld [vmem:[#allocation13 + $0x1f0] sm:$0xff]
    %v2360 = vld [vmem:[#allocation13 + $0x1f8] sm:$0xff]
    %v2361 = vld [vmem:[#allocation13 + $0x200] sm:$0xff]
    %v2362 = vld [vmem:[#allocation13 + $0x208] sm:$0xff]
    %v2363 = vld [vmem:[#allocation13 + $0x210] sm:$0xff]
    %v2364 = vld [vmem:[#allocation13 + $0x218] sm:$0xff]
    %v2365 = vld [vmem:[#allocation13 + $0x220] sm:$0xff]
    %v2366 = vld [vmem:[#allocation13 + $0x228] sm:$0xff]
    %v2367 = vld [vmem:[#allocation13 + $0x230] sm:$0xff]
    %v2368 = vld [vmem:[#allocation13 + $0x238] sm:$0xff]
    %v2369 = vld [vmem:[#allocation13 + $0x240] sm:$0xff]
    %v2370 = vld [vmem:[#allocation13 + $0x248] sm:$0xff]
    %v2371 = vld [vmem:[#allocation13 + $0x250] sm:$0xff]
    %v2372 = vld [vmem:[#allocation13 + $0x258] sm:$0xff]
    %v2373 = vld [vmem:[#allocation13 + $0x260] sm:$0xff]
    %v2374 = vld [vmem:[#allocation13 + $0x268] sm:$0xff]
    %v2375 = vld [vmem:[#allocation13 + $0x270] sm:$0xff]
    %v2376 = vld [vmem:[#allocation13 + $0x278] sm:$0xff]
    %v2377 = vld [vmem:[#allocation13 + $0x280] sm:$0xff]
    %v2378 = vld [vmem:[#allocation13 + $0x288] sm:$0xff]
    %v2379 = vld [vmem:[#allocation13 + $0x290] sm:$0xff]
    %v2380 = vld [vmem:[#allocation13 + $0x298] sm:$0xff]
    %v2381 = vld [vmem:[#allocation13 + $0x2a0] sm:$0xff]
    %v2382 = vld [vmem:[#allocation13 + $0x2a8] sm:$0xff]
    %v2383 = vld [vmem:[#allocation13 + $0x2b0] sm:$0xff]
    %v2384 = vld [vmem:[#allocation13 + $0x2b8] sm:$0xff]
    %v2385 = vld [vmem:[#allocation13 + $0x2c0] sm:$0xff]
    %v2386 = vld [vmem:[#allocation13 + $0x2c8] sm:$0xff]
    %v2387 = vld [vmem:[#allocation13 + $0x2d0] sm:$0xff]
    %v2388 = vld [vmem:[#allocation13 + $0x2d8] sm:$0xff]
    %v2389 = vld [vmem:[#allocation13 + $0x2e0] sm:$0xff]
    %v2390 = vld [vmem:[#allocation13 + $0x2e8] sm:$0xff]
    %v2391 = vld [vmem:[#allocation13 + $0x2f0] sm:$0xff]
    %v2392 = vld [vmem:[#allocation13 + $0x2f8] sm:$0xff]
    %v2393 = vld [vmem:[#allocation13 + $0x300] sm:$0xff]
    %v2394 = vld [vmem:[#allocation13 + $0x308] sm:$0xff]
    %v2395 = vld [vmem:[#allocation13 + $0x310] sm:$0xff]
    %v2396 = vld [vmem:[#allocation13 + $0x318] sm:$0xff]
    %v2397 = vld [vmem:[#allocation13 + $0x320] sm:$0xff]
    %v2398 = vld [vmem:[#allocation13 + $0x328] sm:$0xff]
    %v2399 = vld [vmem:[#allocation13 + $0x330] sm:$0xff]
    %v2400 = vld [vmem:[#allocation13 + $0x338] sm:$0xff]
    %v2401 = vld [vmem:[#allocation13 + $0x340] sm:$0xff]
    %v2402 = vld [vmem:[#allocation13 + $0x348] sm:$0xff]
    %v2403 = vld [vmem:[#allocation13 + $0x350] sm:$0xff]
    %v2404 = vld [vmem:[#allocation13 + $0x358] sm:$0xff]
    %v2405 = vld [vmem:[#allocation13 + $0x360] sm:$0xff]
    %v2406 = vld [vmem:[#allocation13 + $0x368] sm:$0xff]
    %v2407 = vld [vmem:[#allocation13 + $0x370] sm:$0xff]
    %v2408 = vld [vmem:[#allocation13 + $0x378] sm:$0xff]
    %v2409 = vld [vmem:[#allocation13 + $0x380] sm:$0xff]
    %v2410 = vld [vmem:[#allocation13 + $0x388] sm:$0xff]
    %v2411 = vld [vmem:[#allocation13 + $0x390] sm:$0xff]
    %v2412 = vld [vmem:[#allocation13 + $0x398] sm:$0xff]
    %v2413 = vld [vmem:[#allocation13 + $0x3a0] sm:$0xff]
    %v2414 = vld [vmem:[#allocation13 + $0x3a8] sm:$0xff]
    %v2415 = vld [vmem:[#allocation13 + $0x3b0] sm:$0xff]
    %v2416 = vld [vmem:[#allocation13 + $0x3b8] sm:$0xff]
    %v2417 = vld [vmem:[#allocation13 + $0x3c0] sm:$0xff]
    %v2418 = vld [vmem:[#allocation13 + $0x3c8] sm:$0xff]
    %v2419 = vld [vmem:[#allocation13 + $0x3d0] sm:$0xff]
    %v2420 = vld [vmem:[#allocation13 + $0x3d8] sm:$0xff]
    %v2421 = vld [vmem:[#allocation13 + $0x3e0] sm:$0xff]
    %v2422 = vld [vmem:[#allocation13 + $0x3e8] sm:$0xff]
    %v2423 = vld [vmem:[#allocation13 + $0x3f0] sm:$0xff]
    %v2424 = vld [vmem:[#allocation13 + $0x3f8] sm:$0xff]
    %v2425 = vld [vmem:[#allocation13 + $0x400] sm:$0xff]
    %v2426 = vld [vmem:[#allocation13 + $0x408] sm:$0xff]
    %v2427 = vld [vmem:[#allocation13 + $0x410] sm:$0xff]
    %v2428 = vld [vmem:[#allocation13 + $0x418] sm:$0xff]
    %v2429 = vld [vmem:[#allocation13 + $0x420] sm:$0xff]
    %v2430 = vld [vmem:[#allocation13 + $0x428] sm:$0xff]
    %v2431 = vld [vmem:[#allocation13 + $0x430] sm:$0xff]
    %v2432 = vld [vmem:[#allocation13 + $0x438] sm:$0xff]
    %v2433 = vld [vmem:[#allocation13 + $0x440] sm:$0xff]
    %v2434 = vld [vmem:[#allocation13 + $0x448] sm:$0xff]
    %v2435 = vld [vmem:[#allocation13 + $0x450] sm:$0xff]
    %v2436 = vld [vmem:[#allocation13 + $0x458] sm:$0xff]
    %v2437 = vld [vmem:[#allocation13 + $0x460] sm:$0xff]
    %v2438 = vld [vmem:[#allocation13 + $0x468] sm:$0xff]
    %v2439 = vld [vmem:[#allocation13 + $0x470] sm:$0xff]
    %v2440 = vld [vmem:[#allocation13 + $0x478] sm:$0xff]
    %v2441 = vld [vmem:[#allocation13 + $0x480] sm:$0xff]
    %v2442 = vld [vmem:[#allocation13 + $0x488] sm:$0xff]
    %v2443 = vld [vmem:[#allocation13 + $0x490] sm:$0xff]
    %v2444 = vld [vmem:[#allocation13 + $0x498] sm:$0xff]
    %v2445 = vld [vmem:[#allocation13 + $0x4a0] sm:$0xff]
    %v2446 = vld [vmem:[#allocation13 + $0x4a8] sm:$0xff]
    %v2447 = vld [vmem:[#allocation13 + $0x4b0] sm:$0xff]
    %v2448 = vld [vmem:[#allocation13 + $0x4b8] sm:$0xff]
    %v2449 = vld [vmem:[#allocation13 + $0x4c0] sm:$0xff]
    %v2450 = vld [vmem:[#allocation13 + $0x4c8] sm:$0xff]
    %v2451 = vld [vmem:[#allocation13 + $0x4d0] sm:$0xff]
    %v2452 = vld [vmem:[#allocation13 + $0x4d8] sm:$0xff]
    %v2453 = vld [vmem:[#allocation13 + $0x4e0] sm:$0xff]
    %v2454 = vld [vmem:[#allocation13 + $0x4e8] sm:$0xff]
    %v2455 = vld [vmem:[#allocation13 + $0x4f0] sm:$0xff]
    %v2456 = vld [vmem:[#allocation13 + $0x4f8] sm:$0xff]
    %v2457 = vld [vmem:[#allocation13 + $0x500] sm:$0xff]
    %v2458 = vld [vmem:[#allocation13 + $0x508] sm:$0xff]
    %v2459 = vld [vmem:[#allocation13 + $0x510] sm:$0xff]
    %v2460 = vld [vmem:[#allocation13 + $0x518] sm:$0xff]
    %v2461 = vld [vmem:[#allocation13 + $0x520] sm:$0xff]
    %v2462 = vld [vmem:[#allocation13 + $0x528] sm:$0xff]
    %v2463 = vld [vmem:[#allocation13 + $0x530] sm:$0xff]
    %v2464 = vld [vmem:[#allocation13 + $0x538] sm:$0xff]
    %v2465 = vld [vmem:[#allocation13 + $0x540] sm:$0xff]
    %v2466 = vld [vmem:[#allocation13 + $0x548] sm:$0xff]
    %v2467 = vld [vmem:[#allocation13 + $0x550] sm:$0xff]
    %v2468 = vld [vmem:[#allocation13 + $0x558] sm:$0xff]
    %v2469 = vld [vmem:[#allocation13 + $0x560] sm:$0xff]
    %v2470 = vld [vmem:[#allocation13 + $0x568] sm:$0xff]
    %v2471 = vld [vmem:[#allocation13 + $0x570] sm:$0xff]
    %v2472 = vld [vmem:[#allocation13 + $0x578] sm:$0xff]
    %v2473 = vld [vmem:[#allocation13 + $0x580] sm:$0xff]
    %v2474 = vld [vmem:[#allocation13 + $0x588] sm:$0xff]
    %v2475 = vld [vmem:[#allocation13 + $0x590] sm:$0xff]
    %v2476 = vld [vmem:[#allocation13 + $0x598] sm:$0xff]
    %v2477 = vld [vmem:[#allocation13 + $0x5a0] sm:$0xff]
    %v2478 = vld [vmem:[#allocation13 + $0x5a8] sm:$0xff]
    %v2479 = vld [vmem:[#allocation13 + $0x5b0] sm:$0xff]
    %v2480 = vld [vmem:[#allocation13 + $0x5b8] sm:$0xff]
    %v2481 = vld [vmem:[#allocation13 + $0x5c0] sm:$0xff]
    %v2482 = vld [vmem:[#allocation13 + $0x5c8] sm:$0xff]
    %v2483 = vld [vmem:[#allocation13 + $0x5d0] sm:$0xff]
    %v2484 = vld [vmem:[#allocation13 + $0x5d8] sm:$0xff]
    %v2485 = vld [vmem:[#allocation13 + $0x5e0] sm:$0xff]
    %v2486 = vld [vmem:[#allocation13 + $0x5e8] sm:$0xff]
    %v2487 = vld [vmem:[#allocation13 + $0x5f0] sm:$0xff]
    %v2488 = vld [vmem:[#allocation13 + $0x5f8] sm:$0xff]
    %v2489 = vld [vmem:[#allocation15] sm:$0x7]
    %v2491 = vperm.slane %v2489, 0
    %v2492 = vperm.slane %v2489, 1
    %v2493 = vperm.slane %v2489, 2
    %2497 = vmatpush.msra.mxu0 %v2342
    %2498 = vmatpush.msra.mxu0 %v2339
    %2499 = vmatpush.msra.mxu0 %v2336
    %2500 = vmatpush.msra.mxu0 %v2333
    %2501 = vmatpush.msra.mxu0 %v2330
    %2502 = vmatpush.msra.mxu0 %v2327
    %2503 = vmatpush.msra.mxu0 %v2324
    %2504 = vmatpush.msra.mxu0 %v2321
    %2505 = vmatpush.msra.mxu0 %v2318
    %2506 = vmatpush.msra.mxu0 %v2315
    %2507 = vmatpush.msra.mxu0 %v2312
    %2508 = vmatpush.msra.mxu0 %v2309
    %2509 = vmatpush.msra.mxu0 %v2306
    %2510 = vmatpush.msra.mxu0 %v2303
    %2511 = vmatpush.msra.mxu0 %v2300
    %2512 = vmatpush.msra.mxu0 %v2297
    %2513 = vmatmul.f32.gmra.mxu0 %v2289
    %v2514 = vpop.f32.mrf.mxu0
    %v2515 = vadd.f32 %v2491, %v2514
    %2516 = vmatmul.f32.gmra.mxu0 %v2293
    %v2517 = vpop.f32.mrf.mxu0
    %v2518 = vadd.f32 %v2491, %v2517
    %2519 = vdwg.mxu0
    %2520 = vmatpush.msra.mxu0 %v2390
    %2521 = vmatpush.msra.mxu0 %v2387
    %2522 = vmatpush.msra.mxu0 %v2384
    %2523 = vmatpush.msra.mxu0 %v2381
    %2524 = vmatpush.msra.mxu0 %v2378
    %2525 = vmatpush.msra.mxu0 %v2375
    %2526 = vmatpush.msra.mxu0 %v2372
    %2527 = vmatpush.msra.mxu0 %v2369
    %2528 = vmatpush.msra.mxu0 %v2366
    %2529 = vmatpush.msra.mxu0 %v2363
    %2530 = vmatpush.msra.mxu0 %v2360
    %2531 = vmatpush.msra.mxu0 %v2357
    %2532 = vmatpush.msra.mxu0 %v2354
    %2533 = vmatpush.msra.mxu0 %v2351
    %2534 = vmatpush.msra.mxu0 %v2348
    %2535 = vmatpush.msra.mxu0 %v2345
    %2536 = vmatmul.f32.gmra.mxu0 %v2290
    %v2537 = vpop.f32.mrf.mxu0
    %v2538 = vadd.f32 %v2515, %v2537
    %2539 = vmatmul.f32.gmra.mxu0 %v2294
    %v2540 = vpop.f32.mrf.mxu0
    %v2541 = vadd.f32 %v2518, %v2540
    %2542 = vdwg.mxu0
    %2543 = vmatpush.msra.mxu0 %v2438
    %2544 = vmatpush.msra.mxu0 %v2435
    %2545 = vmatpush.msra.mxu0 %v2432
    %2546 = vmatpush.msra.mxu0 %v2429
    %2547 = vmatpush.msra.mxu0 %v2426
    %2548 = vmatpush.msra.mxu0 %v2423
    %2549 = vmatpush.msra.mxu0 %v2420
    %2550 = vmatpush.msra.mxu0 %v2417
    %2551 = vmatpush.msra.mxu0 %v2414
    %2552 = vmatpush.msra.mxu0 %v2411
    %2553 = vmatpush.msra.mxu0 %v2408
    %2554 = vmatpush.msra.mxu0 %v2405
    %2555 = vmatpush.msra.mxu0 %v2402
    %2556 = vmatpush.msra.mxu0 %v2399
    %2557 = vmatpush.msra.mxu0 %v2396
    %2558 = vmatpush.msra.mxu0 %v2393
    %2559 = vmatmul.f32.gmra.mxu0 %v2291
    %v2560 = vpop.f32.mrf.mxu0
    %v2561 = vadd.f32 %v2538, %v2560
    %2562 = vmatmul.f32.gmra.mxu0 %v2295
    %v2563 = vpop.f32.mrf.mxu0
    %v2564 = vadd.f32 %v2541, %v2563
    %2565 = vdwg.mxu0
    %2566 = vmatpush.msra.mxu0 %v2486
    %2567 = vmatpush.msra.mxu0 %v2483
    %2568 = vmatpush.msra.mxu0 %v2480
    %2569 = vmatpush.msra.mxu0 %v2477
    %2570 = vmatpush.msra.mxu0 %v2474
    %2571 = vmatpush.msra.mxu0 %v2471
    %2572 = vmatpush.msra.mxu0 %v2468
    %2573 = vmatpush.msra.mxu0 %v2465
    %2574 = vmatpush.msra.mxu0 %v2462
    %2575 = vmatpush.msra.mxu0 %v2459
    %2576 = vmatpush.msra.mxu0 %v2456
    %2577 = vmatpush.msra.mxu0 %v2453
    %2578 = vmatpush.msra.mxu0 %v2450
    %2579 = vmatpush.msra.mxu0 %v2447
    %2580 = vmatpush.msra.mxu0 %v2444
    %2581 = vmatpush.msra.mxu0 %v2441
    %2582 = vmatmul.f32.gmra.mxu0 %v2292
    %v2583 = vpop.f32.mrf.mxu0
    %v2584 = vadd.f32 %v2561, %v2583
    %2585 = vmatmul.f32.gmra.mxu0 %v2296
    %v2586 = vpop.f32.mrf.mxu0
    %v2587 = vadd.f32 %v2564, %v2586
    %2588 = vdwg.mxu0
    %2589 = vmatpush.msra.mxu0 %v2343
    %2590 = vmatpush.msra.mxu0 %v2340
    %2591 = vmatpush.msra.mxu0 %v2337
    %2592 = vmatpush.msra.mxu0 %v2334
    %2593 = vmatpush.msra.mxu0 %v2331
    %2594 = vmatpush.msra.mxu0 %v2328
    %2595 = vmatpush.msra.mxu0 %v2325
    %2596 = vmatpush.msra.mxu0 %v2322
    %2597 = vmatpush.msra.mxu0 %v2319
    %2598 = vmatpush.msra.mxu0 %v2316
    %2599 = vmatpush.msra.mxu0 %v2313
    %2600 = vmatpush.msra.mxu0 %v2310
    %2601 = vmatpush.msra.mxu0 %v2307
    %2602 = vmatpush.msra.mxu0 %v2304
    %2603 = vmatpush.msra.mxu0 %v2301
    %2604 = vmatpush.msra.mxu0 %v2298
    %2605 = vmatmul.f32.gmra.mxu0 %v2289
    %v2606 = vpop.f32.mrf.mxu0
    %v2607 = vadd.f32 %v2492, %v2606
    %2608 = vmatmul.f32.gmra.mxu0 %v2293
    %v2609 = vpop.f32.mrf.mxu0
    %v2610 = vadd.f32 %v2492, %v2609
    %2611 = vdwg.mxu0
    %2612 = vmatpush.msra.mxu0 %v2391
    %2613 = vmatpush.msra.mxu0 %v2388
    %2614 = vmatpush.msra.mxu0 %v2385
    %2615 = vmatpush.msra.mxu0 %v2382
    %2616 = vmatpush.msra.mxu0 %v2379
    %2617 = vmatpush.msra.mxu0 %v2376
    %2618 = vmatpush.msra.mxu0 %v2373
    %2619 = vmatpush.msra.mxu0 %v2370
    %2620 = vmatpush.msra.mxu0 %v2367
    %2621 = vmatpush.msra.mxu0 %v2364
    %2622 = vmatpush.msra.mxu0 %v2361
    %2623 = vmatpush.msra.mxu0 %v2358
    %2624 = vmatpush.msra.mxu0 %v2355
    %2625 = vmatpush.msra.mxu0 %v2352
    %2626 = vmatpush.msra.mxu0 %v2349
    %2627 = vmatpush.msra.mxu0 %v2346
    %2628 = vmatmul.f32.gmra.mxu0 %v2290
    %v2629 = vpop.f32.mrf.mxu0
    %v2630 = vadd.f32 %v2607, %v2629
    %2631 = vmatmul.f32.gmra.mxu0 %v2294
    %v2632 = vpop.f32.mrf.mxu0
    %v2633 = vadd.f32 %v2610, %v2632
    %2634 = vdwg.mxu0
    %2635 = vmatpush.msra.mxu0 %v2439
    %2636 = vmatpush.msra.mxu0 %v2436
    %2637 = vmatpush.msra.mxu0 %v2433
    %2638 = vmatpush.msra.mxu0 %v2430
    %2639 = vmatpush.msra.mxu0 %v2427
    %2640 = vmatpush.msra.mxu0 %v2424
    %2641 = vmatpush.msra.mxu0 %v2421
    %2642 = vmatpush.msra.mxu0 %v2418
    %2643 = vmatpush.msra.mxu0 %v2415
    %2644 = vmatpush.msra.mxu0 %v2412
    %2645 = vmatpush.msra.mxu0 %v2409
    %2646 = vmatpush.msra.mxu0 %v2406
    %2647 = vmatpush.msra.mxu0 %v2403
    %2648 = vmatpush.msra.mxu0 %v2400
    %2649 = vmatpush.msra.mxu0 %v2397
    %2650 = vmatpush.msra.mxu0 %v2394
    %2651 = vmatmul.f32.gmra.mxu0 %v2291
    %v2652 = vpop.f32.mrf.mxu0
    %v2653 = vadd.f32 %v2630, %v2652
    %2654 = vmatmul.f32.gmra.mxu0 %v2295
    %v2655 = vpop.f32.mrf.mxu0
    %v2656 = vadd.f32 %v2633, %v2655
    %2657 = vdwg.mxu0
    %2658 = vmatpush.msra.mxu0 %v2487
    %2659 = vmatpush.msra.mxu0 %v2484
    %2660 = vmatpush.msra.mxu0 %v2481
    %2661 = vmatpush.msra.mxu0 %v2478
    %2662 = vmatpush.msra.mxu0 %v2475
    %2663 = vmatpush.msra.mxu0 %v2472
    %2664 = vmatpush.msra.mxu0 %v2469
    %2665 = vmatpush.msra.mxu0 %v2466
    %2666 = vmatpush.msra.mxu0 %v2463
    %2667 = vmatpush.msra.mxu0 %v2460
    %2668 = vmatpush.msra.mxu0 %v2457
    %2669 = vmatpush.msra.mxu0 %v2454
    %2670 = vmatpush.msra.mxu0 %v2451
    %2671 = vmatpush.msra.mxu0 %v2448
    %2672 = vmatpush.msra.mxu0 %v2445
    %2673 = vmatpush.msra.mxu0 %v2442
    %2674 = vmatmul.f32.gmra.mxu0 %v2292
    %v2675 = vpop.f32.mrf.mxu0
    %v2676 = vadd.f32 %v2653, %v2675
    %2677 = vmatmul.f32.gmra.mxu0 %v2296
    %v2678 = vpop.f32.mrf.mxu0
    %v2679 = vadd.f32 %v2656, %v2678
    %2680 = vdwg.mxu0
    %2681 = vmatpush.msra.mxu0 %v2344
    %2682 = vmatpush.msra.mxu0 %v2341
    %2683 = vmatpush.msra.mxu0 %v2338
    %2684 = vmatpush.msra.mxu0 %v2335
    %2685 = vmatpush.msra.mxu0 %v2332
    %2686 = vmatpush.msra.mxu0 %v2329
    %2687 = vmatpush.msra.mxu0 %v2326
    %2688 = vmatpush.msra.mxu0 %v2323
    %2689 = vmatpush.msra.mxu0 %v2320
    %2690 = vmatpush.msra.mxu0 %v2317
    %2691 = vmatpush.msra.mxu0 %v2314
    %2692 = vmatpush.msra.mxu0 %v2311
    %2693 = vmatpush.msra.mxu0 %v2308
    %2694 = vmatpush.msra.mxu0 %v2305
    %2695 = vmatpush.msra.mxu0 %v2302
    %2696 = vmatpush.msra.mxu0 %v2299
    %2697 = vmatmul.f32.gmra.mxu0 %v2289
    %v2698 = vpop.f32.mrf.mxu0
    %v2699 = vadd.f32 %v2493, %v2698
    %2700 = vmatmul.f32.gmra.mxu0 %v2293
    %v2701 = vpop.f32.mrf.mxu0
    %v2702 = vadd.f32 %v2493, %v2701
    %2703 = vdwg.mxu0
    %2704 = vmatpush.msra.mxu0 %v2392
    %2705 = vmatpush.msra.mxu0 %v2389
    %2706 = vmatpush.msra.mxu0 %v2386
    %2707 = vmatpush.msra.mxu0 %v2383
    %2708 = vmatpush.msra.mxu0 %v2380
    %2709 = vmatpush.msra.mxu0 %v2377
    %2710 = vmatpush.msra.mxu0 %v2374
    %2711 = vmatpush.msra.mxu0 %v2371
    %2712 = vmatpush.msra.mxu0 %v2368
    %2713 = vmatpush.msra.mxu0 %v2365
    %2714 = vmatpush.msra.mxu0 %v2362
    %2715 = vmatpush.msra.mxu0 %v2359
    %2716 = vmatpush.msra.mxu0 %v2356
    %2717 = vmatpush.msra.mxu0 %v2353
    %2718 = vmatpush.msra.mxu0 %v2350
    %2719 = vmatpush.msra.mxu0 %v2347
    %2720 = vmatmul.f32.gmra.mxu0 %v2290
    %v2721 = vpop.f32.mrf.mxu0
    %v2722 = vadd.f32 %v2699, %v2721
    %2723 = vmatmul.f32.gmra.mxu0 %v2294
    %v2724 = vpop.f32.mrf.mxu0
    %v2725 = vadd.f32 %v2702, %v2724
    %2726 = vdwg.mxu0
    %2727 = vmatpush.msra.mxu0 %v2440
    %2728 = vmatpush.msra.mxu0 %v2437
    %2729 = vmatpush.msra.mxu0 %v2434
    %2730 = vmatpush.msra.mxu0 %v2431
    %2731 = vmatpush.msra.mxu0 %v2428
    %2732 = vmatpush.msra.mxu0 %v2425
    %2733 = vmatpush.msra.mxu0 %v2422
    %2734 = vmatpush.msra.mxu0 %v2419
    %2735 = vmatpush.msra.mxu0 %v2416
    %2736 = vmatpush.msra.mxu0 %v2413
    %2737 = vmatpush.msra.mxu0 %v2410
    %2738 = vmatpush.msra.mxu0 %v2407
    %2739 = vmatpush.msra.mxu0 %v2404
    %2740 = vmatpush.msra.mxu0 %v2401
    %2741 = vmatpush.msra.mxu0 %v2398
    %2742 = vmatpush.msra.mxu0 %v2395
    %2743 = vmatmul.f32.gmra.mxu0 %v2291
    %v2744 = vpop.f32.mrf.mxu0
    %v2745 = vadd.f32 %v2722, %v2744
    %2746 = vmatmul.f32.gmra.mxu0 %v2295
    %v2747 = vpop.f32.mrf.mxu0
    %v2748 = vadd.f32 %v2725, %v2747
    %2749 = vdwg.mxu0
    %2750 = vmatpush.msra.mxu0 %v2488
    %2751 = vmatpush.msra.mxu0 %v2485
    %2752 = vmatpush.msra.mxu0 %v2482
    %2753 = vmatpush.msra.mxu0 %v2479
    %2754 = vmatpush.msra.mxu0 %v2476
    %2755 = vmatpush.msra.mxu0 %v2473
    %2756 = vmatpush.msra.mxu0 %v2470
    %2757 = vmatpush.msra.mxu0 %v2467
    %2758 = vmatpush.msra.mxu0 %v2464
    %2759 = vmatpush.msra.mxu0 %v2461
    %2760 = vmatpush.msra.mxu0 %v2458
    %2761 = vmatpush.msra.mxu0 %v2455
    %2762 = vmatpush.msra.mxu0 %v2452
    %2763 = vmatpush.msra.mxu0 %v2449
    %2764 = vmatpush.msra.mxu0 %v2446
    %2765 = vmatpush.msra.mxu0 %v2443
    %2766 = vmatmul.f32.gmra.mxu0 %v2292
    %v2767 = vpop.f32.mrf.mxu0
    %v2768 = vadd.f32 %v2745, %v2767
    %2769 = vmatmul.f32.gmra.mxu0 %v2296
    %v2770 = vpop.f32.mrf.mxu0
    %v2771 = vadd.f32 %v2748, %v2770
    %2772 = vdwg.mxu0
    %v2773 = vmax.f32 %v2584, 0.0
    %v2774 = vmax.f32 %v2676, 0.0
    %v2775 = vmax.f32 %v2768, 0.0
    %v2776 = vmax.f32 %v2587, 0.0
    %v2777 = vmax.f32 %v2679, 0.0
    %v2778 = vmax.f32 %v2771, 0.0
    %v2779 = vld [vmem:[#allocation16] sm:$0xff]
    %v2780 = vld [vmem:[#allocation16 + $0x8] sm:$0xff]
    %v2781 = vld [vmem:[#allocation16 + $0x10] sm:$0xff]
    %v2782 = vld [vmem:[#allocation16 + $0x18] sm:$0xff]
    %v2783 = vld [vmem:[#allocation16 + $0x20] sm:$0xff]
    %v2784 = vld [vmem:[#allocation16 + $0x28] sm:$0xff]
    %v2785 = vld [vmem:[#allocation16 + $0x30] sm:$0xff]
    %v2786 = vld [vmem:[#allocation16 + $0x38] sm:$0xff]
    %v2787 = vld [vmem:[#allocation16 + $0x40] sm:$0xff]
    %v2788 = vld [vmem:[#allocation16 + $0x48] sm:$0xff]
    %v2789 = vld [vmem:[#allocation16 + $0x50] sm:$0xff]
    %v2790 = vld [vmem:[#allocation16 + $0x58] sm:$0xff]
    %v2791 = vld [vmem:[#allocation16 + $0x60] sm:$0xff]
    %v2792 = vld [vmem:[#allocation16 + $0x68] sm:$0xff]
    %v2793 = vld [vmem:[#allocation16 + $0x70] sm:$0xff]
    %v2794 = vld [vmem:[#allocation16 + $0x78] sm:$0xff]
    %v2795 = vld [vmem:[#allocation16 + $0x80] sm:$0xff]
    %v2796 = vld [vmem:[#allocation16 + $0x88] sm:$0xff]
    %v2797 = vld [vmem:[#allocation16 + $0x90] sm:$0xff]
    %v2798 = vld [vmem:[#allocation16 + $0x98] sm:$0xff]
    %v2799 = vld [vmem:[#allocation16 + $0xa0] sm:$0xff]
    %v2800 = vld [vmem:[#allocation16 + $0xa8] sm:$0xff]
    %v2801 = vld [vmem:[#allocation16 + $0xb0] sm:$0xff]
    %v2802 = vld [vmem:[#allocation16 + $0xb8] sm:$0xff]
    %v2803 = vld [vmem:[#allocation16 + $0xc0] sm:$0xff]
    %v2804 = vld [vmem:[#allocation16 + $0xc8] sm:$0xff]
    %v2805 = vld [vmem:[#allocation16 + $0xd0] sm:$0xff]
    %v2806 = vld [vmem:[#allocation16 + $0xd8] sm:$0xff]
    %v2807 = vld [vmem:[#allocation16 + $0xe0] sm:$0xff]
    %v2808 = vld [vmem:[#allocation16 + $0xe8] sm:$0xff]
    %v2809 = vld [vmem:[#allocation16 + $0xf0] sm:$0xff]
    %v2810 = vld [vmem:[#allocation16 + $0xf8] sm:$0xff]
    %v2811 = vld [vmem:[#allocation16 + $0x100] sm:$0xff]
    %v2812 = vld [vmem:[#allocation16 + $0x108] sm:$0xff]
    %v2813 = vld [vmem:[#allocation16 + $0x110] sm:$0xff]
    %v2814 = vld [vmem:[#allocation16 + $0x118] sm:$0xff]
    %v2815 = vld [vmem:[#allocation16 + $0x120] sm:$0xff]
    %v2816 = vld [vmem:[#allocation16 + $0x128] sm:$0xff]
    %v2817 = vld [vmem:[#allocation16 + $0x130] sm:$0xff]
    %v2818 = vld [vmem:[#allocation16 + $0x138] sm:$0xff]
    %v2819 = vld [vmem:[#allocation16 + $0x140] sm:$0xff]
    %v2820 = vld [vmem:[#allocation16 + $0x148] sm:$0xff]
    %v2821 = vld [vmem:[#allocation16 + $0x150] sm:$0xff]
    %v2822 = vld [vmem:[#allocation16 + $0x158] sm:$0xff]
    %v2823 = vld [vmem:[#allocation16 + $0x160] sm:$0xff]
    %v2824 = vld [vmem:[#allocation16 + $0x168] sm:$0xff]
    %v2825 = vld [vmem:[#allocation16 + $0x170] sm:$0xff]
    %v2826 = vld [vmem:[#allocation16 + $0x178] sm:$0xff]
    %v2827 = vld [vmem:[#allocation16 + $0x180] sm:$0xff]
    %v2828 = vld [vmem:[#allocation16 + $0x188] sm:$0xff]
    %v2829 = vld [vmem:[#allocation16 + $0x190] sm:$0xff]
    %v2830 = vld [vmem:[#allocation16 + $0x198] sm:$0xff]
    %v2831 = vld [vmem:[#allocation16 + $0x1a0] sm:$0xff]
    %v2832 = vld [vmem:[#allocation16 + $0x1a8] sm:$0xff]
    %v2833 = vld [vmem:[#allocation16 + $0x1b0] sm:$0xff]
    %v2834 = vld [vmem:[#allocation16 + $0x1b8] sm:$0xff]
    %v2835 = vld [vmem:[#allocation16 + $0x1c0] sm:$0xff]
    %v2836 = vld [vmem:[#allocation16 + $0x1c8] sm:$0xff]
    %v2837 = vld [vmem:[#allocation16 + $0x1d0] sm:$0xff]
    %v2838 = vld [vmem:[#allocation16 + $0x1d8] sm:$0xff]
    %v2839 = vld [vmem:[#allocation16 + $0x1e0] sm:$0xff]
    %v2840 = vld [vmem:[#allocation16 + $0x1e8] sm:$0xff]
    %v2841 = vld [vmem:[#allocation16 + $0x1f0] sm:$0xff]
    %v2842 = vld [vmem:[#allocation16 + $0x1f8] sm:$0xff]
    %v2843 = vld [vmem:[#allocation16 + $0x200] sm:$0xff]
    %v2844 = vld [vmem:[#allocation16 + $0x208] sm:$0xff]
    %v2845 = vld [vmem:[#allocation16 + $0x210] sm:$0xff]
    %v2846 = vld [vmem:[#allocation16 + $0x218] sm:$0xff]
    %v2847 = vld [vmem:[#allocation16 + $0x220] sm:$0xff]
    %v2848 = vld [vmem:[#allocation16 + $0x228] sm:$0xff]
    %v2849 = vld [vmem:[#allocation16 + $0x230] sm:$0xff]
    %v2850 = vld [vmem:[#allocation16 + $0x238] sm:$0xff]
    %v2851 = vld [vmem:[#allocation16 + $0x240] sm:$0xff]
    %v2852 = vld [vmem:[#allocation16 + $0x248] sm:$0xff]
    %v2853 = vld [vmem:[#allocation16 + $0x250] sm:$0xff]
    %v2854 = vld [vmem:[#allocation16 + $0x258] sm:$0xff]
    %v2855 = vld [vmem:[#allocation16 + $0x260] sm:$0xff]
    %v2856 = vld [vmem:[#allocation16 + $0x268] sm:$0xff]
    %v2857 = vld [vmem:[#allocation16 + $0x270] sm:$0xff]
    %v2858 = vld [vmem:[#allocation16 + $0x278] sm:$0xff]
    %v2859 = vld [vmem:[#allocation16 + $0x280] sm:$0xff]
    %v2860 = vld [vmem:[#allocation16 + $0x288] sm:$0xff]
    %v2861 = vld [vmem:[#allocation16 + $0x290] sm:$0xff]
    %v2862 = vld [vmem:[#allocation16 + $0x298] sm:$0xff]
    %v2863 = vld [vmem:[#allocation16 + $0x2a0] sm:$0xff]
    %v2864 = vld [vmem:[#allocation16 + $0x2a8] sm:$0xff]
    %v2865 = vld [vmem:[#allocation16 + $0x2b0] sm:$0xff]
    %v2866 = vld [vmem:[#allocation16 + $0x2b8] sm:$0xff]
    %v2867 = vld [vmem:[#allocation16 + $0x2c0] sm:$0xff]
    %v2868 = vld [vmem:[#allocation16 + $0x2c8] sm:$0xff]
    %v2869 = vld [vmem:[#allocation16 + $0x2d0] sm:$0xff]
    %v2870 = vld [vmem:[#allocation16 + $0x2d8] sm:$0xff]
    %v2871 = vld [vmem:[#allocation16 + $0x2e0] sm:$0xff]
    %v2872 = vld [vmem:[#allocation16 + $0x2e8] sm:$0xff]
    %v2873 = vld [vmem:[#allocation16 + $0x2f0] sm:$0xff]
    %v2874 = vld [vmem:[#allocation16 + $0x2f8] sm:$0xff]
    %v2875 = vld [vmem:[#allocation16 + $0x300] sm:$0xff]
    %v2876 = vld [vmem:[#allocation16 + $0x308] sm:$0xff]
    %v2877 = vld [vmem:[#allocation16 + $0x310] sm:$0xff]
    %v2878 = vld [vmem:[#allocation16 + $0x318] sm:$0xff]
    %v2879 = vld [vmem:[#allocation16 + $0x320] sm:$0xff]
    %v2880 = vld [vmem:[#allocation16 + $0x328] sm:$0xff]
    %v2881 = vld [vmem:[#allocation16 + $0x330] sm:$0xff]
    %v2882 = vld [vmem:[#allocation16 + $0x338] sm:$0xff]
    %v2883 = vld [vmem:[#allocation16 + $0x340] sm:$0xff]
    %v2884 = vld [vmem:[#allocation16 + $0x348] sm:$0xff]
    %v2885 = vld [vmem:[#allocation16 + $0x350] sm:$0xff]
    %v2886 = vld [vmem:[#allocation16 + $0x358] sm:$0xff]
    %v2887 = vld [vmem:[#allocation16 + $0x360] sm:$0xff]
    %v2888 = vld [vmem:[#allocation16 + $0x368] sm:$0xff]
    %v2889 = vld [vmem:[#allocation16 + $0x370] sm:$0xff]
    %v2890 = vld [vmem:[#allocation16 + $0x378] sm:$0xff]
    %v2891 = vld [vmem:[#allocation16 + $0x380] sm:$0xff]
    %v2892 = vld [vmem:[#allocation16 + $0x388] sm:$0xff]
    %v2893 = vld [vmem:[#allocation16 + $0x390] sm:$0xff]
    %v2894 = vld [vmem:[#allocation16 + $0x398] sm:$0xff]
    %v2895 = vld [vmem:[#allocation16 + $0x3a0] sm:$0xff]
    %v2896 = vld [vmem:[#allocation16 + $0x3a8] sm:$0xff]
    %v2897 = vld [vmem:[#allocation16 + $0x3b0] sm:$0xff]
    %v2898 = vld [vmem:[#allocation16 + $0x3b8] sm:$0xff]
    %v2899 = vld [vmem:[#allocation16 + $0x3c0] sm:$0xff]
    %v2900 = vld [vmem:[#allocation16 + $0x3c8] sm:$0xff]
    %v2901 = vld [vmem:[#allocation16 + $0x3d0] sm:$0xff]
    %v2902 = vld [vmem:[#allocation16 + $0x3d8] sm:$0xff]
    %v2903 = vld [vmem:[#allocation16 + $0x3e0] sm:$0xff]
    %v2904 = vld [vmem:[#allocation16 + $0x3e8] sm:$0xff]
    %v2905 = vld [vmem:[#allocation16 + $0x3f0] sm:$0xff]
    %v2906 = vld [vmem:[#allocation16 + $0x3f8] sm:$0xff]
    %v2907 = vld [vmem:[#allocation16 + $0x400] sm:$0xff]
    %v2908 = vld [vmem:[#allocation16 + $0x408] sm:$0xff]
    %v2909 = vld [vmem:[#allocation16 + $0x410] sm:$0xff]
    %v2910 = vld [vmem:[#allocation16 + $0x418] sm:$0xff]
    %v2911 = vld [vmem:[#allocation16 + $0x420] sm:$0xff]
    %v2912 = vld [vmem:[#allocation16 + $0x428] sm:$0xff]
    %v2913 = vld [vmem:[#allocation16 + $0x430] sm:$0xff]
    %v2914 = vld [vmem:[#allocation16 + $0x438] sm:$0xff]
    %v2915 = vld [vmem:[#allocation16 + $0x440] sm:$0xff]
    %v2916 = vld [vmem:[#allocation16 + $0x448] sm:$0xff]
    %v2917 = vld [vmem:[#allocation16 + $0x450] sm:$0xff]
    %v2918 = vld [vmem:[#allocation16 + $0x458] sm:$0xff]
    %v2919 = vld [vmem:[#allocation16 + $0x460] sm:$0xff]
    %v2920 = vld [vmem:[#allocation16 + $0x468] sm:$0xff]
    %v2921 = vld [vmem:[#allocation16 + $0x470] sm:$0xff]
    %v2922 = vld [vmem:[#allocation16 + $0x478] sm:$0xff]
    %v2923 = vld [vmem:[#allocation16 + $0x480] sm:$0xff]
    %v2924 = vld [vmem:[#allocation16 + $0x488] sm:$0xff]
    %v2925 = vld [vmem:[#allocation16 + $0x490] sm:$0xff]
    %v2926 = vld [vmem:[#allocation16 + $0x498] sm:$0xff]
    %v2927 = vld [vmem:[#allocation16 + $0x4a0] sm:$0xff]
    %v2928 = vld [vmem:[#allocation16 + $0x4a8] sm:$0xff]
    %v2929 = vld [vmem:[#allocation16 + $0x4b0] sm:$0xff]
    %v2930 = vld [vmem:[#allocation16 + $0x4b8] sm:$0xff]
    %v2931 = vld [vmem:[#allocation16 + $0x4c0] sm:$0xff]
    %v2932 = vld [vmem:[#allocation16 + $0x4c8] sm:$0xff]
    %v2933 = vld [vmem:[#allocation16 + $0x4d0] sm:$0xff]
    %v2934 = vld [vmem:[#allocation16 + $0x4d8] sm:$0xff]
    %v2935 = vld [vmem:[#allocation16 + $0x4e0] sm:$0xff]
    %v2936 = vld [vmem:[#allocation16 + $0x4e8] sm:$0xff]
    %v2937 = vld [vmem:[#allocation16 + $0x4f0] sm:$0xff]
    %v2938 = vld [vmem:[#allocation16 + $0x4f8] sm:$0xff]
    %v2939 = vld [vmem:[#allocation16 + $0x500] sm:$0xff]
    %v2940 = vld [vmem:[#allocation16 + $0x508] sm:$0xff]
    %v2941 = vld [vmem:[#allocation16 + $0x510] sm:$0xff]
    %v2942 = vld [vmem:[#allocation16 + $0x518] sm:$0xff]
    %v2943 = vld [vmem:[#allocation16 + $0x520] sm:$0xff]
    %v2944 = vld [vmem:[#allocation16 + $0x528] sm:$0xff]
    %v2945 = vld [vmem:[#allocation16 + $0x530] sm:$0xff]
    %v2946 = vld [vmem:[#allocation16 + $0x538] sm:$0xff]
    %v2947 = vld [vmem:[#allocation16 + $0x540] sm:$0xff]
    %v2948 = vld [vmem:[#allocation16 + $0x548] sm:$0xff]
    %v2949 = vld [vmem:[#allocation16 + $0x550] sm:$0xff]
    %v2950 = vld [vmem:[#allocation16 + $0x558] sm:$0xff]
    %v2951 = vld [vmem:[#allocation16 + $0x560] sm:$0xff]
    %v2952 = vld [vmem:[#allocation16 + $0x568] sm:$0xff]
    %v2953 = vld [vmem:[#allocation16 + $0x570] sm:$0xff]
    %v2954 = vld [vmem:[#allocation16 + $0x578] sm:$0xff]
    %v2955 = vld [vmem:[#allocation16 + $0x580] sm:$0xff]
    %v2956 = vld [vmem:[#allocation16 + $0x588] sm:$0xff]
    %v2957 = vld [vmem:[#allocation16 + $0x590] sm:$0xff]
    %v2958 = vld [vmem:[#allocation16 + $0x598] sm:$0xff]
    %v2959 = vld [vmem:[#allocation16 + $0x5a0] sm:$0xff]
    %v2960 = vld [vmem:[#allocation16 + $0x5a8] sm:$0xff]
    %v2961 = vld [vmem:[#allocation16 + $0x5b0] sm:$0xff]
    %v2962 = vld [vmem:[#allocation16 + $0x5b8] sm:$0xff]
    %v2963 = vld [vmem:[#allocation16 + $0x5c0] sm:$0xff]
    %v2964 = vld [vmem:[#allocation16 + $0x5c8] sm:$0xff]
    %v2965 = vld [vmem:[#allocation16 + $0x5d0] sm:$0xff]
    %v2966 = vld [vmem:[#allocation16 + $0x5d8] sm:$0xff]
    %v2967 = vld [vmem:[#allocation16 + $0x5e0] sm:$0xff]
    %v2968 = vld [vmem:[#allocation16 + $0x5e8] sm:$0xff]
    %v2969 = vld [vmem:[#allocation16 + $0x5f0] sm:$0xff]
    %v2970 = vld [vmem:[#allocation16 + $0x5f8] sm:$0xff]
    %v2971 = vld [vmem:[#allocation16 + $0x600] sm:$0xff]
    %v2972 = vld [vmem:[#allocation16 + $0x608] sm:$0xff]
    %v2973 = vld [vmem:[#allocation16 + $0x610] sm:$0xff]
    %v2974 = vld [vmem:[#allocation16 + $0x618] sm:$0xff]
    %v2975 = vld [vmem:[#allocation16 + $0x620] sm:$0xff]
    %v2976 = vld [vmem:[#allocation16 + $0x628] sm:$0xff]
    %v2977 = vld [vmem:[#allocation16 + $0x630] sm:$0xff]
    %v2978 = vld [vmem:[#allocation16 + $0x638] sm:$0xff]
    %v2979 = vld [vmem:[#allocation16 + $0x640] sm:$0xff]
    %v2980 = vld [vmem:[#allocation16 + $0x648] sm:$0xff]
    %v2981 = vld [vmem:[#allocation16 + $0x650] sm:$0xff]
    %v2982 = vld [vmem:[#allocation16 + $0x658] sm:$0xff]
    %v2983 = vld [vmem:[#allocation16 + $0x660] sm:$0xff]
    %v2984 = vld [vmem:[#allocation16 + $0x668] sm:$0xff]
    %v2985 = vld [vmem:[#allocation16 + $0x670] sm:$0xff]
    %v2986 = vld [vmem:[#allocation16 + $0x678] sm:$0xff]
    %v2987 = vld [vmem:[#allocation16 + $0x680] sm:$0xff]
    %v2988 = vld [vmem:[#allocation16 + $0x688] sm:$0xff]
    %v2989 = vld [vmem:[#allocation16 + $0x690] sm:$0xff]
    %v2990 = vld [vmem:[#allocation16 + $0x698] sm:$0xff]
    %v2991 = vld [vmem:[#allocation16 + $0x6a0] sm:$0xff]
    %v2992 = vld [vmem:[#allocation16 + $0x6a8] sm:$0xff]
    %v2993 = vld [vmem:[#allocation16 + $0x6b0] sm:$0xff]
    %v2994 = vld [vmem:[#allocation16 + $0x6b8] sm:$0xff]
    %v2995 = vld [vmem:[#allocation16 + $0x6c0] sm:$0xff]
    %v2996 = vld [vmem:[#allocation16 + $0x6c8] sm:$0xff]
    %v2997 = vld [vmem:[#allocation16 + $0x6d0] sm:$0xff]
    %v2998 = vld [vmem:[#allocation16 + $0x6d8] sm:$0xff]
    %v2999 = vld [vmem:[#allocation16 + $0x6e0] sm:$0xff]
    %v3000 = vld [vmem:[#allocation16 + $0x6e8] sm:$0xff]
    %v3001 = vld [vmem:[#allocation16 + $0x6f0] sm:$0xff]
    %v3002 = vld [vmem:[#allocation16 + $0x6f8] sm:$0xff]
    %v3003 = vld [vmem:[#allocation16 + $0x700] sm:$0xff]
    %v3004 = vld [vmem:[#allocation16 + $0x708] sm:$0xff]
    %v3005 = vld [vmem:[#allocation16 + $0x710] sm:$0xff]
    %v3006 = vld [vmem:[#allocation16 + $0x718] sm:$0xff]
    %v3007 = vld [vmem:[#allocation16 + $0x720] sm:$0xff]
    %v3008 = vld [vmem:[#allocation16 + $0x728] sm:$0xff]
    %v3009 = vld [vmem:[#allocation16 + $0x730] sm:$0xff]
    %v3010 = vld [vmem:[#allocation16 + $0x738] sm:$0xff]
    %v3011 = vld [vmem:[#allocation16 + $0x740] sm:$0xff]
    %v3012 = vld [vmem:[#allocation16 + $0x748] sm:$0xff]
    %v3013 = vld [vmem:[#allocation16 + $0x750] sm:$0xff]
    %v3014 = vld [vmem:[#allocation16 + $0x758] sm:$0xff]
    %v3015 = vld [vmem:[#allocation16 + $0x760] sm:$0xff]
    %v3016 = vld [vmem:[#allocation16 + $0x768] sm:$0xff]
    %v3017 = vld [vmem:[#allocation16 + $0x770] sm:$0xff]
    %v3018 = vld [vmem:[#allocation16 + $0x778] sm:$0xff]
    %v3019 = vld [vmem:[#allocation16 + $0x780] sm:$0xff]
    %v3020 = vld [vmem:[#allocation16 + $0x788] sm:$0xff]
    %v3021 = vld [vmem:[#allocation16 + $0x790] sm:$0xff]
    %v3022 = vld [vmem:[#allocation16 + $0x798] sm:$0xff]
    %v3023 = vld [vmem:[#allocation16 + $0x7a0] sm:$0xff]
    %v3024 = vld [vmem:[#allocation16 + $0x7a8] sm:$0xff]
    %v3025 = vld [vmem:[#allocation16 + $0x7b0] sm:$0xff]
    %v3026 = vld [vmem:[#allocation16 + $0x7b8] sm:$0xff]
    %v3027 = vld [vmem:[#allocation16 + $0x7c0] sm:$0xff]
    %v3028 = vld [vmem:[#allocation16 + $0x7c8] sm:$0xff]
    %v3029 = vld [vmem:[#allocation16 + $0x7d0] sm:$0xff]
    %v3030 = vld [vmem:[#allocation16 + $0x7d8] sm:$0xff]
    %v3031 = vld [vmem:[#allocation16 + $0x7e0] sm:$0xff]
    %v3032 = vld [vmem:[#allocation16 + $0x7e8] sm:$0xff]
    %v3033 = vld [vmem:[#allocation16 + $0x7f0] sm:$0xff]
    %v3034 = vld [vmem:[#allocation16 + $0x7f8] sm:$0xff]
    %v3035 = vld [vmem:[#allocation16 + $0x800] sm:$0xff]
    %v3036 = vld [vmem:[#allocation16 + $0x808] sm:$0xff]
    %v3037 = vld [vmem:[#allocation16 + $0x810] sm:$0xff]
    %v3038 = vld [vmem:[#allocation16 + $0x818] sm:$0xff]
    %v3039 = vld [vmem:[#allocation16 + $0x820] sm:$0xff]
    %v3040 = vld [vmem:[#allocation16 + $0x828] sm:$0xff]
    %v3041 = vld [vmem:[#allocation16 + $0x830] sm:$0xff]
    %v3042 = vld [vmem:[#allocation16 + $0x838] sm:$0xff]
    %v3043 = vld [vmem:[#allocation16 + $0x840] sm:$0xff]
    %v3044 = vld [vmem:[#allocation16 + $0x848] sm:$0xff]
    %v3045 = vld [vmem:[#allocation16 + $0x850] sm:$0xff]
    %v3046 = vld [vmem:[#allocation16 + $0x858] sm:$0xff]
    %v3047 = vld [vmem:[#allocation16 + $0x860] sm:$0xff]
    %v3048 = vld [vmem:[#allocation16 + $0x868] sm:$0xff]
    %v3049 = vld [vmem:[#allocation16 + $0x870] sm:$0xff]
    %v3050 = vld [vmem:[#allocation16 + $0x878] sm:$0xff]
    %v3051 = vld [vmem:[#allocation16 + $0x880] sm:$0xff]
    %v3052 = vld [vmem:[#allocation16 + $0x888] sm:$0xff]
    %v3053 = vld [vmem:[#allocation16 + $0x890] sm:$0xff]
    %v3054 = vld [vmem:[#allocation16 + $0x898] sm:$0xff]
    %v3055 = vld [vmem:[#allocation16 + $0x8a0] sm:$0xff]
    %v3056 = vld [vmem:[#allocation16 + $0x8a8] sm:$0xff]
    %v3057 = vld [vmem:[#allocation16 + $0x8b0] sm:$0xff]
    %v3058 = vld [vmem:[#allocation16 + $0x8b8] sm:$0xff]
    %v3059 = vld [vmem:[#allocation16 + $0x8c0] sm:$0xff]
    %v3060 = vld [vmem:[#allocation16 + $0x8c8] sm:$0xff]
    %v3061 = vld [vmem:[#allocation16 + $0x8d0] sm:$0xff]
    %v3062 = vld [vmem:[#allocation16 + $0x8d8] sm:$0xff]
    %v3063 = vld [vmem:[#allocation16 + $0x8e0] sm:$0xff]
    %v3064 = vld [vmem:[#allocation16 + $0x8e8] sm:$0xff]
    %v3065 = vld [vmem:[#allocation16 + $0x8f0] sm:$0xff]
    %v3066 = vld [vmem:[#allocation16 + $0x8f8] sm:$0xff]
    %v3067 = vld [vmem:[#allocation16 + $0x900] sm:$0xff]
    %v3068 = vld [vmem:[#allocation16 + $0x908] sm:$0xff]
    %v3069 = vld [vmem:[#allocation16 + $0x910] sm:$0xff]
    %v3070 = vld [vmem:[#allocation16 + $0x918] sm:$0xff]
    %v3071 = vld [vmem:[#allocation16 + $0x920] sm:$0xff]
    %v3072 = vld [vmem:[#allocation16 + $0x928] sm:$0xff]
    %v3073 = vld [vmem:[#allocation16 + $0x930] sm:$0xff]
    %v3074 = vld [vmem:[#allocation16 + $0x938] sm:$0xff]
    %v3075 = vld [vmem:[#allocation16 + $0x940] sm:$0xff]
    %v3076 = vld [vmem:[#allocation16 + $0x948] sm:$0xff]
    %v3077 = vld [vmem:[#allocation16 + $0x950] sm:$0xff]
    %v3078 = vld [vmem:[#allocation16 + $0x958] sm:$0xff]
    %v3079 = vld [vmem:[#allocation16 + $0x960] sm:$0xff]
    %v3080 = vld [vmem:[#allocation16 + $0x968] sm:$0xff]
    %v3081 = vld [vmem:[#allocation16 + $0x970] sm:$0xff]
    %v3082 = vld [vmem:[#allocation16 + $0x978] sm:$0xff]
    %v3083 = vld [vmem:[#allocation16 + $0x980] sm:$0xff]
    %v3084 = vld [vmem:[#allocation16 + $0x988] sm:$0xff]
    %v3085 = vld [vmem:[#allocation16 + $0x990] sm:$0xff]
    %v3086 = vld [vmem:[#allocation16 + $0x998] sm:$0xff]
    %v3087 = vld [vmem:[#allocation16 + $0x9a0] sm:$0xff]
    %v3088 = vld [vmem:[#allocation16 + $0x9a8] sm:$0xff]
    %v3089 = vld [vmem:[#allocation16 + $0x9b0] sm:$0xff]
    %v3090 = vld [vmem:[#allocation16 + $0x9b8] sm:$0xff]
    %v3091 = vld [vmem:[#allocation16 + $0x9c0] sm:$0xff]
    %v3092 = vld [vmem:[#allocation16 + $0x9c8] sm:$0xff]
    %v3093 = vld [vmem:[#allocation16 + $0x9d0] sm:$0xff]
    %v3094 = vld [vmem:[#allocation16 + $0x9d8] sm:$0xff]
    %v3095 = vld [vmem:[#allocation16 + $0x9e0] sm:$0xff]
    %v3096 = vld [vmem:[#allocation16 + $0x9e8] sm:$0xff]
    %v3097 = vld [vmem:[#allocation16 + $0x9f0] sm:$0xff]
    %v3098 = vld [vmem:[#allocation16 + $0x9f8] sm:$0xff]
    %v3099 = vld [vmem:[#allocation16 + $0xa00] sm:$0xff]
    %v3100 = vld [vmem:[#allocation16 + $0xa08] sm:$0xff]
    %v3101 = vld [vmem:[#allocation16 + $0xa10] sm:$0xff]
    %v3102 = vld [vmem:[#allocation16 + $0xa18] sm:$0xff]
    %v3103 = vld [vmem:[#allocation16 + $0xa20] sm:$0xff]
    %v3104 = vld [vmem:[#allocation16 + $0xa28] sm:$0xff]
    %v3105 = vld [vmem:[#allocation16 + $0xa30] sm:$0xff]
    %v3106 = vld [vmem:[#allocation16 + $0xa38] sm:$0xff]
    %v3107 = vld [vmem:[#allocation16 + $0xa40] sm:$0xff]
    %v3108 = vld [vmem:[#allocation16 + $0xa48] sm:$0xff]
    %v3109 = vld [vmem:[#allocation16 + $0xa50] sm:$0xff]
    %v3110 = vld [vmem:[#allocation16 + $0xa58] sm:$0xff]
    %v3111 = vld [vmem:[#allocation16 + $0xa60] sm:$0xff]
    %v3112 = vld [vmem:[#allocation16 + $0xa68] sm:$0xff]
    %v3113 = vld [vmem:[#allocation16 + $0xa70] sm:$0xff]
    %v3114 = vld [vmem:[#allocation16 + $0xa78] sm:$0xff]
    %v3115 = vld [vmem:[#allocation18] sm:$0xff]
    %v3117 = vperm.slane %v3115, 0
    %v3118 = vperm.slane %v3115, 1
    %v3119 = vperm.slane %v3115, 2
    %v3120 = vperm.slane %v3115, 3
    %v3121 = vperm.slane %v3115, 4
    %v3122 = vperm.slane %v3115, 5
    %v3123 = vperm.slane %v3115, 6
    %3131 = vmatpush.msra.mxu0 %v2884
    %3132 = vmatpush.msra.mxu0 %v2877
    %3133 = vmatpush.msra.mxu0 %v2870
    %3134 = vmatpush.msra.mxu0 %v2863
    %3135 = vmatpush.msra.mxu0 %v2856
    %3136 = vmatpush.msra.mxu0 %v2849
    %3137 = vmatpush.msra.mxu0 %v2842
    %3138 = vmatpush.msra.mxu0 %v2835
    %3139 = vmatpush.msra.mxu0 %v2828
    %3140 = vmatpush.msra.mxu0 %v2821
    %3141 = vmatpush.msra.mxu0 %v2814
    %3142 = vmatpush.msra.mxu0 %v2807
    %3143 = vmatpush.msra.mxu0 %v2800
    %3144 = vmatpush.msra.mxu0 %v2793
    %3145 = vmatpush.msra.mxu0 %v2786
    %3146 = vmatpush.msra.mxu0 %v2779
    %3147 = vmatmul.f32.gmra.mxu0 %v2773
    %v3148 = vpop.f32.mrf.mxu0
    %v3149 = vadd.f32 %v3117, %v3148
    %3150 = vmatmul.f32.gmra.mxu0 %v2776
    %v3151 = vpop.f32.mrf.mxu0
    %v3152 = vadd.f32 %v3117, %v3151
    %3153 = vdwg.mxu0
    %3154 = vmatpush.msra.mxu0 %v2996
    %3155 = vmatpush.msra.mxu0 %v2989
    %3156 = vmatpush.msra.mxu0 %v2982
    %3157 = vmatpush.msra.mxu0 %v2975
    %3158 = vmatpush.msra.mxu0 %v2968
    %3159 = vmatpush.msra.mxu0 %v2961
    %3160 = vmatpush.msra.mxu0 %v2954
    %3161 = vmatpush.msra.mxu0 %v2947
    %3162 = vmatpush.msra.mxu0 %v2940
    %3163 = vmatpush.msra.mxu0 %v2933
    %3164 = vmatpush.msra.mxu0 %v2926
    %3165 = vmatpush.msra.mxu0 %v2919
    %3166 = vmatpush.msra.mxu0 %v2912
    %3167 = vmatpush.msra.mxu0 %v2905
    %3168 = vmatpush.msra.mxu0 %v2898
    %3169 = vmatpush.msra.mxu0 %v2891
    %3170 = vmatmul.f32.gmra.mxu0 %v2774
    %v3171 = vpop.f32.mrf.mxu0
    %v3172 = vadd.f32 %v3149, %v3171
    %3173 = vmatmul.f32.gmra.mxu0 %v2777
    %v3174 = vpop.f32.mrf.mxu0
    %v3175 = vadd.f32 %v3152, %v3174
    %3176 = vdwg.mxu0
    %3177 = vmatpush.msra.mxu0 %v3108
    %3178 = vmatpush.msra.mxu0 %v3101
    %3179 = vmatpush.msra.mxu0 %v3094
    %3180 = vmatpush.msra.mxu0 %v3087
    %3181 = vmatpush.msra.mxu0 %v3080
    %3182 = vmatpush.msra.mxu0 %v3073
    %3183 = vmatpush.msra.mxu0 %v3066
    %3184 = vmatpush.msra.mxu0 %v3059
    %3185 = vmatpush.msra.mxu0 %v3052
    %3186 = vmatpush.msra.mxu0 %v3045
    %3187 = vmatpush.msra.mxu0 %v3038
    %3188 = vmatpush.msra.mxu0 %v3031
    %3189 = vmatpush.msra.mxu0 %v3024
    %3190 = vmatpush.msra.mxu0 %v3017
    %3191 = vmatpush.msra.mxu0 %v3010
    %3192 = vmatpush.msra.mxu0 %v3003
    %3193 = vmatmul.f32.gmra.mxu0 %v2775
    %v3194 = vpop.f32.mrf.mxu0
    %v3195 = vadd.f32 %v3172, %v3194
    %3196 = vmatmul.f32.gmra.mxu0 %v2778
    %v3197 = vpop.f32.mrf.mxu0
    %v3198 = vadd.f32 %v3175, %v3197
    %3199 = vdwg.mxu0
    %3200 = vmatpush.msra.mxu0 %v2885
    %3201 = vmatpush.msra.mxu0 %v2878
    %3202 = vmatpush.msra.mxu0 %v2871
    %3203 = vmatpush.msra.mxu0 %v2864
    %3204 = vmatpush.msra.mxu0 %v2857
    %3205 = vmatpush.msra.mxu0 %v2850
    %3206 = vmatpush.msra.mxu0 %v2843
    %3207 = vmatpush.msra.mxu0 %v2836
    %3208 = vmatpush.msra.mxu0 %v2829
    %3209 = vmatpush.msra.mxu0 %v2822
    %3210 = vmatpush.msra.mxu0 %v2815
    %3211 = vmatpush.msra.mxu0 %v2808
    %3212 = vmatpush.msra.mxu0 %v2801
    %3213 = vmatpush.msra.mxu0 %v2794
    %3214 = vmatpush.msra.mxu0 %v2787
    %3215 = vmatpush.msra.mxu0 %v2780
    %3216 = vmatmul.f32.gmra.mxu0 %v2773
    %v3217 = vpop.f32.mrf.mxu0
    %v3218 = vadd.f32 %v3118, %v3217
    %3219 = vmatmul.f32.gmra.mxu0 %v2776
    %v3220 = vpop.f32.mrf.mxu0
    %v3221 = vadd.f32 %v3118, %v3220
    %3222 = vdwg.mxu0
    %3223 = vmatpush.msra.mxu0 %v2997
    %3224 = vmatpush.msra.mxu0 %v2990
    %3225 = vmatpush.msra.mxu0 %v2983
    %3226 = vmatpush.msra.mxu0 %v2976
    %3227 = vmatpush.msra.mxu0 %v2969
    %3228 = vmatpush.msra.mxu0 %v2962
    %3229 = vmatpush.msra.mxu0 %v2955
    %3230 = vmatpush.msra.mxu0 %v2948
    %3231 = vmatpush.msra.mxu0 %v2941
    %3232 = vmatpush.msra.mxu0 %v2934
    %3233 = vmatpush.msra.mxu0 %v2927
    %3234 = vmatpush.msra.mxu0 %v2920
    %3235 = vmatpush.msra.mxu0 %v2913
    %3236 = vmatpush.msra.mxu0 %v2906
    %3237 = vmatpush.msra.mxu0 %v2899
    %3238 = vmatpush.msra.mxu0 %v2892
    %3239 = vmatmul.f32.gmra.mxu0 %v2774
    %v3240 = vpop.f32.mrf.mxu0
    %v3241 = vadd.f32 %v3218, %v3240
    %3242 = vmatmul.f32.gmra.mxu0 %v2777
    %v3243 = vpop.f32.mrf.mxu0
    %v3244 = vadd.f32 %v3221, %v3243
    %3245 = vdwg.mxu0
    %3246 = vmatpush.msra.mxu0 %v3109
    %3247 = vmatpush.msra.mxu0 %v3102
    %3248 = vmatpush.msra.mxu0 %v3095
    %3249 = vmatpush.msra.mxu0 %v3088
    %3250 = vmatpush.msra.mxu0 %v3081
    %3251 = vmatpush.msra.mxu0 %v3074
    %3252 = vmatpush.msra.mxu0 %v3067
    %3253 = vmatpush.msra.mxu0 %v3060
    %3254 = vmatpush.msra.mxu0 %v3053
    %3255 = vmatpush.msra.mxu0 %v3046
    %3256 = vmatpush.msra.mxu0 %v3039
    %3257 = vmatpush.msra.mxu0 %v3032
    %3258 = vmatpush.msra.mxu0 %v3025
    %3259 = vmatpush.msra.mxu0 %v3018
    %3260 = vmatpush.msra.mxu0 %v3011
    %3261 = vmatpush.msra.mxu0 %v3004
    %3262 = vmatmul.f32.gmra.mxu0 %v2775
    %v3263 = vpop.f32.mrf.mxu0
    %v3264 = vadd.f32 %v3241, %v3263
    %3265 = vmatmul.f32.gmra.mxu0 %v2778
    %v3266 = vpop.f32.mrf.mxu0
    %v3267 = vadd.f32 %v3244, %v3266
    %3268 = vdwg.mxu0
    %3269 = vmatpush.msra.mxu0 %v2886
    %3270 = vmatpush.msra.mxu0 %v2879
    %3271 = vmatpush.msra.mxu0 %v2872
    %3272 = vmatpush.msra.mxu0 %v2865
    %3273 = vmatpush.msra.mxu0 %v2858
    %3274 = vmatpush.msra.mxu0 %v2851
    %3275 = vmatpush.msra.mxu0 %v2844
    %3276 = vmatpush.msra.mxu0 %v2837
    %3277 = vmatpush.msra.mxu0 %v2830
    %3278 = vmatpush.msra.mxu0 %v2823
    %3279 = vmatpush.msra.mxu0 %v2816
    %3280 = vmatpush.msra.mxu0 %v2809
    %3281 = vmatpush.msra.mxu0 %v2802
    %3282 = vmatpush.msra.mxu0 %v2795
    %3283 = vmatpush.msra.mxu0 %v2788
    %3284 = vmatpush.msra.mxu0 %v2781
    %3285 = vmatmul.f32.gmra.mxu0 %v2773
    %v3286 = vpop.f32.mrf.mxu0
    %v3287 = vadd.f32 %v3119, %v3286
    %3288 = vmatmul.f32.gmra.mxu0 %v2776
    %v3289 = vpop.f32.mrf.mxu0
    %v3290 = vadd.f32 %v3119, %v3289
    %3291 = vdwg.mxu0
    %3292 = vmatpush.msra.mxu0 %v2998
    %3293 = vmatpush.msra.mxu0 %v2991
    %3294 = vmatpush.msra.mxu0 %v2984
    %3295 = vmatpush.msra.mxu0 %v2977
    %3296 = vmatpush.msra.mxu0 %v2970
    %3297 = vmatpush.msra.mxu0 %v2963
    %3298 = vmatpush.msra.mxu0 %v2956
    %3299 = vmatpush.msra.mxu0 %v2949
    %3300 = vmatpush.msra.mxu0 %v2942
    %3301 = vmatpush.msra.mxu0 %v2935
    %3302 = vmatpush.msra.mxu0 %v2928
    %3303 = vmatpush.msra.mxu0 %v2921
    %3304 = vmatpush.msra.mxu0 %v2914
    %3305 = vmatpush.msra.mxu0 %v2907
    %3306 = vmatpush.msra.mxu0 %v2900
    %3307 = vmatpush.msra.mxu0 %v2893
    %3308 = vmatmul.f32.gmra.mxu0 %v2774
    %v3309 = vpop.f32.mrf.mxu0
    %v3310 = vadd.f32 %v3287, %v3309
    %3311 = vmatmul.f32.gmra.mxu0 %v2777
    %v3312 = vpop.f32.mrf.mxu0
    %v3313 = vadd.f32 %v3290, %v3312
    %3314 = vdwg.mxu0
    %3315 = vmatpush.msra.mxu0 %v3110
    %3316 = vmatpush.msra.mxu0 %v3103
    %3317 = vmatpush.msra.mxu0 %v3096
    %3318 = vmatpush.msra.mxu0 %v3089
    %3319 = vmatpush.msra.mxu0 %v3082
    %3320 = vmatpush.msra.mxu0 %v3075
    %3321 = vmatpush.msra.mxu0 %v3068
    %3322 = vmatpush.msra.mxu0 %v3061
    %3323 = vmatpush.msra.mxu0 %v3054
    %3324 = vmatpush.msra.mxu0 %v3047
    %3325 = vmatpush.msra.mxu0 %v3040
    %3326 = vmatpush.msra.mxu0 %v3033
    %3327 = vmatpush.msra.mxu0 %v3026
    %3328 = vmatpush.msra.mxu0 %v3019
    %3329 = vmatpush.msra.mxu0 %v3012
    %3330 = vmatpush.msra.mxu0 %v3005
    %3331 = vmatmul.f32.gmra.mxu0 %v2775
    %v3332 = vpop.f32.mrf.mxu0
    %v3333 = vadd.f32 %v3310, %v3332
    %3334 = vmatmul.f32.gmra.mxu0 %v2778
    %v3335 = vpop.f32.mrf.mxu0
    %v3336 = vadd.f32 %v3313, %v3335
    %3337 = vdwg.mxu0
    %3338 = vmatpush.msra.mxu0 %v2887
    %3339 = vmatpush.msra.mxu0 %v2880
    %3340 = vmatpush.msra.mxu0 %v2873
    %3341 = vmatpush.msra.mxu0 %v2866
    %3342 = vmatpush.msra.mxu0 %v2859
    %3343 = vmatpush.msra.mxu0 %v2852
    %3344 = vmatpush.msra.mxu0 %v2845
    %3345 = vmatpush.msra.mxu0 %v2838
    %3346 = vmatpush.msra.mxu0 %v2831
    %3347 = vmatpush.msra.mxu0 %v2824
    %3348 = vmatpush.msra.mxu0 %v2817
    %3349 = vmatpush.msra.mxu0 %v2810
    %3350 = vmatpush.msra.mxu0 %v2803
    %3351 = vmatpush.msra.mxu0 %v2796
    %3352 = vmatpush.msra.mxu0 %v2789
    %3353 = vmatpush.msra.mxu0 %v2782
    %3354 = vmatmul.f32.gmra.mxu0 %v2773
    %v3355 = vpop.f32.mrf.mxu0
    %v3356 = vadd.f32 %v3120, %v3355
    %3357 = vmatmul.f32.gmra.mxu0 %v2776
    %v3358 = vpop.f32.mrf.mxu0
    %v3359 = vadd.f32 %v3120, %v3358
    %3360 = vdwg.mxu0
    %3361 = vmatpush.msra.mxu0 %v2999
    %3362 = vmatpush.msra.mxu0 %v2992
    %3363 = vmatpush.msra.mxu0 %v2985
    %3364 = vmatpush.msra.mxu0 %v2978
    %3365 = vmatpush.msra.mxu0 %v2971
    %3366 = vmatpush.msra.mxu0 %v2964
    %3367 = vmatpush.msra.mxu0 %v2957
    %3368 = vmatpush.msra.mxu0 %v2950
    %3369 = vmatpush.msra.mxu0 %v2943
    %3370 = vmatpush.msra.mxu0 %v2936
    %3371 = vmatpush.msra.mxu0 %v2929
    %3372 = vmatpush.msra.mxu0 %v2922
    %3373 = vmatpush.msra.mxu0 %v2915
    %3374 = vmatpush.msra.mxu0 %v2908
    %3375 = vmatpush.msra.mxu0 %v2901
    %3376 = vmatpush.msra.mxu0 %v2894
    %3377 = vmatmul.f32.gmra.mxu0 %v2774
    %v3378 = vpop.f32.mrf.mxu0
    %v3379 = vadd.f32 %v3356, %v3378
    %3380 = vmatmul.f32.gmra.mxu0 %v2777
    %v3381 = vpop.f32.mrf.mxu0
    %v3382 = vadd.f32 %v3359, %v3381
    %3383 = vdwg.mxu0
    %3384 = vmatpush.msra.mxu0 %v3111
    %3385 = vmatpush.msra.mxu0 %v3104
    %3386 = vmatpush.msra.mxu0 %v3097
    %3387 = vmatpush.msra.mxu0 %v3090
    %3388 = vmatpush.msra.mxu0 %v3083
    %3389 = vmatpush.msra.mxu0 %v3076
    %3390 = vmatpush.msra.mxu0 %v3069
    %3391 = vmatpush.msra.mxu0 %v3062
    %3392 = vmatpush.msra.mxu0 %v3055
    %3393 = vmatpush.msra.mxu0 %v3048
    %3394 = vmatpush.msra.mxu0 %v3041
    %3395 = vmatpush.msra.mxu0 %v3034
    %3396 = vmatpush.msra.mxu0 %v3027
    %3397 = vmatpush.msra.mxu0 %v3020
    %3398 = vmatpush.msra.mxu0 %v3013
    %3399 = vmatpush.msra.mxu0 %v3006
    %3400 = vmatmul.f32.gmra.mxu0 %v2775
    %v3401 = vpop.f32.mrf.mxu0
    %v3402 = vadd.f32 %v3379, %v3401
    %3403 = vmatmul.f32.gmra.mxu0 %v2778
    %v3404 = vpop.f32.mrf.mxu0
    %v3405 = vadd.f32 %v3382, %v3404
    %3406 = vdwg.mxu0
    %3407 = vmatpush.msra.mxu0 %v2888
    %3408 = vmatpush.msra.mxu0 %v2881
    %3409 = vmatpush.msra.mxu0 %v2874
    %3410 = vmatpush.msra.mxu0 %v2867
    %3411 = vmatpush.msra.mxu0 %v2860
    %3412 = vmatpush.msra.mxu0 %v2853
    %3413 = vmatpush.msra.mxu0 %v2846
    %3414 = vmatpush.msra.mxu0 %v2839
    %3415 = vmatpush.msra.mxu0 %v2832
    %3416 = vmatpush.msra.mxu0 %v2825
    %3417 = vmatpush.msra.mxu0 %v2818
    %3418 = vmatpush.msra.mxu0 %v2811
    %3419 = vmatpush.msra.mxu0 %v2804
    %3420 = vmatpush.msra.mxu0 %v2797
    %3421 = vmatpush.msra.mxu0 %v2790
    %3422 = vmatpush.msra.mxu0 %v2783
    %3423 = vmatmul.f32.gmra.mxu0 %v2773
    %v3424 = vpop.f32.mrf.mxu0
    %v3425 = vadd.f32 %v3121, %v3424
    %3426 = vmatmul.f32.gmra.mxu0 %v2776
    %v3427 = vpop.f32.mrf.mxu0
    %v3428 = vadd.f32 %v3121, %v3427
    %3429 = vdwg.mxu0
    %3430 = vmatpush.msra.mxu0 %v3000
    %3431 = vmatpush.msra.mxu0 %v2993
    %3432 = vmatpush.msra.mxu0 %v2986
    %3433 = vmatpush.msra.mxu0 %v2979
    %3434 = vmatpush.msra.mxu0 %v2972
    %3435 = vmatpush.msra.mxu0 %v2965
    %3436 = vmatpush.msra.mxu0 %v2958
    %3437 = vmatpush.msra.mxu0 %v2951
    %3438 = vmatpush.msra.mxu0 %v2944
    %3439 = vmatpush.msra.mxu0 %v2937
    %3440 = vmatpush.msra.mxu0 %v2930
    %3441 = vmatpush.msra.mxu0 %v2923
    %3442 = vmatpush.msra.mxu0 %v2916
    %3443 = vmatpush.msra.mxu0 %v2909
    %3444 = vmatpush.msra.mxu0 %v2902
    %3445 = vmatpush.msra.mxu0 %v2895
    %3446 = vmatmul.f32.gmra.mxu0 %v2774
    %v3447 = vpop.f32.mrf.mxu0
    %v3448 = vadd.f32 %v3425, %v3447
    %3449 = vmatmul.f32.gmra.mxu0 %v2777
    %v3450 = vpop.f32.mrf.mxu0
    %v3451 = vadd.f32 %v3428, %v3450
    %3452 = vdwg.mxu0
    %3453 = vmatpush.msra.mxu0 %v3112
    %3454 = vmatpush.msra.mxu0 %v3105
    %3455 = vmatpush.msra.mxu0 %v3098
    %3456 = vmatpush.msra.mxu0 %v3091
    %3457 = vmatpush.msra.mxu0 %v3084
    %3458 = vmatpush.msra.mxu0 %v3077
    %3459 = vmatpush.msra.mxu0 %v3070
    %3460 = vmatpush.msra.mxu0 %v3063
    %3461 = vmatpush.msra.mxu0 %v3056
    %3462 = vmatpush.msra.mxu0 %v3049
    %3463 = vmatpush.msra.mxu0 %v3042
    %3464 = vmatpush.msra.mxu0 %v3035
    %3465 = vmatpush.msra.mxu0 %v3028
    %3466 = vmatpush.msra.mxu0 %v3021
    %3467 = vmatpush.msra.mxu0 %v3014
    %3468 = vmatpush.msra.mxu0 %v3007
    %3469 = vmatmul.f32.gmra.mxu0 %v2775
    %v3470 = vpop.f32.mrf.mxu0
    %v3471 = vadd.f32 %v3448, %v3470
    %3472 = vmatmul.f32.gmra.mxu0 %v2778
    %v3473 = vpop.f32.mrf.mxu0
    %v3474 = vadd.f32 %v3451, %v3473
    %3475 = vdwg.mxu0
    %3476 = vmatpush.msra.mxu0 %v2889
    %3477 = vmatpush.msra.mxu0 %v2882
    %3478 = vmatpush.msra.mxu0 %v2875
    %3479 = vmatpush.msra.mxu0 %v2868
    %3480 = vmatpush.msra.mxu0 %v2861
    %3481 = vmatpush.msra.mxu0 %v2854
    %3482 = vmatpush.msra.mxu0 %v2847
    %3483 = vmatpush.msra.mxu0 %v2840
    %3484 = vmatpush.msra.mxu0 %v2833
    %3485 = vmatpush.msra.mxu0 %v2826
    %3486 = vmatpush.msra.mxu0 %v2819
    %3487 = vmatpush.msra.mxu0 %v2812
    %3488 = vmatpush.msra.mxu0 %v2805
    %3489 = vmatpush.msra.mxu0 %v2798
    %3490 = vmatpush.msra.mxu0 %v2791
    %3491 = vmatpush.msra.mxu0 %v2784
    %3492 = vmatmul.f32.gmra.mxu0 %v2773
    %v3493 = vpop.f32.mrf.mxu0
    %v3494 = vadd.f32 %v3122, %v3493
    %3495 = vmatmul.f32.gmra.mxu0 %v2776
    %v3496 = vpop.f32.mrf.mxu0
    %v3497 = vadd.f32 %v3122, %v3496
    %3498 = vdwg.mxu0
    %3499 = vmatpush.msra.mxu0 %v3001
    %3500 = vmatpush.msra.mxu0 %v2994
    %3501 = vmatpush.msra.mxu0 %v2987
    %3502 = vmatpush.msra.mxu0 %v2980
    %3503 = vmatpush.msra.mxu0 %v2973
    %3504 = vmatpush.msra.mxu0 %v2966
    %3505 = vmatpush.msra.mxu0 %v2959
    %3506 = vmatpush.msra.mxu0 %v2952
    %3507 = vmatpush.msra.mxu0 %v2945
    %3508 = vmatpush.msra.mxu0 %v2938
    %3509 = vmatpush.msra.mxu0 %v2931
    %3510 = vmatpush.msra.mxu0 %v2924
    %3511 = vmatpush.msra.mxu0 %v2917
    %3512 = vmatpush.msra.mxu0 %v2910
    %3513 = vmatpush.msra.mxu0 %v2903
    %3514 = vmatpush.msra.mxu0 %v2896
    %3515 = vmatmul.f32.gmra.mxu0 %v2774
    %v3516 = vpop.f32.mrf.mxu0
    %v3517 = vadd.f32 %v3494, %v3516
    %3518 = vmatmul.f32.gmra.mxu0 %v2777
    %v3519 = vpop.f32.mrf.mxu0
    %v3520 = vadd.f32 %v3497, %v3519
    %3521 = vdwg.mxu0
    %3522 = vmatpush.msra.mxu0 %v3113
    %3523 = vmatpush.msra.mxu0 %v3106
    %3524 = vmatpush.msra.mxu0 %v3099
    %3525 = vmatpush.msra.mxu0 %v3092
    %3526 = vmatpush.msra.mxu0 %v3085
    %3527 = vmatpush.msra.mxu0 %v3078
    %3528 = vmatpush.msra.mxu0 %v3071
    %3529 = vmatpush.msra.mxu0 %v3064
    %3530 = vmatpush.msra.mxu0 %v3057
    %3531 = vmatpush.msra.mxu0 %v3050
    %3532 = vmatpush.msra.mxu0 %v3043
    %3533 = vmatpush.msra.mxu0 %v3036
    %3534 = vmatpush.msra.mxu0 %v3029
    %3535 = vmatpush.msra.mxu0 %v3022
    %3536 = vmatpush.msra.mxu0 %v3015
    %3537 = vmatpush.msra.mxu0 %v3008
    %3538 = vmatmul.f32.gmra.mxu0 %v2775
    %v3539 = vpop.f32.mrf.mxu0
    %v3540 = vadd.f32 %v3517, %v3539
    %3541 = vmatmul.f32.gmra.mxu0 %v2778
    %v3542 = vpop.f32.mrf.mxu0
    %v3543 = vadd.f32 %v3520, %v3542
    %3544 = vdwg.mxu0
    %3545 = vmatpush.msra.mxu0 %v2890
    %3546 = vmatpush.msra.mxu0 %v2883
    %3547 = vmatpush.msra.mxu0 %v2876
    %3548 = vmatpush.msra.mxu0 %v2869
    %3549 = vmatpush.msra.mxu0 %v2862
    %3550 = vmatpush.msra.mxu0 %v2855
    %3551 = vmatpush.msra.mxu0 %v2848
    %3552 = vmatpush.msra.mxu0 %v2841
    %3553 = vmatpush.msra.mxu0 %v2834
    %3554 = vmatpush.msra.mxu0 %v2827
    %3555 = vmatpush.msra.mxu0 %v2820
    %3556 = vmatpush.msra.mxu0 %v2813
    %3557 = vmatpush.msra.mxu0 %v2806
    %3558 = vmatpush.msra.mxu0 %v2799
    %3559 = vmatpush.msra.mxu0 %v2792
    %3560 = vmatpush.msra.mxu0 %v2785
    %3561 = vmatmul.f32.gmra.mxu0 %v2773
    %v3562 = vpop.f32.mrf.mxu0
    %v3563 = vadd.f32 %v3123, %v3562
    %3564 = vmatmul.f32.gmra.mxu0 %v2776
    %v3565 = vpop.f32.mrf.mxu0
    %v3566 = vadd.f32 %v3123, %v3565
    %3567 = vdwg.mxu0
    %3568 = vmatpush.msra.mxu0 %v3002
    %3569 = vmatpush.msra.mxu0 %v2995
    %3570 = vmatpush.msra.mxu0 %v2988
    %3571 = vmatpush.msra.mxu0 %v2981
    %3572 = vmatpush.msra.mxu0 %v2974
    %3573 = vmatpush.msra.mxu0 %v2967
    %3574 = vmatpush.msra.mxu0 %v2960
    %3575 = vmatpush.msra.mxu0 %v2953
    %3576 = vmatpush.msra.mxu0 %v2946
    %3577 = vmatpush.msra.mxu0 %v2939
    %3578 = vmatpush.msra.mxu0 %v2932
    %3579 = vmatpush.msra.mxu0 %v2925
    %3580 = vmatpush.msra.mxu0 %v2918
    %3581 = vmatpush.msra.mxu0 %v2911
    %3582 = vmatpush.msra.mxu0 %v2904
    %3583 = vmatpush.msra.mxu0 %v2897
    %3584 = vmatmul.f32.gmra.mxu0 %v2774
    %v3585 = vpop.f32.mrf.mxu0
    %v3586 = vadd.f32 %v3563, %v3585
    %3587 = vmatmul.f32.gmra.mxu0 %v2777
    %v3588 = vpop.f32.mrf.mxu0
    %v3589 = vadd.f32 %v3566, %v3588
    %3590 = vdwg.mxu0
    %3591 = vmatpush.msra.mxu0 %v3114
    %3592 = vmatpush.msra.mxu0 %v3107
    %3593 = vmatpush.msra.mxu0 %v3100
    %3594 = vmatpush.msra.mxu0 %v3093
    %3595 = vmatpush.msra.mxu0 %v3086
    %3596 = vmatpush.msra.mxu0 %v3079
    %3597 = vmatpush.msra.mxu0 %v3072
    %3598 = vmatpush.msra.mxu0 %v3065
    %3599 = vmatpush.msra.mxu0 %v3058
    %3600 = vmatpush.msra.mxu0 %v3051
    %3601 = vmatpush.msra.mxu0 %v3044
    %3602 = vmatpush.msra.mxu0 %v3037
    %3603 = vmatpush.msra.mxu0 %v3030
    %3604 = vmatpush.msra.mxu0 %v3023
    %3605 = vmatpush.msra.mxu0 %v3016
    %3606 = vmatpush.msra.mxu0 %v3009
    %3607 = vmatmul.f32.gmra.mxu0 %v2775
    %v3608 = vpop.f32.mrf.mxu0
    %v3609 = vadd.f32 %v3586, %v3608
    %3610 = vmatmul.f32.gmra.mxu0 %v2778
    %v3611 = vpop.f32.mrf.mxu0
    %v3612 = vadd.f32 %v3589, %v3611
    %3613 = vdwg.mxu0
    %v3614 = vmax.f32 %v3195, 0.0
    %v3615 = vmax.f32 %v3264, 0.0
    %v3616 = vmax.f32 %v3333, 0.0
    %v3617 = vmax.f32 %v3402, 0.0
    %v3618 = vmax.f32 %v3471, 0.0
    %v3619 = vmax.f32 %v3540, 0.0
    %v3620 = vmax.f32 %v3609, 0.0
    %v3621 = vmax.f32 %v3198, 0.0
    %v3622 = vmax.f32 %v3267, 0.0
    %v3623 = vmax.f32 %v3336, 0.0
    %v3624 = vmax.f32 %v3405, 0.0
    %v3625 = vmax.f32 %v3474, 0.0
    %v3626 = vmax.f32 %v3543, 0.0
    %v3627 = vmax.f32 %v3612, 0.0
    %v3628 = vld [vmem:[#allocation19] sm:$0xff]
    %v3629 = vld [vmem:[#allocation19 + $0x8] sm:$0xff]
    %v3630 = vld [vmem:[#allocation19 + $0x10] sm:$0xff]
    %v3631 = vld [vmem:[#allocation19 + $0x18] sm:$0xff]
    %v3632 = vld [vmem:[#allocation19 + $0x20] sm:$0xff]
    %v3633 = vld [vmem:[#allocation19 + $0x28] sm:$0xff]
    %v3634 = vld [vmem:[#allocation19 + $0x30] sm:$0xff]
    %v3635 = vld [vmem:[#allocation19 + $0x38] sm:$0xff]
    %v3636 = vld [vmem:[#allocation19 + $0x40] sm:$0xff]
    %v3637 = vld [vmem:[#allocation19 + $0x48] sm:$0xff]
    %v3638 = vld [vmem:[#allocation19 + $0x50] sm:$0xff]
    %v3639 = vld [vmem:[#allocation19 + $0x58] sm:$0xff]
    %v3640 = vld [vmem:[#allocation19 + $0x60] sm:$0xff]
    %v3641 = vld [vmem:[#allocation19 + $0x68] sm:$0xff]
    %v3642 = vld [vmem:[#allocation19 + $0x70] sm:$0xff]
    %v3643 = vld [vmem:[#allocation19 + $0x78] sm:$0xff]
    %v3644 = vld [vmem:[#allocation19 + $0x80] sm:$0xff]
    %v3645 = vld [vmem:[#allocation19 + $0x88] sm:$0xff]
    %v3646 = vld [vmem:[#allocation19 + $0x90] sm:$0xff]
    %v3647 = vld [vmem:[#allocation19 + $0x98] sm:$0xff]
    %v3648 = vld [vmem:[#allocation19 + $0xa0] sm:$0xff]
    %v3649 = vld [vmem:[#allocation19 + $0xa8] sm:$0xff]
    %v3650 = vld [vmem:[#allocation19 + $0xb0] sm:$0xff]
    %v3651 = vld [vmem:[#allocation19 + $0xb8] sm:$0xff]
    %v3652 = vld [vmem:[#allocation19 + $0xc0] sm:$0xff]
    %v3653 = vld [vmem:[#allocation19 + $0xc8] sm:$0xff]
    %v3654 = vld [vmem:[#allocation19 + $0xd0] sm:$0xff]
    %v3655 = vld [vmem:[#allocation19 + $0xd8] sm:$0xff]
    %v3656 = vld [vmem:[#allocation19 + $0xe0] sm:$0xff]
    %v3657 = vld [vmem:[#allocation19 + $0xe8] sm:$0xff]
    %v3658 = vld [vmem:[#allocation19 + $0xf0] sm:$0xff]
    %v3659 = vld [vmem:[#allocation19 + $0xf8] sm:$0xff]
    %v3660 = vld [vmem:[#allocation19 + $0x100] sm:$0xff]
    %v3661 = vld [vmem:[#allocation19 + $0x108] sm:$0xff]
    %v3662 = vld [vmem:[#allocation19 + $0x110] sm:$0xff]
    %v3663 = vld [vmem:[#allocation19 + $0x118] sm:$0xff]
    %v3664 = vld [vmem:[#allocation19 + $0x120] sm:$0xff]
    %v3665 = vld [vmem:[#allocation19 + $0x128] sm:$0xff]
    %v3666 = vld [vmem:[#allocation19 + $0x130] sm:$0xff]
    %v3667 = vld [vmem:[#allocation19 + $0x138] sm:$0xff]
    %v3668 = vld [vmem:[#allocation19 + $0x140] sm:$0xff]
    %v3669 = vld [vmem:[#allocation19 + $0x148] sm:$0xff]
    %v3670 = vld [vmem:[#allocation19 + $0x150] sm:$0xff]
    %v3671 = vld [vmem:[#allocation19 + $0x158] sm:$0xff]
    %v3672 = vld [vmem:[#allocation19 + $0x160] sm:$0xff]
    %v3673 = vld [vmem:[#allocation19 + $0x168] sm:$0xff]
    %v3674 = vld [vmem:[#allocation19 + $0x170] sm:$0xff]
    %v3675 = vld [vmem:[#allocation19 + $0x178] sm:$0xff]
    %v3676 = vld [vmem:[#allocation19 + $0x180] sm:$0xff]
    %v3677 = vld [vmem:[#allocation19 + $0x188] sm:$0xff]
    %v3678 = vld [vmem:[#allocation19 + $0x190] sm:$0xff]
    %v3679 = vld [vmem:[#allocation19 + $0x198] sm:$0xff]
    %v3680 = vld [vmem:[#allocation19 + $0x1a0] sm:$0xff]
    %v3681 = vld [vmem:[#allocation19 + $0x1a8] sm:$0xff]
    %v3682 = vld [vmem:[#allocation19 + $0x1b0] sm:$0xff]
    %v3683 = vld [vmem:[#allocation19 + $0x1b8] sm:$0xff]
    %v3684 = vld [vmem:[#allocation19 + $0x1c0] sm:$0xff]
    %v3685 = vld [vmem:[#allocation19 + $0x1c8] sm:$0xff]
    %v3686 = vld [vmem:[#allocation19 + $0x1d0] sm:$0xff]
    %v3687 = vld [vmem:[#allocation19 + $0x1d8] sm:$0xff]
    %v3688 = vld [vmem:[#allocation19 + $0x1e0] sm:$0xff]
    %v3689 = vld [vmem:[#allocation19 + $0x1e8] sm:$0xff]
    %v3690 = vld [vmem:[#allocation19 + $0x1f0] sm:$0xff]
    %v3691 = vld [vmem:[#allocation19 + $0x1f8] sm:$0xff]
    %v3692 = vld [vmem:[#allocation19 + $0x200] sm:$0xff]
    %v3693 = vld [vmem:[#allocation19 + $0x208] sm:$0xff]
    %v3694 = vld [vmem:[#allocation19 + $0x210] sm:$0xff]
    %v3695 = vld [vmem:[#allocation19 + $0x218] sm:$0xff]
    %v3696 = vld [vmem:[#allocation19 + $0x220] sm:$0xff]
    %v3697 = vld [vmem:[#allocation19 + $0x228] sm:$0xff]
    %v3698 = vld [vmem:[#allocation19 + $0x230] sm:$0xff]
    %v3699 = vld [vmem:[#allocation19 + $0x238] sm:$0xff]
    %v3700 = vld [vmem:[#allocation19 + $0x240] sm:$0xff]
    %v3701 = vld [vmem:[#allocation19 + $0x248] sm:$0xff]
    %v3702 = vld [vmem:[#allocation19 + $0x250] sm:$0xff]
    %v3703 = vld [vmem:[#allocation19 + $0x258] sm:$0xff]
    %v3704 = vld [vmem:[#allocation19 + $0x260] sm:$0xff]
    %v3705 = vld [vmem:[#allocation19 + $0x268] sm:$0xff]
    %v3706 = vld [vmem:[#allocation19 + $0x270] sm:$0xff]
    %v3707 = vld [vmem:[#allocation19 + $0x278] sm:$0xff]
    %v3708 = vld [vmem:[#allocation19 + $0x280] sm:$0xff]
    %v3709 = vld [vmem:[#allocation19 + $0x288] sm:$0xff]
    %v3710 = vld [vmem:[#allocation19 + $0x290] sm:$0xff]
    %v3711 = vld [vmem:[#allocation19 + $0x298] sm:$0xff]
    %v3712 = vld [vmem:[#allocation19 + $0x2a0] sm:$0xff]
    %v3713 = vld [vmem:[#allocation19 + $0x2a8] sm:$0xff]
    %v3714 = vld [vmem:[#allocation19 + $0x2b0] sm:$0xff]
    %v3715 = vld [vmem:[#allocation19 + $0x2b8] sm:$0xff]
    %v3716 = vld [vmem:[#allocation19 + $0x2c0] sm:$0xff]
    %v3717 = vld [vmem:[#allocation19 + $0x2c8] sm:$0xff]
    %v3718 = vld [vmem:[#allocation19 + $0x2d0] sm:$0xff]
    %v3719 = vld [vmem:[#allocation19 + $0x2d8] sm:$0xff]
    %v3720 = vld [vmem:[#allocation19 + $0x2e0] sm:$0xff]
    %v3721 = vld [vmem:[#allocation19 + $0x2e8] sm:$0xff]
    %v3722 = vld [vmem:[#allocation19 + $0x2f0] sm:$0xff]
    %v3723 = vld [vmem:[#allocation19 + $0x2f8] sm:$0xff]
    %v3724 = vld [vmem:[#allocation19 + $0x300] sm:$0xff]
    %v3725 = vld [vmem:[#allocation19 + $0x308] sm:$0xff]
    %v3726 = vld [vmem:[#allocation19 + $0x310] sm:$0xff]
    %v3727 = vld [vmem:[#allocation19 + $0x318] sm:$0xff]
    %v3728 = vld [vmem:[#allocation19 + $0x320] sm:$0xff]
    %v3729 = vld [vmem:[#allocation19 + $0x328] sm:$0xff]
    %v3730 = vld [vmem:[#allocation19 + $0x330] sm:$0xff]
    %v3731 = vld [vmem:[#allocation19 + $0x338] sm:$0xff]
    %v3732 = vld [vmem:[#allocation19 + $0x340] sm:$0xff]
    %v3733 = vld [vmem:[#allocation19 + $0x348] sm:$0xff]
    %v3734 = vld [vmem:[#allocation19 + $0x350] sm:$0xff]
    %v3735 = vld [vmem:[#allocation19 + $0x358] sm:$0xff]
    %v3736 = vld [vmem:[#allocation19 + $0x360] sm:$0xff]
    %v3737 = vld [vmem:[#allocation19 + $0x368] sm:$0xff]
    %v3738 = vld [vmem:[#allocation19 + $0x370] sm:$0xff]
    %v3739 = vld [vmem:[#allocation19 + $0x378] sm:$0xff]
    %v3740 = vld [vmem:[#allocation21] sm:$0x1]
    %v3742 = vperm.slane %v3740, 0
    %3744 = vmatpush.msra.mxu0 %v3643
    %3745 = vmatpush.msra.mxu0 %v3642
    %3746 = vmatpush.msra.mxu0 %v3641
    %3747 = vmatpush.msra.mxu0 %v3640
    %3748 = vmatpush.msra.mxu0 %v3639
    %3749 = vmatpush.msra.mxu0 %v3638
    %3750 = vmatpush.msra.mxu0 %v3637
    %3751 = vmatpush.msra.mxu0 %v3636
    %3752 = vmatpush.msra.mxu0 %v3635
    %3753 = vmatpush.msra.mxu0 %v3634
    %3754 = vmatpush.msra.mxu0 %v3633
    %3755 = vmatpush.msra.mxu0 %v3632
    %3756 = vmatpush.msra.mxu0 %v3631
    %3757 = vmatpush.msra.mxu0 %v3630
    %3758 = vmatpush.msra.mxu0 %v3629
    %3759 = vmatpush.msra.mxu0 %v3628
    %3760 = vmatmul.f32.gmra.mxu0 %v3614
    %v3761 = vpop.f32.mrf.mxu0
    %v3762 = vadd.f32 %v3742, %v3761
    %3763 = vmatmul.f32.gmra.mxu0 %v3621
    %v3764 = vpop.f32.mrf.mxu0
    %v3765 = vadd.f32 %v3742, %v3764
    %3766 = vdwg.mxu0
    %3767 = vmatpush.msra.mxu0 %v3659
    %3768 = vmatpush.msra.mxu0 %v3658
    %3769 = vmatpush.msra.mxu0 %v3657
    %3770 = vmatpush.msra.mxu0 %v3656
    %3771 = vmatpush.msra.mxu0 %v3655
    %3772 = vmatpush.msra.mxu0 %v3654
    %3773 = vmatpush.msra.mxu0 %v3653
    %3774 = vmatpush.msra.mxu0 %v3652
    %3775 = vmatpush.msra.mxu0 %v3651
    %3776 = vmatpush.msra.mxu0 %v3650
    %3777 = vmatpush.msra.mxu0 %v3649
    %3778 = vmatpush.msra.mxu0 %v3648
    %3779 = vmatpush.msra.mxu0 %v3647
    %3780 = vmatpush.msra.mxu0 %v3646
    %3781 = vmatpush.msra.mxu0 %v3645
    %3782 = vmatpush.msra.mxu0 %v3644
    %3783 = vmatmul.f32.gmra.mxu0 %v3615
    %v3784 = vpop.f32.mrf.mxu0
    %v3785 = vadd.f32 %v3762, %v3784
    %3786 = vmatmul.f32.gmra.mxu0 %v3622
    %v3787 = vpop.f32.mrf.mxu0
    %v3788 = vadd.f32 %v3765, %v3787
    %3789 = vdwg.mxu0
    %3790 = vmatpush.msra.mxu0 %v3675
    %3791 = vmatpush.msra.mxu0 %v3674
    %3792 = vmatpush.msra.mxu0 %v3673
    %3793 = vmatpush.msra.mxu0 %v3672
    %3794 = vmatpush.msra.mxu0 %v3671
    %3795 = vmatpush.msra.mxu0 %v3670
    %3796 = vmatpush.msra.mxu0 %v3669
    %3797 = vmatpush.msra.mxu0 %v3668
    %3798 = vmatpush.msra.mxu0 %v3667
    %3799 = vmatpush.msra.mxu0 %v3666
    %3800 = vmatpush.msra.mxu0 %v3665
    %3801 = vmatpush.msra.mxu0 %v3664
    %3802 = vmatpush.msra.mxu0 %v3663
    %3803 = vmatpush.msra.mxu0 %v3662
    %3804 = vmatpush.msra.mxu0 %v3661
    %3805 = vmatpush.msra.mxu0 %v3660
    %3806 = vmatmul.f32.gmra.mxu0 %v3616
    %v3807 = vpop.f32.mrf.mxu0
    %v3808 = vadd.f32 %v3785, %v3807
    %3809 = vmatmul.f32.gmra.mxu0 %v3623
    %v3810 = vpop.f32.mrf.mxu0
    %v3811 = vadd.f32 %v3788, %v3810
    %3812 = vdwg.mxu0
    %3813 = vmatpush.msra.mxu0 %v3691
    %3814 = vmatpush.msra.mxu0 %v3690
    %3815 = vmatpush.msra.mxu0 %v3689
    %3816 = vmatpush.msra.mxu0 %v3688
    %3817 = vmatpush.msra.mxu0 %v3687
    %3818 = vmatpush.msra.mxu0 %v3686
    %3819 = vmatpush.msra.mxu0 %v3685
    %3820 = vmatpush.msra.mxu0 %v3684
    %3821 = vmatpush.msra.mxu0 %v3683
    %3822 = vmatpush.msra.mxu0 %v3682
    %3823 = vmatpush.msra.mxu0 %v3681
    %3824 = vmatpush.msra.mxu0 %v3680
    %3825 = vmatpush.msra.mxu0 %v3679
    %3826 = vmatpush.msra.mxu0 %v3678
    %3827 = vmatpush.msra.mxu0 %v3677
    %3828 = vmatpush.msra.mxu0 %v3676
    %3829 = vmatmul.f32.gmra.mxu0 %v3617
    %v3830 = vpop.f32.mrf.mxu0
    %v3831 = vadd.f32 %v3808, %v3830
    %3832 = vmatmul.f32.gmra.mxu0 %v3624
    %v3833 = vpop.f32.mrf.mxu0
    %v3834 = vadd.f32 %v3811, %v3833
    %3835 = vdwg.mxu0
    %3836 = vmatpush.msra.mxu0 %v3707
    %3837 = vmatpush.msra.mxu0 %v3706
    %3838 = vmatpush.msra.mxu0 %v3705
    %3839 = vmatpush.msra.mxu0 %v3704
    %3840 = vmatpush.msra.mxu0 %v3703
    %3841 = vmatpush.msra.mxu0 %v3702
    %3842 = vmatpush.msra.mxu0 %v3701
    %3843 = vmatpush.msra.mxu0 %v3700
    %3844 = vmatpush.msra.mxu0 %v3699
    %3845 = vmatpush.msra.mxu0 %v3698
    %3846 = vmatpush.msra.mxu0 %v3697
    %3847 = vmatpush.msra.mxu0 %v3696
    %3848 = vmatpush.msra.mxu0 %v3695
    %3849 = vmatpush.msra.mxu0 %v3694
    %3850 = vmatpush.msra.mxu0 %v3693
    %3851 = vmatpush.msra.mxu0 %v3692
    %3852 = vmatmul.f32.gmra.mxu0 %v3618
    %v3853 = vpop.f32.mrf.mxu0
    %v3854 = vadd.f32 %v3831, %v3853
    %3855 = vmatmul.f32.gmra.mxu0 %v3625
    %v3856 = vpop.f32.mrf.mxu0
    %v3857 = vadd.f32 %v3834, %v3856
    %3858 = vdwg.mxu0
    %3859 = vmatpush.msra.mxu0 %v3723
    %3860 = vmatpush.msra.mxu0 %v3722
    %3861 = vmatpush.msra.mxu0 %v3721
    %3862 = vmatpush.msra.mxu0 %v3720
    %3863 = vmatpush.msra.mxu0 %v3719
    %3864 = vmatpush.msra.mxu0 %v3718
    %3865 = vmatpush.msra.mxu0 %v3717
    %3866 = vmatpush.msra.mxu0 %v3716
    %3867 = vmatpush.msra.mxu0 %v3715
    %3868 = vmatpush.msra.mxu0 %v3714
    %3869 = vmatpush.msra.mxu0 %v3713
    %3870 = vmatpush.msra.mxu0 %v3712
    %3871 = vmatpush.msra.mxu0 %v3711
    %3872 = vmatpush.msra.mxu0 %v3710
    %3873 = vmatpush.msra.mxu0 %v3709
    %3874 = vmatpush.msra.mxu0 %v3708
    %3875 = vmatmul.f32.gmra.mxu0 %v3619
    %v3876 = vpop.f32.mrf.mxu0
    %v3877 = vadd.f32 %v3854, %v3876
    %3878 = vmatmul.f32.gmra.mxu0 %v3626
    %v3879 = vpop.f32.mrf.mxu0
    %v3880 = vadd.f32 %v3857, %v3879
    %3881 = vdwg.mxu0
    %3882 = vmatpush.msra.mxu0 %v3739
    %3883 = vmatpush.msra.mxu0 %v3738
    %3884 = vmatpush.msra.mxu0 %v3737
    %3885 = vmatpush.msra.mxu0 %v3736
    %3886 = vmatpush.msra.mxu0 %v3735
    %3887 = vmatpush.msra.mxu0 %v3734
    %3888 = vmatpush.msra.mxu0 %v3733
    %3889 = vmatpush.msra.mxu0 %v3732
    %3890 = vmatpush.msra.mxu0 %v3731
    %3891 = vmatpush.msra.mxu0 %v3730
    %3892 = vmatpush.msra.mxu0 %v3729
    %3893 = vmatpush.msra.mxu0 %v3728
    %3894 = vmatpush.msra.mxu0 %v3727
    %3895 = vmatpush.msra.mxu0 %v3726
    %3896 = vmatpush.msra.mxu0 %v3725
    %3897 = vmatpush.msra.mxu0 %v3724
    %3898 = vmatmul.f32.gmra.mxu0 %v3620
    %v3899 = vpop.f32.mrf.mxu0
    %v3900 = vadd.f32 %v3877, %v3899
    %3901 = vmatmul.f32.gmra.mxu0 %v3627
    %v3902 = vpop.f32.mrf.mxu0
    %v3903 = vadd.f32 %v3880, %v3902
    %3904 = vdwg.mxu0
    %3905 = vst [vmem:[%s13] sm:$0xff] %v3900
    %3906 = vst [vmem:[%s13 + $0x8] sm:$0xff] %v3903
    // Predicated region
    $region106: #{fwd.1} parent=1 // pred_check
      _
    $region107: #{fwd.1} parent=1 // pred_check_branch
      %3908 = sbr.rel (0) target = $region109
    $region108: #{fwd.1} parent=1 // pred_region
      _
    $region109: #{fwd.1} parent=1 // pred_fallthru
      _
    // Predicated region
    $region110: #{fwd.1} parent=1 // pred_check
      _
    $region111: #{fwd.1} parent=1 // pred_check_branch
      %3910 = sbr.rel (0) target = $region113
    $region112: #{fwd.1} parent=1 // pred_region
      _
    $region113: #{fwd.1} parent=1 // pred_fallthru
      _
    %3911 = vsyncpa [#allocation3], 1
    %3912 = vsyncpa [#allocation5], 1
    %3913 = vsyncpa [#allocation8], 1
    %3914 = vsyncpa [#allocation11], 1
    %3915 = vsyncpa [#allocation14], 1
    %3916 = vsyncpa [#allocation17], 1
    %3917 = vsyncpa [#allocation20], 1

</llo_original>
